<compile_context>
chip_gen: v5e
topology: v5e:2x2
jax: 0.10.0
libtpu: 0.0.40
codegen_flags: <defaults>
</compile_context>

<pallas_src>
import math
from functools import partial

import jax
import jax.numpy as jnp
from jax.experimental import pallas as pl
from jax.experimental.pallas import tpu as pltpu


def _round_up(x, m):
    return ((x + m - 1) // m) * m


def _make_fused_kernel(n_layers):
    """Returns the fused-MLP kernel.

    Kernel ref layout:
      x_ref,
      w1_hbm, b1, w2_hbm, b2, ..., wN_hbm, bN,
      o_ref,
      wbuf1, ..., wbufN,            (VMEM scratch, one per layer's padded weight)
      sem                           (DMA semaphores, shape (N,))
    """

    def kernel(*refs):
        x_ref = refs[0]
        wb = refs[1:1 + 2 * n_layers]
        o_ref = refs[1 + 2 * n_layers]
        wbufs = refs[2 + 2 * n_layers:2 + 3 * n_layers]
        sem = refs[2 + 3 * n_layers]

        # Issue all weight DMAs (HBM -> VMEM) up front. Each layer waits only on
        # its own copy, so later weight DMAs overlap earlier layers' compute.
        copies = []
        for i in range(n_layers):
            cp = pltpu.make_async_copy(wb[2 * i], wbufs[i], sem.at[i])
            cp.start()
            copies.append(cp)

        h = x_ref[...]  # (Bp, D0) f32, lives in vregs from here on
        for i in range(n_layers):
            copies[i].wait()
            y = jnp.dot(
                h.astype(jnp.bfloat16),
                wbufs[i][...],                      # bf16 (In_p, Out_p)
                preferred_element_type=jnp.float32,  # f32 MXU accumulation
            )
            y = y + wb[2 * i + 1][...]              # (1, Out_p) f32 bias broadcast
            if i < n_layers - 1:
                y = jnp.maximum(y, 0.0)
            h = y
        o_ref[...] = h.astype(o_ref.dtype)

    return kernel


def prepare_params(params):
    """ONE-TIME prep (call outside the jitted forward): zero-pad every weight/bias
    to lane-aligned (128-multiple) feature dims; cast weights to bf16, keep biases
    f32. Zero padding is exact: padded rows/cols contribute exactly 0."""
    prepped = []
    for w, b in params:
        fi, fo = w.shape
        fi_p, fo_p = _round_up(fi, 128), _round_up(fo, 128)
        w_p = jnp.zeros((fi_p, fo_p), jnp.bfloat16).at[:fi, :fo].set(
            w.astype(jnp.bfloat16)
        )
        b_p = jnp.zeros((1, fo_p), jnp.float32).at[0, :fo].set(b)
        prepped.append((w_p, b_p))
    return tuple(prepped)


@partial(jax.jit, static_argnames=("out_dim",))
def mlp_forward(x, prepped, out_dim):
    """Fused 5-layer MLP forward.

    x: (B, inp_size) f32.  prepped: output of prepare_params().  out_dim: true
    (unpadded) number of prediction targets.
    """
    B, in_dim = x.shape
    n_layers = len(prepped)

    b_pad = max(16, _round_up(B, 16))     # sublane granularity (bf16 packs 16)
    in_pad = prepped[0][0].shape[0]       # already 128-aligned
    out_pad = prepped[-1][0].shape[1]

    x_p = jnp.zeros((b_pad, in_pad), jnp.float32).at[:B, :in_dim].set(x)

    flat = [a for wb in prepped for a in wb]  # w1, b1, w2, b2, ...

    in_specs = [pl.BlockSpec(memory_space=pltpu.MemorySpace.VMEM)]  # x_p
    for _ in range(n_layers):
        in_specs.append(pl.BlockSpec(memory_space=pl.ANY))                   # weight in HBM
        in_specs.append(pl.BlockSpec(memory_space=pltpu.MemorySpace.VMEM))   # bias in VMEM

    scratch_shapes = [pltpu.VMEM(w.shape, jnp.bfloat16) for (w, _) in prepped]
    scratch_shapes.append(pltpu.SemaphoreType.DMA((n_layers,)))

    out_p = pl.pallas_call(
        _make_fused_kernel(n_layers),
        out_shape=jax.ShapeDtypeStruct((b_pad, out_pad), jnp.float32),
        in_specs=in_specs,
        out_specs=pl.BlockSpec(memory_space=pltpu.MemorySpace.VMEM),
        scratch_shapes=scratch_shapes,
    )(x_p, *flat)

    return out_p[:B, :out_dim]


def init_params(key, inp_size, num_pred_tgt, hidden=(400, 500, 600, 800)):
    """Deterministic PyTorch-like init: U(-1/sqrt(fan_in), 1/sqrt(fan_in))."""
    dims = [inp_size] + list(hidden) + [num_pred_tgt]
    params = []
    for i in range(len(dims) - 1):
        fan_in, fan_out = dims[i], dims[i + 1]
        key, kw, kb = jax.random.split(key, 3)
        bound = 1.0 / math.sqrt(fan_in)
        w = jax.random.uniform(kw, (fan_in, fan_out), jnp.float32, -bound, bound)
        b = jax.random.uniform(kb, (fan_out,), jnp.float32, -bound, bound)
        params.append((w, b))
    return params


def mlp_reference(x, params):
    """Plain-JAX reference following the exact same reduced-precision math path
    (bf16 operands into the dot, f32 accumulation, f32 bias/ReLU)."""
    h = x
    n = len(params)
    for i, (w, b) in enumerate(params):
        y = jnp.dot(
            h.astype(jnp.bfloat16),
            w.astype(jnp.bfloat16),
            preferred_element_type=jnp.float32,
        ) + b
        if i < n - 1:
            y = jnp.maximum(y, 0.0)
        h = y
    return h


if __name__ == "__main__":
    key = jax.random.PRNGKey(0)
    inp_size = 32
    num_pred_tgt = 8
    batch = 2

    key, kx = jax.random.split(key)
    x = jax.random.normal(kx, (batch, inp_size), jnp.float32)

    params = init_params(key, inp_size, num_pred_tgt)

    # One-time weight prep, hoisted out of the per-call jitted forward path.
    prepped = prepare_params(params)
    prepped = jax.block_until_ready(prepped)

    out = mlp_forward(x, prepped, out_dim=num_pred_tgt)
    out = jax.block_until_ready(out)

    ref = mlp_reference(x, params)

    assert out.shape == (batch, num_pred_tgt), out.shape
    assert jnp.allclose(out, ref, atol=2e-3, rtol=2e-3), (
        float(jnp.max(jnp.abs(out - ref)))
    )

    print("KERNEL_OK")
</pallas_src>

<mosaic_0001>
module attributes {stable_mosaic.version = 11 : i64} {
  func.func @kernel(%arg0: memref<16x128xf32, #tpu.memory_space<vmem>>, %arg1: memref<128x512xbf16, #tpu.memory_space<any>>, %arg2: memref<1x512xf32, #tpu.memory_space<vmem>>, %arg3: memref<512x512xbf16, #tpu.memory_space<any>>, %arg4: memref<1x512xf32, #tpu.memory_space<vmem>>, %arg5: memref<512x640xbf16, #tpu.memory_space<any>>, %arg6: memref<1x640xf32, #tpu.memory_space<vmem>>, %arg7: memref<640x896xbf16, #tpu.memory_space<any>>, %arg8: memref<1x896xf32, #tpu.memory_space<vmem>>, %arg9: memref<896x128xbf16, #tpu.memory_space<any>>, %arg10: memref<1x128xf32, #tpu.memory_space<vmem>>, %arg11: memref<16x128xf32, #tpu.memory_space<vmem>>, %arg12: memref<128x512xbf16, #tpu.memory_space<vmem>>, %arg13: memref<512x512xbf16, #tpu.memory_space<vmem>>, %arg14: memref<512x640xbf16, #tpu.memory_space<vmem>>, %arg15: memref<640x896xbf16, #tpu.memory_space<vmem>>, %arg16: memref<896x128xbf16, #tpu.memory_space<vmem>>, %arg17: memref<5x!tpu.dma_semaphore, #tpu.memory_space<semaphore_mem>>) attributes {dimension_semantics = [], scalar_prefetch = 0 : i64, scratch_operands = 6 : i64, tpu.core_type = #tpu.core_type<tc>} {
    %c0_i32 = arith.constant 0 : i32
    %0 = tpu.memref_slice %arg17[%c0_i32] : memref<5x!tpu.dma_semaphore, #tpu.memory_space<semaphore_mem>> -> memref<1x!tpu.dma_semaphore, #tpu.memory_space<semaphore_mem>>
    %1 = tpu.memref_squeeze %0 : memref<1x!tpu.dma_semaphore, #tpu.memory_space<semaphore_mem>> -> memref<!tpu.dma_semaphore, #tpu.memory_space<semaphore_mem>>
    tpu.enqueue_dma source(%arg1 : memref<128x512xbf16, #tpu.memory_space<any>>) target(%arg12 : memref<128x512xbf16, #tpu.memory_space<vmem>>) target_semaphore(%1 : memref<!tpu.dma_semaphore, #tpu.memory_space<semaphore_mem>>)
    %c1_i32 = arith.constant 1 : i32
    %2 = tpu.memref_slice %arg17[%c1_i32] : memref<5x!tpu.dma_semaphore, #tpu.memory_space<semaphore_mem>> -> memref<1x!tpu.dma_semaphore, #tpu.memory_space<semaphore_mem>>
    %3 = tpu.memref_squeeze %2 : memref<1x!tpu.dma_semaphore, #tpu.memory_space<semaphore_mem>> -> memref<!tpu.dma_semaphore, #tpu.memory_space<semaphore_mem>>
    tpu.enqueue_dma source(%arg3 : memref<512x512xbf16, #tpu.memory_space<any>>) target(%arg13 : memref<512x512xbf16, #tpu.memory_space<vmem>>) target_semaphore(%3 : memref<!tpu.dma_semaphore, #tpu.memory_space<semaphore_mem>>)
    %c2_i32 = arith.constant 2 : i32
    %4 = tpu.memref_slice %arg17[%c2_i32] : memref<5x!tpu.dma_semaphore, #tpu.memory_space<semaphore_mem>> -> memref<1x!tpu.dma_semaphore, #tpu.memory_space<semaphore_mem>>
    %5 = tpu.memref_squeeze %4 : memref<1x!tpu.dma_semaphore, #tpu.memory_space<semaphore_mem>> -> memref<!tpu.dma_semaphore, #tpu.memory_space<semaphore_mem>>
    tpu.enqueue_dma source(%arg5 : memref<512x640xbf16, #tpu.memory_space<any>>) target(%arg14 : memref<512x640xbf16, #tpu.memory_space<vmem>>) target_semaphore(%5 : memref<!tpu.dma_semaphore, #tpu.memory_space<semaphore_mem>>)
    %c3_i32 = arith.constant 3 : i32
    %6 = tpu.memref_slice %arg17[%c3_i32] : memref<5x!tpu.dma_semaphore, #tpu.memory_space<semaphore_mem>> -> memref<1x!tpu.dma_semaphore, #tpu.memory_space<semaphore_mem>>
    %7 = tpu.memref_squeeze %6 : memref<1x!tpu.dma_semaphore, #tpu.memory_space<semaphore_mem>> -> memref<!tpu.dma_semaphore, #tpu.memory_space<semaphore_mem>>
    tpu.enqueue_dma source(%arg7 : memref<640x896xbf16, #tpu.memory_space<any>>) target(%arg15 : memref<640x896xbf16, #tpu.memory_space<vmem>>) target_semaphore(%7 : memref<!tpu.dma_semaphore, #tpu.memory_space<semaphore_mem>>)
    %c4_i32 = arith.constant 4 : i32
    %8 = tpu.memref_slice %arg17[%c4_i32] : memref<5x!tpu.dma_semaphore, #tpu.memory_space<semaphore_mem>> -> memref<1x!tpu.dma_semaphore, #tpu.memory_space<semaphore_mem>>
    %9 = tpu.memref_squeeze %8 : memref<1x!tpu.dma_semaphore, #tpu.memory_space<semaphore_mem>> -> memref<!tpu.dma_semaphore, #tpu.memory_space<semaphore_mem>>
    tpu.enqueue_dma source(%arg9 : memref<896x128xbf16, #tpu.memory_space<any>>) target(%arg16 : memref<896x128xbf16, #tpu.memory_space<vmem>>) target_semaphore(%9 : memref<!tpu.dma_semaphore, #tpu.memory_space<semaphore_mem>>)
    %c0 = arith.constant 0 : index
    %c0_0 = arith.constant 0 : index
    %10 = vector.load %arg0[%c0, %c0_0] : memref<16x128xf32, #tpu.memory_space<vmem>>, vector<16x128xf32>
    %c0_i32_1 = arith.constant 0 : i32
    %11 = tpu.memref_slice %arg17[%c0_i32_1] : memref<5x!tpu.dma_semaphore, #tpu.memory_space<semaphore_mem>> -> memref<1x!tpu.dma_semaphore, #tpu.memory_space<semaphore_mem>>
    %12 = tpu.memref_squeeze %11 : memref<1x!tpu.dma_semaphore, #tpu.memory_space<semaphore_mem>> -> memref<!tpu.dma_semaphore, #tpu.memory_space<semaphore_mem>>
    tpu.wait_dma2 semaphore(%12 : memref<!tpu.dma_semaphore, #tpu.memory_space<semaphore_mem>>) src(%arg1 : memref<128x512xbf16, #tpu.memory_space<any>>) dst(%arg12 : memref<128x512xbf16, #tpu.memory_space<vmem>>)
    %13 = arith.truncf %10 : vector<16x128xf32> to vector<16x128xbf16>
    %c0_2 = arith.constant 0 : index
    %c0_3 = arith.constant 0 : index
    %14 = vector.load %arg12[%c0_2, %c0_3] : memref<128x512xbf16, #tpu.memory_space<vmem>>, vector<128x512xbf16>
    %cst = arith.constant dense<0.000000e+00> : vector<16x512xf32>
    %15 = tpu.matmul %13, %14, %cst {dimension_numbers = #tpu.dot_dimension_numbers<[1], [0], [0], [1], [0, 0, 1, 1], [], []>} : vector<16x128xbf16>, vector<128x512xbf16>, vector<16x512xf32> -> vector<16x512xf32>
    %c0_4 = arith.constant 0 : index
    %c0_5 = arith.constant 0 : index
    %16 = vector.load %arg2[%c0_4, %c0_5] : memref<1x512xf32, #tpu.memory_space<vmem>>, vector<1x512xf32>
    %17 = vector.broadcast %16 : vector<1x512xf32> to vector<16x512xf32>
    %18 = arith.addf %15, %17 : vector<16x512xf32>
    %cst_6 = arith.constant 0.000000e+00 : f32
    %19 = vector.broadcast %cst_6 : f32 to vector<16x512xf32>
    %20 = arith.maximumf %18, %19 : vector<16x512xf32>
    %c1_i32_7 = arith.constant 1 : i32
    %21 = tpu.memref_slice %arg17[%c1_i32_7] : memref<5x!tpu.dma_semaphore, #tpu.memory_space<semaphore_mem>> -> memref<1x!tpu.dma_semaphore, #tpu.memory_space<semaphore_mem>>
    %22 = tpu.memref_squeeze %21 : memref<1x!tpu.dma_semaphore, #tpu.memory_space<semaphore_mem>> -> memref<!tpu.dma_semaphore, #tpu.memory_space<semaphore_mem>>
    tpu.wait_dma2 semaphore(%22 : memref<!tpu.dma_semaphore, #tpu.memory_space<semaphore_mem>>) src(%arg3 : memref<512x512xbf16, #tpu.memory_space<any>>) dst(%arg13 : memref<512x512xbf16, #tpu.memory_space<vmem>>)
    %23 = arith.truncf %20 : vector<16x512xf32> to vector<16x512xbf16>
    %c0_8 = arith.constant 0 : index
    %c0_9 = arith.constant 0 : index
    %24 = vector.load %arg13[%c0_8, %c0_9] : memref<512x512xbf16, #tpu.memory_space<vmem>>, vector<512x512xbf16>
    %cst_10 = arith.constant dense<0.000000e+00> : vector<16x512xf32>
    %25 = tpu.matmul %23, %24, %cst_10 {dimension_numbers = #tpu.dot_dimension_numbers<[1], [0], [0], [1], [0, 0, 1, 1], [], []>} : vector<16x512xbf16>, vector<512x512xbf16>, vector<16x512xf32> -> vector<16x512xf32>
    %c0_11 = arith.constant 0 : index
    %c0_12 = arith.constant 0 : index
    %26 = vector.load %arg4[%c0_11, %c0_12] : memref<1x512xf32, #tpu.memory_space<vmem>>, vector<1x512xf32>
    %27 = vector.broadcast %26 : vector<1x512xf32> to vector<16x512xf32>
    %28 = arith.addf %25, %27 : vector<16x512xf32>
    %cst_13 = arith.constant 0.000000e+00 : f32
    %29 = vector.broadcast %cst_13 : f32 to vector<16x512xf32>
    %30 = arith.maximumf %28, %29 : vector<16x512xf32>
    %c2_i32_14 = arith.constant 2 : i32
    %31 = tpu.memref_slice %arg17[%c2_i32_14] : memref<5x!tpu.dma_semaphore, #tpu.memory_space<semaphore_mem>> -> memref<1x!tpu.dma_semaphore, #tpu.memory_space<semaphore_mem>>
    %32 = tpu.memref_squeeze %31 : memref<1x!tpu.dma_semaphore, #tpu.memory_space<semaphore_mem>> -> memref<!tpu.dma_semaphore, #tpu.memory_space<semaphore_mem>>
    tpu.wait_dma2 semaphore(%32 : memref<!tpu.dma_semaphore, #tpu.memory_space<semaphore_mem>>) src(%arg5 : memref<512x640xbf16, #tpu.memory_space<any>>) dst(%arg14 : memref<512x640xbf16, #tpu.memory_space<vmem>>)
    %33 = arith.truncf %30 : vector<16x512xf32> to vector<16x512xbf16>
    %c0_15 = arith.constant 0 : index
    %c0_16 = arith.constant 0 : index
    %34 = vector.load %arg14[%c0_15, %c0_16] : memref<512x640xbf16, #tpu.memory_space<vmem>>, vector<512x640xbf16>
    %cst_17 = arith.constant dense<0.000000e+00> : vector<16x640xf32>
    %35 = tpu.matmul %33, %34, %cst_17 {dimension_numbers = #tpu.dot_dimension_numbers<[1], [0], [0], [1], [0, 0, 1, 1], [], []>} : vector<16x512xbf16>, vector<512x640xbf16>, vector<16x640xf32> -> vector<16x640xf32>
    %c0_18 = arith.constant 0 : index
    %c0_19 = arith.constant 0 : index
    %36 = vector.load %arg6[%c0_18, %c0_19] : memref<1x640xf32, #tpu.memory_space<vmem>>, vector<1x640xf32>
    %37 = vector.broadcast %36 : vector<1x640xf32> to vector<16x640xf32>
    %38 = arith.addf %35, %37 : vector<16x640xf32>
    %cst_20 = arith.constant 0.000000e+00 : f32
    %39 = vector.broadcast %cst_20 : f32 to vector<16x640xf32>
    %40 = arith.maximumf %38, %39 : vector<16x640xf32>
    %c3_i32_21 = arith.constant 3 : i32
    %41 = tpu.memref_slice %arg17[%c3_i32_21] : memref<5x!tpu.dma_semaphore, #tpu.memory_space<semaphore_mem>> -> memref<1x!tpu.dma_semaphore, #tpu.memory_space<semaphore_mem>>
    %42 = tpu.memref_squeeze %41 : memref<1x!tpu.dma_semaphore, #tpu.memory_space<semaphore_mem>> -> memref<!tpu.dma_semaphore, #tpu.memory_space<semaphore_mem>>
    tpu.wait_dma2 semaphore(%42 : memref<!tpu.dma_semaphore, #tpu.memory_space<semaphore_mem>>) src(%arg7 : memref<640x896xbf16, #tpu.memory_space<any>>) dst(%arg15 : memref<640x896xbf16, #tpu.memory_space<vmem>>)
    %43 = arith.truncf %40 : vector<16x640xf32> to vector<16x640xbf16>
    %c0_22 = arith.constant 0 : index
    %c0_23 = arith.constant 0 : index
    %44 = vector.load %arg15[%c0_22, %c0_23] : memref<640x896xbf16, #tpu.memory_space<vmem>>, vector<640x896xbf16>
    %cst_24 = arith.constant dense<0.000000e+00> : vector<16x896xf32>
    %45 = tpu.matmul %43, %44, %cst_24 {dimension_numbers = #tpu.dot_dimension_numbers<[1], [0], [0], [1], [0, 0, 1, 1], [], []>} : vector<16x640xbf16>, vector<640x896xbf16>, vector<16x896xf32> -> vector<16x896xf32>
    %c0_25 = arith.constant 0 : index
    %c0_26 = arith.constant 0 : index
    %46 = vector.load %arg8[%c0_25, %c0_26] : memref<1x896xf32, #tpu.memory_space<vmem>>, vector<1x896xf32>
    %47 = vector.broadcast %46 : vector<1x896xf32> to vector<16x896xf32>
    %48 = arith.addf %45, %47 : vector<16x896xf32>
    %cst_27 = arith.constant 0.000000e+00 : f32
    %49 = vector.broadcast %cst_27 : f32 to vector<16x896xf32>
    %50 = arith.maximumf %48, %49 : vector<16x896xf32>
    %c4_i32_28 = arith.constant 4 : i32
    %51 = tpu.memref_slice %arg17[%c4_i32_28] : memref<5x!tpu.dma_semaphore, #tpu.memory_space<semaphore_mem>> -> memref<1x!tpu.dma_semaphore, #tpu.memory_space<semaphore_mem>>
    %52 = tpu.memref_squeeze %51 : memref<1x!tpu.dma_semaphore, #tpu.memory_space<semaphore_mem>> -> memref<!tpu.dma_semaphore, #tpu.memory_space<semaphore_mem>>
    tpu.wait_dma2 semaphore(%52 : memref<!tpu.dma_semaphore, #tpu.memory_space<semaphore_mem>>) src(%arg9 : memref<896x128xbf16, #tpu.memory_space<any>>) dst(%arg16 : memref<896x128xbf16, #tpu.memory_space<vmem>>)
    %53 = arith.truncf %50 : vector<16x896xf32> to vector<16x896xbf16>
    %c0_29 = arith.constant 0 : index
    %c0_30 = arith.constant 0 : index
    %54 = vector.load %arg16[%c0_29, %c0_30] : memref<896x128xbf16, #tpu.memory_space<vmem>>, vector<896x128xbf16>
    %cst_31 = arith.constant dense<0.000000e+00> : vector<16x128xf32>
    %55 = tpu.matmul %53, %54, %cst_31 {dimension_numbers = #tpu.dot_dimension_numbers<[1], [0], [0], [1], [0, 0, 1, 1], [], []>} : vector<16x896xbf16>, vector<896x128xbf16>, vector<16x128xf32> -> vector<16x128xf32>
    %c0_32 = arith.constant 0 : index
    %c0_33 = arith.constant 0 : index
    %56 = vector.load %arg10[%c0_32, %c0_33] : memref<1x128xf32, #tpu.memory_space<vmem>>, vector<1x128xf32>
    %57 = vector.broadcast %56 : vector<1x128xf32> to vector<16x128xf32>
    %58 = arith.addf %55, %57 : vector<16x128xf32>
    %c0_34 = arith.constant 0 : index
    %c0_35 = arith.constant 0 : index
    %59 = vector.load %arg11[%c0_34, %c0_35] : memref<16x128xf32, #tpu.memory_space<vmem>>, vector<16x128xf32>
    tpu.vector_store %arg11[%c0_34, %c0_35], %58 {strides = array<i32>} : memref<16x128xf32, #tpu.memory_space<vmem>>, vector<16x128xf32>,
    return
  }
}

</mosaic_0001>

<llo_original>
// kernel: mlp_forward.1
$region0: #{mlp_forward.1}
  #allocation0 [shape = 'u32[]', space=smem, size = 0x4, offset = 0x4, fixed_abs, tag = 'smem constant byte address 0x4 - core index']
  #allocation1 [shape = 'u32[72,128]{1,0:T(1,128)}', space=vmem, size = 0x9000, scoped, tag = 'internal scratch']
  #allocation2 [shape = 'bf16[128,512]{1,0:T(8,128)(2,1)}', space=vmem, size = 0x20000, scoped, tag = 'scratch operand']
  #allocation3 [shape = 'bf16[512,512]{1,0:T(8,128)(2,1)}', space=vmem, size = 0x80000, scoped, tag = 'scratch operand']
  #allocation4 [shape = 'bf16[512,640]{1,0:T(8,128)(2,1)}', space=vmem, size = 0xa0000, scoped, tag = 'scratch operand']
  #allocation5 [shape = 'bf16[640,896]{1,0:T(8,128)(2,1)}', space=vmem, size = 0x118000, scoped, tag = 'scratch operand']
  #allocation6 [shape = 'bf16[896,128]{1,0:T(8,128)(2,1)}', space=vmem, size = 0x38000, scoped, tag = 'scratch operand']
  #allocation7 [shape = 's32[5]{0}', space=sflag, size = 0x14, scoped, tag = 'scratch operand']
  #allocation16 [shape = 's32[]', space=sflag, size = 0x4, offset = 0, fixed_abs, tag = 'sflag constant byte address 0x0 - dummy sync flag']
  #allocation17 [shape = 's32[]', space=sflag, size = 0x4, offset = 0, fixed_abs, tag = 'sflag constant byte address 0x0 - dummy sync flag']
  #allocation18 [shape = 'u32[]', space=smem, size = 0x4, offset = 0x44, fixed_abs, tag = 'smem constant byte address 0x44 - assertion arg 0']
  #allocation19 [shape = 'u32[]', space=smem, size = 0x4, offset = 0x48, fixed_abs, tag = 'smem constant byte address 0x48 - assertion arg 1']
  #allocation20 [shape = 's32[]', space=sflag, size = 0x4, offset = 0, fixed_abs, tag = 'sflag constant byte address 0x0 - dummy sync flag']
  #allocation21 [shape = 's32[]', space=sflag, size = 0x4, offset = 0, fixed_abs, tag = 'sflag constant byte address 0x0 - dummy sync flag']
  #allocation22 [shape = 's32[]', space=sflag, size = 0x4, offset = 0, fixed_abs, tag = 'sflag constant byte address 0x0 - dummy sync flag']
  #allocation23 [shape = 's32[]', space=sflag, size = 0x4, offset = 0, fixed_abs, tag = 'sflag constant byte address 0x0 - dummy sync flag']
  #allocation24 [shape = 's32[]', space=sflag, size = 0x4, offset = 0, fixed_abs, tag = 'sflag constant byte address 0x0 - dummy sync flag']
  #allocation25 [shape = 's32[]', space=sflag, size = 0x4, offset = 0, fixed_abs, tag = 'sflag constant byte address 0x0 - dummy sync flag']
  #allocation26 [shape = 's32[]', space=sflag, size = 0x4, offset = 0, fixed_abs, tag = 'sflag constant byte address 0x0 - dummy sync flag']
  #allocation27 [shape = 's32[]', space=sflag, size = 0x4, offset = 0, fixed_abs, tag = 'sflag constant byte address 0x0 - dummy sync flag']
  %s0 = inlined_call_operand.vmem [shape: f32[16,128], index: 0, kind: input, shape index: {}]
  %s1 = inlined_call_operand.hbm [shape: bf16[128,512], index: 1, kind: input, shape index: {}]
  %s2 = inlined_call_operand.hbm [shape: f32[1,512], index: 2, kind: input, shape index: {}]
  %s3 = inlined_call_operand.hbm [shape: bf16[512,512], index: 3, kind: input, shape index: {}]
  %s4 = inlined_call_operand.hbm [shape: f32[1,512], index: 4, kind: input, shape index: {}]
  %s5 = inlined_call_operand.hbm [shape: bf16[512,640], index: 5, kind: input, shape index: {}]
  %s6 = inlined_call_operand.hbm [shape: f32[1,640], index: 6, kind: input, shape index: {}]
  %s7 = inlined_call_operand.hbm [shape: bf16[640,896], index: 7, kind: input, shape index: {}]
  %s8 = inlined_call_operand.hbm [shape: f32[1,896], index: 8, kind: input, shape index: {}]
  %s9 = inlined_call_operand.hbm [shape: bf16[896,128], index: 9, kind: input, shape index: {}]
  %s10 = inlined_call_operand.hbm [shape: f32[1,128], index: 10, kind: input, shape index: {}]
  %s11 = inlined_call_operand.vmem [shape: f32[16,128], index: 11, kind: output, shape index: {}]
  %s12 = sld [smem:[#allocation0]]
  $region74: #{mlp_forward.1} parent=0
    _
  %s14 = ssub.s32 1, %s12
  %s15 = scalar_select 0, %s14, %s12
  $region1: #{mlp_forward.1} parent=0
    #allocation8 [shape = 'u8[2048]{0}', space=vmem, size = 0x800, scoped, tag = 'input window, operand 2, single buffered']
    #allocation9 [shape = 's32[1]{0}', space=sflag, size = 0x4, scoped, tag = 'scoped memory for mlp_forward.1']
    #allocation10 [shape = 'u8[2048]{0}', space=vmem, size = 0x800, scoped, tag = 'input window, operand 4, single buffered']
    #allocation11 [shape = 's32[1]{0}', space=sflag, size = 0x4, scoped, tag = 'scoped memory for mlp_forward.1']
    #allocation12 [shape = 'u8[2560]{0}', space=vmem, size = 0xc00, scoped, tag = 'input window, operand 6, single buffered']
    #allocation13 [shape = 'u8[3584]{0}', space=vmem, size = 0x1000, scoped, tag = 'input window, operand 8, single buffered']
    #allocation14 [shape = 's32[1]{0}', space=sflag, size = 0x4, scoped, tag = 'scoped memory for mlp_forward.1']
    #allocation15 [shape = 'u8[512]{0}', space=vmem, size = 0x400, scoped, tag = 'input window, operand 10, single buffered']
    %16 = vsyncpa [#allocation9], 0
    %17 = vsyncpa [#allocation11], 0
    %18 = vsyncpa [#allocation14], 0
    // Predicated region
    $region2: #{mlp_forward.1} parent=1 // pred_check
      _
    $region3: #{mlp_forward.1} parent=1 // pred_check_branch
      %20 = sbr.rel (0) target = $region5
    $region4: #{mlp_forward.1} parent=1 // pred_region
      _
    $region5: #{mlp_forward.1} parent=1 // pred_fallthru
      _
    // Predicated region
    $region6: #{mlp_forward.1} parent=1 // pred_check
      _
    $region7: #{mlp_forward.1} parent=1 // pred_check_branch
      %22 = sbr.rel (0) target = $region9
    $region8: #{mlp_forward.1} parent=1 // pred_region
      %24 = vsyncadd [#allocation9], 0
      %s26 = sshll.u32 %s2, 4
      %s27 = int_to_ptr.hbm [resolvable:$true] %s26
      %s28 = sshll.u32 [#allocation8], 4
      %s29 = int_to_ptr.vmem [resolvable:$true] %s28
      %31 = dma.hbm_to_vmem [thread:$0]  %s27, 64, %s29, [#allocation9]
    $region9: #{mlp_forward.1} parent=1 // pred_fallthru
      _
    // Predicated region
    $region10: #{mlp_forward.1} parent=1 // pred_check
      _
    $region11: #{mlp_forward.1} parent=1 // pred_check_branch
      %33 = sbr.rel (0) target = $region13
    $region12: #{mlp_forward.1} parent=1 // pred_region
      %35 = vsyncadd [#allocation11], 0
      %s37 = sshll.u32 %s4, 4
      %s38 = int_to_ptr.hbm [resolvable:$true] %s37
      %s39 = sshll.u32 [#allocation10], 4
      %s40 = int_to_ptr.vmem [resolvable:$true] %s39
      %42 = dma.hbm_to_vmem [thread:$0]  %s38, 64, %s40, [#allocation11]
    $region13: #{mlp_forward.1} parent=1 // pred_fallthru
      _
    // Predicated region
    $region14: #{mlp_forward.1} parent=1 // pred_check
      _
    $region15: #{mlp_forward.1} parent=1 // pred_check_branch
      %44 = sbr.rel (0) target = $region17
    $region16: #{mlp_forward.1} parent=1 // pred_region
      %46 = vsyncadd [#allocation11], 0
      %s48 = sshll.u32 %s6, 4
      %s49 = int_to_ptr.hbm [resolvable:$true] %s48
      %s50 = sshll.u32 [#allocation12], 4
      %s51 = int_to_ptr.vmem [resolvable:$true] %s50
      %53 = dma.hbm_to_vmem [thread:$0]  %s49, 80, %s51, [#allocation11]
    $region17: #{mlp_forward.1} parent=1 // pred_fallthru
      _
    // Predicated region
    $region18: #{mlp_forward.1} parent=1 // pred_check
      _
    $region19: #{mlp_forward.1} parent=1 // pred_check_branch
      %55 = sbr.rel (0) target = $region21
    $region20: #{mlp_forward.1} parent=1 // pred_region
      %57 = vsyncadd [#allocation14], 0
      %s59 = sshll.u32 %s8, 4
      %s60 = int_to_ptr.hbm [resolvable:$true] %s59
      %s61 = sshll.u32 [#allocation13], 4
      %s62 = int_to_ptr.vmem [resolvable:$true] %s61
      %64 = dma.hbm_to_vmem [thread:$0]  %s60, 112, %s62, [#allocation14]
    $region21: #{mlp_forward.1} parent=1 // pred_fallthru
      _
    // Predicated region
    $region22: #{mlp_forward.1} parent=1 // pred_check
      _
    $region23: #{mlp_forward.1} parent=1 // pred_check_branch
      %66 = sbr.rel (0) target = $region25
    $region24: #{mlp_forward.1} parent=1 // pred_region
      %68 = vsyncadd [#allocation14], 0
      %s70 = sshll.u32 %s10, 4
      %s71 = int_to_ptr.hbm [resolvable:$true] %s70
      %s72 = sshll.u32 [#allocation15], 4
      %s73 = int_to_ptr.vmem [resolvable:$true] %s72
      %75 = dma.hbm_to_vmem [thread:$0]  %s71, 16, %s73, [#allocation14]
    $region25: #{mlp_forward.1} parent=1 // pred_fallthru
      _
    // Predicated region
    $region26: #{mlp_forward.1} parent=1 // pred_check
      _
    $region27: #{mlp_forward.1} parent=1 // pred_check_branch
      %77 = sbr.rel (0) target = $region29
    $region28: #{mlp_forward.1} parent=1 // pred_region
      %79 = dma.done [#allocation9], 64
    $region29: #{mlp_forward.1} parent=1 // pred_fallthru
      _
    // Predicated region
    $region30: #{mlp_forward.1} parent=1 // pred_check
      _
    $region31: #{mlp_forward.1} parent=1 // pred_check_branch
      %81 = sbr.rel (0) target = $region33
    $region32: #{mlp_forward.1} parent=1 // pred_region
      %83 = dma.done [#allocation11], 64
    $region33: #{mlp_forward.1} parent=1 // pred_fallthru
      _
    // Predicated region
    $region34: #{mlp_forward.1} parent=1 // pred_check
      _
    $region35: #{mlp_forward.1} parent=1 // pred_check_branch
      %85 = sbr.rel (0) target = $region37
    $region36: #{mlp_forward.1} parent=1 // pred_region
      %87 = dma.done [#allocation11], 80
    $region37: #{mlp_forward.1} parent=1 // pred_fallthru
      _
    // Predicated region
    $region38: #{mlp_forward.1} parent=1 // pred_check
      _
    $region39: #{mlp_forward.1} parent=1 // pred_check_branch
      %89 = sbr.rel (0) target = $region41
    $region40: #{mlp_forward.1} parent=1 // pred_region
      %91 = dma.done [#allocation14], 112
    $region41: #{mlp_forward.1} parent=1 // pred_fallthru
      _
    // Predicated region
    $region42: #{mlp_forward.1} parent=1 // pred_check
      _
    $region43: #{mlp_forward.1} parent=1 // pred_check_branch
      %93 = sbr.rel (0) target = $region45
    $region44: #{mlp_forward.1} parent=1 // pred_region
      %95 = dma.done [#allocation14], 16
    $region45: #{mlp_forward.1} parent=1 // pred_fallthru
      _
    // Predicated region
    $region46: #{mlp_forward.1} parent=1 // pred_check
      _
    $region47: #{mlp_forward.1} parent=1 // pred_check_branch
      %97 = sbr.rel target = $region49
    $region48: #{mlp_forward.1} parent=1 // pred_region
      %98 = sst [smem:[#allocation18]] [#allocation17]
      %99 = sst [smem:[#allocation19]] [#allocation16]
    $region49: #{mlp_forward.1} parent=1 // pred_fallthru
      _
    %101 = shalt.err (0)
    %s103 = sshll.u32 %s1, 4
    %s104 = int_to_ptr.hbm [resolvable:$true] %s103
    %s105 = sshll.u32 [#allocation2], 4
    %s106 = int_to_ptr.vmem [resolvable:$true] %s105
    %108 = dma.hbm_to_vmem [thread:$0]  %s104, 4096, %s106, [#allocation7]
    %s109 = scalar_lea.sflag [#allocation7], 1
    // Predicated region
    $region50: #{mlp_forward.1} parent=1 // pred_check
      _
    $region51: #{mlp_forward.1} parent=1 // pred_check_branch
      %111 = sbr.rel target = $region53
    $region52: #{mlp_forward.1} parent=1 // pred_region
      %112 = sst [smem:[#allocation18]] [#allocation21]
      %113 = sst [smem:[#allocation19]] [#allocation20]
    $region53: #{mlp_forward.1} parent=1 // pred_fallthru
      _
    %115 = shalt.err (0)
    %s117 = sshll.u32 %s3, 4
    %s118 = int_to_ptr.hbm [resolvable:$true] %s117
    %s119 = sshll.u32 [#allocation3], 4
    %s120 = int_to_ptr.vmem [resolvable:$true] %s119
    %122 = dma.hbm_to_vmem [thread:$0]  %s118, 16384, %s120, %s109
    %s123 = scalar_lea.sflag [#allocation7], 2
    // Predicated region
    $region54: #{mlp_forward.1} parent=1 // pred_check
      _
    $region55: #{mlp_forward.1} parent=1 // pred_check_branch
      %125 = sbr.rel target = $region57
    $region56: #{mlp_forward.1} parent=1 // pred_region
      %126 = sst [smem:[#allocation18]] [#allocation23]
      %127 = sst [smem:[#allocation19]] [#allocation22]
    $region57: #{mlp_forward.1} parent=1 // pred_fallthru
      _
    %129 = shalt.err (0)
    %s131 = sshll.u32 %s5, 4
    %s132 = int_to_ptr.hbm [resolvable:$true] %s131
    %s133 = sshll.u32 [#allocation4], 4
    %s134 = int_to_ptr.vmem [resolvable:$true] %s133
    %136 = dma.hbm_to_vmem [thread:$0]  %s132, 20480, %s134, %s123
    %s137 = scalar_lea.sflag [#allocation7], 3
    // Predicated region
    $region58: #{mlp_forward.1} parent=1 // pred_check
      _
    $region59: #{mlp_forward.1} parent=1 // pred_check_branch
      %139 = sbr.rel target = $region61
    $region60: #{mlp_forward.1} parent=1 // pred_region
      %140 = sst [smem:[#allocation18]] [#allocation25]
      %141 = sst [smem:[#allocation19]] [#allocation24]
    $region61: #{mlp_forward.1} parent=1 // pred_fallthru
      _
    %143 = shalt.err (0)
    %s145 = sshll.u32 %s7, 4
    %s146 = int_to_ptr.hbm [resolvable:$true] %s145
    %s147 = sshll.u32 [#allocation5], 4
    %s148 = int_to_ptr.vmem [resolvable:$true] %s147
    %150 = dma.hbm_to_vmem [thread:$0]  %s146, 35840, %s148, %s137
    %s151 = scalar_lea.sflag [#allocation7], 4
    // Predicated region
    $region62: #{mlp_forward.1} parent=1 // pred_check
      _
    $region63: #{mlp_forward.1} parent=1 // pred_check_branch
      %153 = sbr.rel target = $region65
    $region64: #{mlp_forward.1} parent=1 // pred_region
      %154 = sst [smem:[#allocation18]] [#allocation27]
      %155 = sst [smem:[#allocation19]] [#allocation26]
    $region65: #{mlp_forward.1} parent=1 // pred_fallthru
      _
    %157 = shalt.err (0)
    %s159 = sshll.u32 %s9, 4
    %s160 = int_to_ptr.hbm [resolvable:$true] %s159
    %s161 = sshll.u32 [#allocation6], 4
    %s162 = int_to_ptr.vmem [resolvable:$true] %s161
    %164 = dma.hbm_to_vmem [thread:$0]  %s160, 7168, %s162, %s151
    %v165 = vld [vmem:[%s0] sm:$0xff]
    %v166 = vld [vmem:[%s0 + $0x8] sm:$0xff]
    %s167 = smul.u32 4, 16
    %s168 = smul.u32 %s167, 4
    %s169 = sshll.u32 %s168, 4
    %170 = dma.done [#allocation7], %s169
    %v171 = vpack.c.bf16 %v166, %v165
    %v172 = vld [vmem:[#allocation2] sm:$0xff]
    %v173 = vld [vmem:[#allocation2 + $0x8] sm:$0xff]
    %v174 = vld [vmem:[#allocation2 + $0x10] sm:$0xff]
    %v175 = vld [vmem:[#allocation2 + $0x18] sm:$0xff]
    %v176 = vld [vmem:[#allocation2 + $0x20] sm:$0xff]
    %v177 = vld [vmem:[#allocation2 + $0x28] sm:$0xff]
    %v178 = vld [vmem:[#allocation2 + $0x30] sm:$0xff]
    %v179 = vld [vmem:[#allocation2 + $0x38] sm:$0xff]
    %v180 = vld [vmem:[#allocation2 + $0x40] sm:$0xff]
    %v181 = vld [vmem:[#allocation2 + $0x48] sm:$0xff]
    %v182 = vld [vmem:[#allocation2 + $0x50] sm:$0xff]
    %v183 = vld [vmem:[#allocation2 + $0x58] sm:$0xff]
    %v184 = vld [vmem:[#allocation2 + $0x60] sm:$0xff]
    %v185 = vld [vmem:[#allocation2 + $0x68] sm:$0xff]
    %v186 = vld [vmem:[#allocation2 + $0x70] sm:$0xff]
    %v187 = vld [vmem:[#allocation2 + $0x78] sm:$0xff]
    %v188 = vld [vmem:[#allocation2 + $0x80] sm:$0xff]
    %v189 = vld [vmem:[#allocation2 + $0x88] sm:$0xff]
    %v190 = vld [vmem:[#allocation2 + $0x90] sm:$0xff]
    %v191 = vld [vmem:[#allocation2 + $0x98] sm:$0xff]
    %v192 = vld [vmem:[#allocation2 + $0xa0] sm:$0xff]
    %v193 = vld [vmem:[#allocation2 + $0xa8] sm:$0xff]
    %v194 = vld [vmem:[#allocation2 + $0xb0] sm:$0xff]
    %v195 = vld [vmem:[#allocation2 + $0xb8] sm:$0xff]
    %v196 = vld [vmem:[#allocation2 + $0xc0] sm:$0xff]
    %v197 = vld [vmem:[#allocation2 + $0xc8] sm:$0xff]
    %v198 = vld [vmem:[#allocation2 + $0xd0] sm:$0xff]
    %v199 = vld [vmem:[#allocation2 + $0xd8] sm:$0xff]
    %v200 = vld [vmem:[#allocation2 + $0xe0] sm:$0xff]
    %v201 = vld [vmem:[#allocation2 + $0xe8] sm:$0xff]
    %v202 = vld [vmem:[#allocation2 + $0xf0] sm:$0xff]
    %v203 = vld [vmem:[#allocation2 + $0xf8] sm:$0xff]
    %v204 = vld [vmem:[#allocation8] sm:$0xf]
    %v206 = vperm.slane %v204, 0
    %v207 = vperm.slane %v204, 1
    %v208 = vperm.slane %v204, 2
    %v209 = vperm.slane %v204, 3
    %v246 = vunpack.c.l.b16 %v172
    %v247 = vunpack.c.h.b16 %v172
    %v248 = vunpack.c.l.b16 %v173
    %v249 = vunpack.c.h.b16 %v173
    %v250 = vunpack.c.l.b16 %v174
    %v251 = vunpack.c.h.b16 %v174
    %v252 = vunpack.c.l.b16 %v175
    %v253 = vunpack.c.h.b16 %v175
    %v254 = vunpack.c.l.b16 %v176
    %v255 = vunpack.c.h.b16 %v176
    %v256 = vunpack.c.l.b16 %v177
    %v257 = vunpack.c.h.b16 %v177
    %v258 = vunpack.c.l.b16 %v178
    %v259 = vunpack.c.h.b16 %v178
    %v260 = vunpack.c.l.b16 %v179
    %v261 = vunpack.c.h.b16 %v179
    %v262 = vunpack.c.l.b16 %v180
    %v263 = vunpack.c.h.b16 %v180
    %v264 = vunpack.c.l.b16 %v181
    %v265 = vunpack.c.h.b16 %v181
    %v266 = vunpack.c.l.b16 %v182
    %v267 = vunpack.c.h.b16 %v182
    %v268 = vunpack.c.l.b16 %v183
    %v269 = vunpack.c.h.b16 %v183
    %v270 = vunpack.c.l.b16 %v184
    %v271 = vunpack.c.h.b16 %v184
    %v272 = vunpack.c.l.b16 %v185
    %v273 = vunpack.c.h.b16 %v185
    %v274 = vunpack.c.l.b16 %v186
    %v275 = vunpack.c.h.b16 %v186
    %v276 = vunpack.c.l.b16 %v187
    %v277 = vunpack.c.h.b16 %v187
    %v278 = vunpack.c.l.b16 %v188
    %v279 = vunpack.c.h.b16 %v188
    %v280 = vunpack.c.l.b16 %v189
    %v281 = vunpack.c.h.b16 %v189
    %v282 = vunpack.c.l.b16 %v190
    %v283 = vunpack.c.h.b16 %v190
    %v284 = vunpack.c.l.b16 %v191
    %v285 = vunpack.c.h.b16 %v191
    %v286 = vunpack.c.l.b16 %v192
    %v287 = vunpack.c.h.b16 %v192
    %v288 = vunpack.c.l.b16 %v193
    %v289 = vunpack.c.h.b16 %v193
    %v290 = vunpack.c.l.b16 %v194
    %v291 = vunpack.c.h.b16 %v194
    %v292 = vunpack.c.l.b16 %v195
    %v293 = vunpack.c.h.b16 %v195
    %v294 = vunpack.c.l.b16 %v196
    %v295 = vunpack.c.h.b16 %v196
    %v296 = vunpack.c.l.b16 %v197
    %v297 = vunpack.c.h.b16 %v197
    %v298 = vunpack.c.l.b16 %v198
    %v299 = vunpack.c.h.b16 %v198
    %v300 = vunpack.c.l.b16 %v199
    %v301 = vunpack.c.h.b16 %v199
    %v302 = vunpack.c.l.b16 %v200
    %v303 = vunpack.c.h.b16 %v200
    %v304 = vunpack.c.l.b16 %v201
    %v305 = vunpack.c.h.b16 %v201
    %v306 = vunpack.c.l.b16 %v202
    %v307 = vunpack.c.h.b16 %v202
    %v308 = vunpack.c.l.b16 %v203
    %v309 = vunpack.c.h.b16 %v203
    %v310 = vpack.c.b16 %v250, %v246
    %v311 = vpack.c.b16 %v251, %v247
    %v312 = vpack.c.b16 %v252, %v248
    %v313 = vpack.c.b16 %v253, %v249
    %v314 = vpack.c.b16 %v258, %v254
    %v315 = vpack.c.b16 %v259, %v255
    %v316 = vpack.c.b16 %v260, %v256
    %v317 = vpack.c.b16 %v261, %v257
    %v318 = vpack.c.b16 %v266, %v262
    %v319 = vpack.c.b16 %v267, %v263
    %v320 = vpack.c.b16 %v268, %v264
    %v321 = vpack.c.b16 %v269, %v265
    %v322 = vpack.c.b16 %v274, %v270
    %v323 = vpack.c.b16 %v275, %v271
    %v324 = vpack.c.b16 %v276, %v272
    %v325 = vpack.c.b16 %v277, %v273
    %v326 = vpack.c.b16 %v282, %v278
    %v327 = vpack.c.b16 %v283, %v279
    %v328 = vpack.c.b16 %v284, %v280
    %v329 = vpack.c.b16 %v285, %v281
    %v330 = vpack.c.b16 %v290, %v286
    %v331 = vpack.c.b16 %v291, %v287
    %v332 = vpack.c.b16 %v292, %v288
    %v333 = vpack.c.b16 %v293, %v289
    %v334 = vpack.c.b16 %v298, %v294
    %v335 = vpack.c.b16 %v299, %v295
    %v336 = vpack.c.b16 %v300, %v296
    %v337 = vpack.c.b16 %v301, %v297
    %v338 = vpack.c.b16 %v306, %v302
    %v339 = vpack.c.b16 %v307, %v303
    %v340 = vpack.c.b16 %v308, %v304
    %v341 = vpack.c.b16 %v309, %v305
    %374 = vmatpush.bf16.msra.mxu0 %v338
    %375 = vmatpush.bf16.msra.mxu0 %v334
    %376 = vmatpush.bf16.msra.mxu0 %v330
    %377 = vmatpush.bf16.msra.mxu0 %v326
    %378 = vmatpush.bf16.msra.mxu0 %v322
    %379 = vmatpush.bf16.msra.mxu0 %v318
    %380 = vmatpush.bf16.msra.mxu0 %v314
    %381 = vmatpush.bf16.msra.mxu0 %v310
    %382 = vmatmul.bf16.gmra.mxu0 %v171
    %v383 = vpop.f32.mrf.mxu0
    %v384 = vadd.f32 %v206, %v383
    %v385 = vpop.f32.mrf.mxu0
    %v386 = vadd.f32 %v206, %v385
    %387 = vdwg.mxu0
    %388 = vmatpush.bf16.msra.mxu0 %v339
    %389 = vmatpush.bf16.msra.mxu0 %v335
    %390 = vmatpush.bf16.msra.mxu0 %v331
    %391 = vmatpush.bf16.msra.mxu0 %v327
    %392 = vmatpush.bf16.msra.mxu0 %v323
    %393 = vmatpush.bf16.msra.mxu0 %v319
    %394 = vmatpush.bf16.msra.mxu0 %v315
    %395 = vmatpush.bf16.msra.mxu0 %v311
    %396 = vmatmul.bf16.gmra.mxu0 %v171
    %v397 = vpop.f32.mrf.mxu0
    %v398 = vadd.f32 %v207, %v397
    %v399 = vpop.f32.mrf.mxu0
    %v400 = vadd.f32 %v207, %v399
    %401 = vdwg.mxu0
    %402 = vmatpush.bf16.msra.mxu0 %v340
    %403 = vmatpush.bf16.msra.mxu0 %v336
    %404 = vmatpush.bf16.msra.mxu0 %v332
    %405 = vmatpush.bf16.msra.mxu0 %v328
    %406 = vmatpush.bf16.msra.mxu0 %v324
    %407 = vmatpush.bf16.msra.mxu0 %v320
    %408 = vmatpush.bf16.msra.mxu0 %v316
    %409 = vmatpush.bf16.msra.mxu0 %v312
    %410 = vmatmul.bf16.gmra.mxu0 %v171
    %v411 = vpop.f32.mrf.mxu0
    %v412 = vadd.f32 %v208, %v411
    %v413 = vpop.f32.mrf.mxu0
    %v414 = vadd.f32 %v208, %v413
    %415 = vdwg.mxu0
    %416 = vmatpush.bf16.msra.mxu0 %v341
    %417 = vmatpush.bf16.msra.mxu0 %v337
    %418 = vmatpush.bf16.msra.mxu0 %v333
    %419 = vmatpush.bf16.msra.mxu0 %v329
    %420 = vmatpush.bf16.msra.mxu0 %v325
    %421 = vmatpush.bf16.msra.mxu0 %v321
    %422 = vmatpush.bf16.msra.mxu0 %v317
    %423 = vmatpush.bf16.msra.mxu0 %v313
    %424 = vmatmul.bf16.gmra.mxu0 %v171
    %v425 = vpop.f32.mrf.mxu0
    %v426 = vadd.f32 %v209, %v425
    %v427 = vpop.f32.mrf.mxu0
    %v428 = vadd.f32 %v209, %v427
    %429 = vdwg.mxu0
    %v430 = vmax.f32 %v384, 0.0
    %v431 = vmax.f32 %v398, 0.0
    %v432 = vmax.f32 %v412, 0.0
    %v433 = vmax.f32 %v426, 0.0
    %v434 = vmax.f32 %v386, 0.0
    %v435 = vmax.f32 %v400, 0.0
    %v436 = vmax.f32 %v414, 0.0
    %v437 = vmax.f32 %v428, 0.0
    %s438 = smul.u32 4, 64
    %s439 = smul.u32 %s438, 4
    %s440 = sshll.u32 %s439, 4
    %441 = dma.done %s109, %s440
    %v442 = vpack.c.bf16 %v434, %v430
    %v443 = vpack.c.bf16 %v435, %v431
    %v444 = vpack.c.bf16 %v436, %v432
    %v445 = vpack.c.bf16 %v437, %v433
    %v446 = vld [vmem:[#allocation3] sm:$0xff]
    %v447 = vld [vmem:[#allocation3 + $0x8] sm:$0xff]
    %v448 = vld [vmem:[#allocation3 + $0x10] sm:$0xff]
    %v449 = vld [vmem:[#allocation3 + $0x18] sm:$0xff]
    %v450 = vld [vmem:[#allocation3 + $0x20] sm:$0xff]
    %v451 = vld [vmem:[#allocation3 + $0x28] sm:$0xff]
    %v452 = vld [vmem:[#allocation3 + $0x30] sm:$0xff]
    %v453 = vld [vmem:[#allocation3 + $0x38] sm:$0xff]
    %v454 = vld [vmem:[#allocation3 + $0x40] sm:$0xff]
    %v455 = vld [vmem:[#allocation3 + $0x48] sm:$0xff]
    %v456 = vld [vmem:[#allocation3 + $0x50] sm:$0xff]
    %v457 = vld [vmem:[#allocation3 + $0x58] sm:$0xff]
    %v458 = vld [vmem:[#allocation3 + $0x60] sm:$0xff]
    %v459 = vld [vmem:[#allocation3 + $0x68] sm:$0xff]
    %v460 = vld [vmem:[#allocation3 + $0x70] sm:$0xff]
    %v461 = vld [vmem:[#allocation3 + $0x78] sm:$0xff]
    %v462 = vld [vmem:[#allocation3 + $0x80] sm:$0xff]
    %v463 = vld [vmem:[#allocation3 + $0x88] sm:$0xff]
    %v464 = vld [vmem:[#allocation3 + $0x90] sm:$0xff]
    %v465 = vld [vmem:[#allocation3 + $0x98] sm:$0xff]
    %v466 = vld [vmem:[#allocation3 + $0xa0] sm:$0xff]
    %v467 = vld [vmem:[#allocation3 + $0xa8] sm:$0xff]
    %v468 = vld [vmem:[#allocation3 + $0xb0] sm:$0xff]
    %v469 = vld [vmem:[#allocation3 + $0xb8] sm:$0xff]
    %v470 = vld [vmem:[#allocation3 + $0xc0] sm:$0xff]
    %v471 = vld [vmem:[#allocation3 + $0xc8] sm:$0xff]
    %v472 = vld [vmem:[#allocation3 + $0xd0] sm:$0xff]
    %v473 = vld [vmem:[#allocation3 + $0xd8] sm:$0xff]
    %v474 = vld [vmem:[#allocation3 + $0xe0] sm:$0xff]
    %v475 = vld [vmem:[#allocation3 + $0xe8] sm:$0xff]
    %v476 = vld [vmem:[#allocation3 + $0xf0] sm:$0xff]
    %v477 = vld [vmem:[#allocation3 + $0xf8] sm:$0xff]
    %v478 = vld [vmem:[#allocation3 + $0x100] sm:$0xff]
    %v479 = vld [vmem:[#allocation3 + $0x108] sm:$0xff]
    %v480 = vld [vmem:[#allocation3 + $0x110] sm:$0xff]
    %v481 = vld [vmem:[#allocation3 + $0x118] sm:$0xff]
    %v482 = vld [vmem:[#allocation3 + $0x120] sm:$0xff]
    %v483 = vld [vmem:[#allocation3 + $0x128] sm:$0xff]
    %v484 = vld [vmem:[#allocation3 + $0x130] sm:$0xff]
    %v485 = vld [vmem:[#allocation3 + $0x138] sm:$0xff]
    %v486 = vld [vmem:[#allocation3 + $0x140] sm:$0xff]
    %v487 = vld [vmem:[#allocation3 + $0x148] sm:$0xff]
    %v488 = vld [vmem:[#allocation3 + $0x150] sm:$0xff]
    %v489 = vld [vmem:[#allocation3 + $0x158] sm:$0xff]
    %v490 = vld [vmem:[#allocation3 + $0x160] sm:$0xff]
    %v491 = vld [vmem:[#allocation3 + $0x168] sm:$0xff]
    %v492 = vld [vmem:[#allocation3 + $0x170] sm:$0xff]
    %v493 = vld [vmem:[#allocation3 + $0x178] sm:$0xff]
    %v494 = vld [vmem:[#allocation3 + $0x180] sm:$0xff]
    %v495 = vld [vmem:[#allocation3 + $0x188] sm:$0xff]
    %v496 = vld [vmem:[#allocation3 + $0x190] sm:$0xff]
    %v497 = vld [vmem:[#allocation3 + $0x198] sm:$0xff]
    %v498 = vld [vmem:[#allocation3 + $0x1a0] sm:$0xff]
    %v499 = vld [vmem:[#allocation3 + $0x1a8] sm:$0xff]
    %v500 = vld [vmem:[#allocation3 + $0x1b0] sm:$0xff]
    %v501 = vld [vmem:[#allocation3 + $0x1b8] sm:$0xff]
    %v502 = vld [vmem:[#allocation3 + $0x1c0] sm:$0xff]
    %v503 = vld [vmem:[#allocation3 + $0x1c8] sm:$0xff]
    %v504 = vld [vmem:[#allocation3 + $0x1d0] sm:$0xff]
    %v505 = vld [vmem:[#allocation3 + $0x1d8] sm:$0xff]
    %v506 = vld [vmem:[#allocation3 + $0x1e0] sm:$0xff]
    %v507 = vld [vmem:[#allocation3 + $0x1e8] sm:$0xff]
    %v508 = vld [vmem:[#allocation3 + $0x1f0] sm:$0xff]
    %v509 = vld [vmem:[#allocation3 + $0x1f8] sm:$0xff]
    %v510 = vld [vmem:[#allocation3 + $0x200] sm:$0xff]
    %v511 = vld [vmem:[#allocation3 + $0x208] sm:$0xff]
    %v512 = vld [vmem:[#allocation3 + $0x210] sm:$0xff]
    %v513 = vld [vmem:[#allocation3 + $0x218] sm:$0xff]
    %v514 = vld [vmem:[#allocation3 + $0x220] sm:$0xff]
    %v515 = vld [vmem:[#allocation3 + $0x228] sm:$0xff]
    %v516 = vld [vmem:[#allocation3 + $0x230] sm:$0xff]
    %v517 = vld [vmem:[#allocation3 + $0x238] sm:$0xff]
    %v518 = vld [vmem:[#allocation3 + $0x240] sm:$0xff]
    %v519 = vld [vmem:[#allocation3 + $0x248] sm:$0xff]
    %v520 = vld [vmem:[#allocation3 + $0x250] sm:$0xff]
    %v521 = vld [vmem:[#allocation3 + $0x258] sm:$0xff]
    %v522 = vld [vmem:[#allocation3 + $0x260] sm:$0xff]
    %v523 = vld [vmem:[#allocation3 + $0x268] sm:$0xff]
    %v524 = vld [vmem:[#allocation3 + $0x270] sm:$0xff]
    %v525 = vld [vmem:[#allocation3 + $0x278] sm:$0xff]
    %v526 = vld [vmem:[#allocation3 + $0x280] sm:$0xff]
    %v527 = vld [vmem:[#allocation3 + $0x288] sm:$0xff]
    %v528 = vld [vmem:[#allocation3 + $0x290] sm:$0xff]
    %v529 = vld [vmem:[#allocation3 + $0x298] sm:$0xff]
    %v530 = vld [vmem:[#allocation3 + $0x2a0] sm:$0xff]
    %v531 = vld [vmem:[#allocation3 + $0x2a8] sm:$0xff]
    %v532 = vld [vmem:[#allocation3 + $0x2b0] sm:$0xff]
    %v533 = vld [vmem:[#allocation3 + $0x2b8] sm:$0xff]
    %v534 = vld [vmem:[#allocation3 + $0x2c0] sm:$0xff]
    %v535 = vld [vmem:[#allocation3 + $0x2c8] sm:$0xff]
    %v536 = vld [vmem:[#allocation3 + $0x2d0] sm:$0xff]
    %v537 = vld [vmem:[#allocation3 + $0x2d8] sm:$0xff]
    %v538 = vld [vmem:[#allocation3 + $0x2e0] sm:$0xff]
    %v539 = vld [vmem:[#allocation3 + $0x2e8] sm:$0xff]
    %v540 = vld [vmem:[#allocation3 + $0x2f0] sm:$0xff]
    %v541 = vld [vmem:[#allocation3 + $0x2f8] sm:$0xff]
    %v542 = vld [vmem:[#allocation3 + $0x300] sm:$0xff]
    %v543 = vld [vmem:[#allocation3 + $0x308] sm:$0xff]
    %v544 = vld [vmem:[#allocation3 + $0x310] sm:$0xff]
    %v545 = vld [vmem:[#allocation3 + $0x318] sm:$0xff]
    %v546 = vld [vmem:[#allocation3 + $0x320] sm:$0xff]
    %v547 = vld [vmem:[#allocation3 + $0x328] sm:$0xff]
    %v548 = vld [vmem:[#allocation3 + $0x330] sm:$0xff]
    %v549 = vld [vmem:[#allocation3 + $0x338] sm:$0xff]
    %v550 = vld [vmem:[#allocation3 + $0x340] sm:$0xff]
    %v551 = vld [vmem:[#allocation3 + $0x348] sm:$0xff]
    %v552 = vld [vmem:[#allocation3 + $0x350] sm:$0xff]
    %v553 = vld [vmem:[#allocation3 + $0x358] sm:$0xff]
    %v554 = vld [vmem:[#allocation3 + $0x360] sm:$0xff]
    %v555 = vld [vmem:[#allocation3 + $0x368] sm:$0xff]
    %v556 = vld [vmem:[#allocation3 + $0x370] sm:$0xff]
    %v557 = vld [vmem:[#allocation3 + $0x378] sm:$0xff]
    %v558 = vld [vmem:[#allocation3 + $0x380] sm:$0xff]
    %v559 = vld [vmem:[#allocation3 + $0x388] sm:$0xff]
    %v560 = vld [vmem:[#allocation3 + $0x390] sm:$0xff]
    %v561 = vld [vmem:[#allocation3 + $0x398] sm:$0xff]
    %v562 = vld [vmem:[#allocation3 + $0x3a0] sm:$0xff]
    %v563 = vld [vmem:[#allocation3 + $0x3a8] sm:$0xff]
    %v564 = vld [vmem:[#allocation3 + $0x3b0] sm:$0xff]
    %v565 = vld [vmem:[#allocation3 + $0x3b8] sm:$0xff]
    %v566 = vld [vmem:[#allocation3 + $0x3c0] sm:$0xff]
    %v567 = vld [vmem:[#allocation3 + $0x3c8] sm:$0xff]
    %v568 = vld [vmem:[#allocation3 + $0x3d0] sm:$0xff]
    %v569 = vld [vmem:[#allocation3 + $0x3d8] sm:$0xff]
    %v570 = vld [vmem:[#allocation3 + $0x3e0] sm:$0xff]
    %v571 = vld [vmem:[#allocation3 + $0x3e8] sm:$0xff]
    %v572 = vld [vmem:[#allocation3 + $0x3f0] sm:$0xff]
    %v573 = vld [vmem:[#allocation3 + $0x3f8] sm:$0xff]
    %v574 = vld [vmem:[#allocation10] sm:$0xf]
    %v576 = vperm.slane %v574, 0
    %v577 = vperm.slane %v574, 1
    %v578 = vperm.slane %v574, 2
    %v579 = vperm.slane %v574, 3
    %v712 = vunpack.c.l.b16 %v446
    %v713 = vunpack.c.h.b16 %v446
    %v714 = vunpack.c.l.b16 %v447
    %v715 = vunpack.c.h.b16 %v447
    %v716 = vunpack.c.l.b16 %v448
    %v717 = vunpack.c.h.b16 %v448
    %v718 = vunpack.c.l.b16 %v449
    %v719 = vunpack.c.h.b16 %v449
    %v720 = vunpack.c.l.b16 %v450
    %v721 = vunpack.c.h.b16 %v450
    %v722 = vunpack.c.l.b16 %v451
    %v723 = vunpack.c.h.b16 %v451
    %v724 = vunpack.c.l.b16 %v452
    %v725 = vunpack.c.h.b16 %v452
    %v726 = vunpack.c.l.b16 %v453
    %v727 = vunpack.c.h.b16 %v453
    %v728 = vunpack.c.l.b16 %v454
    %v729 = vunpack.c.h.b16 %v454
    %v730 = vunpack.c.l.b16 %v455
    %v731 = vunpack.c.h.b16 %v455
    %v732 = vunpack.c.l.b16 %v456
    %v733 = vunpack.c.h.b16 %v456
    %v734 = vunpack.c.l.b16 %v457
    %v735 = vunpack.c.h.b16 %v457
    %v736 = vunpack.c.l.b16 %v458
    %v737 = vunpack.c.h.b16 %v458
    %v738 = vunpack.c.l.b16 %v459
    %v739 = vunpack.c.h.b16 %v459
    %v740 = vunpack.c.l.b16 %v460
    %v741 = vunpack.c.h.b16 %v460
    %v742 = vunpack.c.l.b16 %v461
    %v743 = vunpack.c.h.b16 %v461
    %v744 = vunpack.c.l.b16 %v462
    %v745 = vunpack.c.h.b16 %v462
    %v746 = vunpack.c.l.b16 %v463
    %v747 = vunpack.c.h.b16 %v463
    %v748 = vunpack.c.l.b16 %v464
    %v749 = vunpack.c.h.b16 %v464
    %v750 = vunpack.c.l.b16 %v465
    %v751 = vunpack.c.h.b16 %v465
    %v752 = vunpack.c.l.b16 %v466
    %v753 = vunpack.c.h.b16 %v466
    %v754 = vunpack.c.l.b16 %v467
    %v755 = vunpack.c.h.b16 %v467
    %v756 = vunpack.c.l.b16 %v468
    %v757 = vunpack.c.h.b16 %v468
    %v758 = vunpack.c.l.b16 %v469
    %v759 = vunpack.c.h.b16 %v469
    %v760 = vunpack.c.l.b16 %v470
    %v761 = vunpack.c.h.b16 %v470
    %v762 = vunpack.c.l.b16 %v471
    %v763 = vunpack.c.h.b16 %v471
    %v764 = vunpack.c.l.b16 %v472
    %v765 = vunpack.c.h.b16 %v472
    %v766 = vunpack.c.l.b16 %v473
    %v767 = vunpack.c.h.b16 %v473
    %v768 = vunpack.c.l.b16 %v474
    %v769 = vunpack.c.h.b16 %v474
    %v770 = vunpack.c.l.b16 %v475
    %v771 = vunpack.c.h.b16 %v475
    %v772 = vunpack.c.l.b16 %v476
    %v773 = vunpack.c.h.b16 %v476
    %v774 = vunpack.c.l.b16 %v477
    %v775 = vunpack.c.h.b16 %v477
    %v776 = vunpack.c.l.b16 %v478
    %v777 = vunpack.c.h.b16 %v478
    %v778 = vunpack.c.l.b16 %v479
    %v779 = vunpack.c.h.b16 %v479
    %v780 = vunpack.c.l.b16 %v480
    %v781 = vunpack.c.h.b16 %v480
    %v782 = vunpack.c.l.b16 %v481
    %v783 = vunpack.c.h.b16 %v481
    %v784 = vunpack.c.l.b16 %v482
    %v785 = vunpack.c.h.b16 %v482
    %v786 = vunpack.c.l.b16 %v483
    %v787 = vunpack.c.h.b16 %v483
    %v788 = vunpack.c.l.b16 %v484
    %v789 = vunpack.c.h.b16 %v484
    %v790 = vunpack.c.l.b16 %v485
    %v791 = vunpack.c.h.b16 %v485
    %v792 = vunpack.c.l.b16 %v486
    %v793 = vunpack.c.h.b16 %v486
    %v794 = vunpack.c.l.b16 %v487
    %v795 = vunpack.c.h.b16 %v487
    %v796 = vunpack.c.l.b16 %v488
    %v797 = vunpack.c.h.b16 %v488
    %v798 = vunpack.c.l.b16 %v489
    %v799 = vunpack.c.h.b16 %v489
    %v800 = vunpack.c.l.b16 %v490
    %v801 = vunpack.c.h.b16 %v490
    %v802 = vunpack.c.l.b16 %v491
    %v803 = vunpack.c.h.b16 %v491
    %v804 = vunpack.c.l.b16 %v492
    %v805 = vunpack.c.h.b16 %v492
    %v806 = vunpack.c.l.b16 %v493
    %v807 = vunpack.c.h.b16 %v493
    %v808 = vunpack.c.l.b16 %v494
    %v809 = vunpack.c.h.b16 %v494
    %v810 = vunpack.c.l.b16 %v495
    %v811 = vunpack.c.h.b16 %v495
    %v812 = vunpack.c.l.b16 %v496
    %v813 = vunpack.c.h.b16 %v496
    %v814 = vunpack.c.l.b16 %v497
    %v815 = vunpack.c.h.b16 %v497
    %v816 = vunpack.c.l.b16 %v498
    %v817 = vunpack.c.h.b16 %v498
    %v818 = vunpack.c.l.b16 %v499
    %v819 = vunpack.c.h.b16 %v499
    %v820 = vunpack.c.l.b16 %v500
    %v821 = vunpack.c.h.b16 %v500
    %v822 = vunpack.c.l.b16 %v501
    %v823 = vunpack.c.h.b16 %v501
    %v824 = vunpack.c.l.b16 %v502
    %v825 = vunpack.c.h.b16 %v502
    %v826 = vunpack.c.l.b16 %v503
    %v827 = vunpack.c.h.b16 %v503
    %v828 = vunpack.c.l.b16 %v504
    %v829 = vunpack.c.h.b16 %v504
    %v830 = vunpack.c.l.b16 %v505
    %v831 = vunpack.c.h.b16 %v505
    %v832 = vunpack.c.l.b16 %v506
    %v833 = vunpack.c.h.b16 %v506
    %v834 = vunpack.c.l.b16 %v507
    %v835 = vunpack.c.h.b16 %v507
    %v836 = vunpack.c.l.b16 %v508
    %v837 = vunpack.c.h.b16 %v508
    %v838 = vunpack.c.l.b16 %v509
    %v839 = vunpack.c.h.b16 %v509
    %v840 = vunpack.c.l.b16 %v510
    %v841 = vunpack.c.h.b16 %v510
    %v842 = vunpack.c.l.b16 %v511
    %v843 = vunpack.c.h.b16 %v511
    %v844 = vunpack.c.l.b16 %v512
    %v845 = vunpack.c.h.b16 %v512
    %v846 = vunpack.c.l.b16 %v513
    %v847 = vunpack.c.h.b16 %v513
    %v848 = vunpack.c.l.b16 %v514
    %v849 = vunpack.c.h.b16 %v514
    %v850 = vunpack.c.l.b16 %v515
    %v851 = vunpack.c.h.b16 %v515
    %v852 = vunpack.c.l.b16 %v516
    %v853 = vunpack.c.h.b16 %v516
    %v854 = vunpack.c.l.b16 %v517
    %v855 = vunpack.c.h.b16 %v517
    %v856 = vunpack.c.l.b16 %v518
    %v857 = vunpack.c.h.b16 %v518
    %v858 = vunpack.c.l.b16 %v519
    %v859 = vunpack.c.h.b16 %v519
    %v860 = vunpack.c.l.b16 %v520
    %v861 = vunpack.c.h.b16 %v520
    %v862 = vunpack.c.l.b16 %v521
    %v863 = vunpack.c.h.b16 %v521
    %v864 = vunpack.c.l.b16 %v522
    %v865 = vunpack.c.h.b16 %v522
    %v866 = vunpack.c.l.b16 %v523
    %v867 = vunpack.c.h.b16 %v523
    %v868 = vunpack.c.l.b16 %v524
    %v869 = vunpack.c.h.b16 %v524
    %v870 = vunpack.c.l.b16 %v525
    %v871 = vunpack.c.h.b16 %v525
    %v872 = vunpack.c.l.b16 %v526
    %v873 = vunpack.c.h.b16 %v526
    %v874 = vunpack.c.l.b16 %v527
    %v875 = vunpack.c.h.b16 %v527
    %v876 = vunpack.c.l.b16 %v528
    %v877 = vunpack.c.h.b16 %v528
    %v878 = vunpack.c.l.b16 %v529
    %v879 = vunpack.c.h.b16 %v529
    %v880 = vunpack.c.l.b16 %v530
    %v881 = vunpack.c.h.b16 %v530
    %v882 = vunpack.c.l.b16 %v531
    %v883 = vunpack.c.h.b16 %v531
    %v884 = vunpack.c.l.b16 %v532
    %v885 = vunpack.c.h.b16 %v532
    %v886 = vunpack.c.l.b16 %v533
    %v887 = vunpack.c.h.b16 %v533
    %v888 = vunpack.c.l.b16 %v534
    %v889 = vunpack.c.h.b16 %v534
    %v890 = vunpack.c.l.b16 %v535
    %v891 = vunpack.c.h.b16 %v535
    %v892 = vunpack.c.l.b16 %v536
    %v893 = vunpack.c.h.b16 %v536
    %v894 = vunpack.c.l.b16 %v537
    %v895 = vunpack.c.h.b16 %v537
    %v896 = vunpack.c.l.b16 %v538
    %v897 = vunpack.c.h.b16 %v538
    %v898 = vunpack.c.l.b16 %v539
    %v899 = vunpack.c.h.b16 %v539
    %v900 = vunpack.c.l.b16 %v540
    %v901 = vunpack.c.h.b16 %v540
    %v902 = vunpack.c.l.b16 %v541
    %v903 = vunpack.c.h.b16 %v541
    %v904 = vunpack.c.l.b16 %v542
    %v905 = vunpack.c.h.b16 %v542
    %v906 = vunpack.c.l.b16 %v543
    %v907 = vunpack.c.h.b16 %v543
    %v908 = vunpack.c.l.b16 %v544
    %v909 = vunpack.c.h.b16 %v544
    %v910 = vunpack.c.l.b16 %v545
    %v911 = vunpack.c.h.b16 %v545
    %v912 = vunpack.c.l.b16 %v546
    %v913 = vunpack.c.h.b16 %v546
    %v914 = vunpack.c.l.b16 %v547
    %v915 = vunpack.c.h.b16 %v547
    %v916 = vunpack.c.l.b16 %v548
    %v917 = vunpack.c.h.b16 %v548
    %v918 = vunpack.c.l.b16 %v549
    %v919 = vunpack.c.h.b16 %v549
    %v920 = vunpack.c.l.b16 %v550
    %v921 = vunpack.c.h.b16 %v550
    %v922 = vunpack.c.l.b16 %v551
    %v923 = vunpack.c.h.b16 %v551
    %v924 = vunpack.c.l.b16 %v552
    %v925 = vunpack.c.h.b16 %v552
    %v926 = vunpack.c.l.b16 %v553
    %v927 = vunpack.c.h.b16 %v553
    %v928 = vunpack.c.l.b16 %v554
    %v929 = vunpack.c.h.b16 %v554
    %v930 = vunpack.c.l.b16 %v555
    %v931 = vunpack.c.h.b16 %v555
    %v932 = vunpack.c.l.b16 %v556
    %v933 = vunpack.c.h.b16 %v556
    %v934 = vunpack.c.l.b16 %v557
    %v935 = vunpack.c.h.b16 %v557
    %v936 = vunpack.c.l.b16 %v558
    %v937 = vunpack.c.h.b16 %v558
    %v938 = vunpack.c.l.b16 %v559
    %v939 = vunpack.c.h.b16 %v559
    %v940 = vunpack.c.l.b16 %v560
    %v941 = vunpack.c.h.b16 %v560
    %v942 = vunpack.c.l.b16 %v561
    %v943 = vunpack.c.h.b16 %v561
    %v944 = vunpack.c.l.b16 %v562
    %v945 = vunpack.c.h.b16 %v562
    %v946 = vunpack.c.l.b16 %v563
    %v947 = vunpack.c.h.b16 %v563
    %v948 = vunpack.c.l.b16 %v564
    %v949 = vunpack.c.h.b16 %v564
    %v950 = vunpack.c.l.b16 %v565
    %v951 = vunpack.c.h.b16 %v565
    %v952 = vunpack.c.l.b16 %v566
    %v953 = vunpack.c.h.b16 %v566
    %v954 = vunpack.c.l.b16 %v567
    %v955 = vunpack.c.h.b16 %v567
    %v956 = vunpack.c.l.b16 %v568
    %v957 = vunpack.c.h.b16 %v568
    %v958 = vunpack.c.l.b16 %v569
    %v959 = vunpack.c.h.b16 %v569
    %v960 = vunpack.c.l.b16 %v570
    %v961 = vunpack.c.h.b16 %v570
    %v962 = vunpack.c.l.b16 %v571
    %v963 = vunpack.c.h.b16 %v571
    %v964 = vunpack.c.l.b16 %v572
    %v965 = vunpack.c.h.b16 %v572
    %v966 = vunpack.c.l.b16 %v573
    %v967 = vunpack.c.h.b16 %v573
    %v968 = vpack.c.b16 %v716, %v712
    %v969 = vpack.c.b16 %v717, %v713
    %v970 = vpack.c.b16 %v718, %v714
    %v971 = vpack.c.b16 %v719, %v715
    %v972 = vpack.c.b16 %v724, %v720
    %v973 = vpack.c.b16 %v725, %v721
    %v974 = vpack.c.b16 %v726, %v722
    %v975 = vpack.c.b16 %v727, %v723
    %v976 = vpack.c.b16 %v732, %v728
    %v977 = vpack.c.b16 %v733, %v729
    %v978 = vpack.c.b16 %v734, %v730
    %v979 = vpack.c.b16 %v735, %v731
    %v980 = vpack.c.b16 %v740, %v736
    %v981 = vpack.c.b16 %v741, %v737
    %v982 = vpack.c.b16 %v742, %v738
    %v983 = vpack.c.b16 %v743, %v739
    %v984 = vpack.c.b16 %v748, %v744
    %v985 = vpack.c.b16 %v749, %v745
    %v986 = vpack.c.b16 %v750, %v746
    %v987 = vpack.c.b16 %v751, %v747
    %v988 = vpack.c.b16 %v756, %v752
    %v989 = vpack.c.b16 %v757, %v753
    %v990 = vpack.c.b16 %v758, %v754
    %v991 = vpack.c.b16 %v759, %v755
    %v992 = vpack.c.b16 %v764, %v760
    %v993 = vpack.c.b16 %v765, %v761
    %v994 = vpack.c.b16 %v766, %v762
    %v995 = vpack.c.b16 %v767, %v763
    %v996 = vpack.c.b16 %v772, %v768
    %v997 = vpack.c.b16 %v773, %v769
    %v998 = vpack.c.b16 %v774, %v770
    %v999 = vpack.c.b16 %v775, %v771
    %v1000 = vpack.c.b16 %v780, %v776
    %v1001 = vpack.c.b16 %v781, %v777
    %v1002 = vpack.c.b16 %v782, %v778
    %v1003 = vpack.c.b16 %v783, %v779
    %v1004 = vpack.c.b16 %v788, %v784
    %v1005 = vpack.c.b16 %v789, %v785
    %v1006 = vpack.c.b16 %v790, %v786
    %v1007 = vpack.c.b16 %v791, %v787
    %v1008 = vpack.c.b16 %v796, %v792
    %v1009 = vpack.c.b16 %v797, %v793
    %v1010 = vpack.c.b16 %v798, %v794
    %v1011 = vpack.c.b16 %v799, %v795
    %v1012 = vpack.c.b16 %v804, %v800
    %v1013 = vpack.c.b16 %v805, %v801
    %v1014 = vpack.c.b16 %v806, %v802
    %v1015 = vpack.c.b16 %v807, %v803
    %v1016 = vpack.c.b16 %v812, %v808
    %v1017 = vpack.c.b16 %v813, %v809
    %v1018 = vpack.c.b16 %v814, %v810
    %v1019 = vpack.c.b16 %v815, %v811
    %v1020 = vpack.c.b16 %v820, %v816
    %v1021 = vpack.c.b16 %v821, %v817
    %v1022 = vpack.c.b16 %v822, %v818
    %v1023 = vpack.c.b16 %v823, %v819
    %v1024 = vpack.c.b16 %v828, %v824
    %v1025 = vpack.c.b16 %v829, %v825
    %v1026 = vpack.c.b16 %v830, %v826
    %v1027 = vpack.c.b16 %v831, %v827
    %v1028 = vpack.c.b16 %v836, %v832
    %v1029 = vpack.c.b16 %v837, %v833
    %v1030 = vpack.c.b16 %v838, %v834
    %v1031 = vpack.c.b16 %v839, %v835
    %v1032 = vpack.c.b16 %v844, %v840
    %v1033 = vpack.c.b16 %v845, %v841
    %v1034 = vpack.c.b16 %v846, %v842
    %v1035 = vpack.c.b16 %v847, %v843
    %v1036 = vpack.c.b16 %v852, %v848
    %v1037 = vpack.c.b16 %v853, %v849
    %v1038 = vpack.c.b16 %v854, %v850
    %v1039 = vpack.c.b16 %v855, %v851
    %v1040 = vpack.c.b16 %v860, %v856
    %v1041 = vpack.c.b16 %v861, %v857
    %v1042 = vpack.c.b16 %v862, %v858
    %v1043 = vpack.c.b16 %v863, %v859
    %v1044 = vpack.c.b16 %v868, %v864
    %v1045 = vpack.c.b16 %v869, %v865
    %v1046 = vpack.c.b16 %v870, %v866
    %v1047 = vpack.c.b16 %v871, %v867
    %v1048 = vpack.c.b16 %v876, %v872
    %v1049 = vpack.c.b16 %v877, %v873
    %v1050 = vpack.c.b16 %v878, %v874
    %v1051 = vpack.c.b16 %v879, %v875
    %v1052 = vpack.c.b16 %v884, %v880
    %v1053 = vpack.c.b16 %v885, %v881
    %v1054 = vpack.c.b16 %v886, %v882
    %v1055 = vpack.c.b16 %v887, %v883
    %v1056 = vpack.c.b16 %v892, %v888
    %v1057 = vpack.c.b16 %v893, %v889
    %v1058 = vpack.c.b16 %v894, %v890
    %v1059 = vpack.c.b16 %v895, %v891
    %v1060 = vpack.c.b16 %v900, %v896
    %v1061 = vpack.c.b16 %v901, %v897
    %v1062 = vpack.c.b16 %v902, %v898
    %v1063 = vpack.c.b16 %v903, %v899
    %v1064 = vpack.c.b16 %v908, %v904
    %v1065 = vpack.c.b16 %v909, %v905
    %v1066 = vpack.c.b16 %v910, %v906
    %v1067 = vpack.c.b16 %v911, %v907
    %v1068 = vpack.c.b16 %v916, %v912
    %v1069 = vpack.c.b16 %v917, %v913
    %v1070 = vpack.c.b16 %v918, %v914
    %v1071 = vpack.c.b16 %v919, %v915
    %v1072 = vpack.c.b16 %v924, %v920
    %v1073 = vpack.c.b16 %v925, %v921
    %v1074 = vpack.c.b16 %v926, %v922
    %v1075 = vpack.c.b16 %v927, %v923
    %v1076 = vpack.c.b16 %v932, %v928
    %v1077 = vpack.c.b16 %v933, %v929
    %v1078 = vpack.c.b16 %v934, %v930
    %v1079 = vpack.c.b16 %v935, %v931
    %v1080 = vpack.c.b16 %v940, %v936
    %v1081 = vpack.c.b16 %v941, %v937
    %v1082 = vpack.c.b16 %v942, %v938
    %v1083 = vpack.c.b16 %v943, %v939
    %v1084 = vpack.c.b16 %v948, %v944
    %v1085 = vpack.c.b16 %v949, %v945
    %v1086 = vpack.c.b16 %v950, %v946
    %v1087 = vpack.c.b16 %v951, %v947
    %v1088 = vpack.c.b16 %v956, %v952
    %v1089 = vpack.c.b16 %v957, %v953
    %v1090 = vpack.c.b16 %v958, %v954
    %v1091 = vpack.c.b16 %v959, %v955
    %v1092 = vpack.c.b16 %v964, %v960
    %v1093 = vpack.c.b16 %v965, %v961
    %v1094 = vpack.c.b16 %v966, %v962
    %v1095 = vpack.c.b16 %v967, %v963
    %1224 = vmatpush.bf16.msra.mxu0 %v996
    %1225 = vmatpush.bf16.msra.mxu0 %v992
    %1226 = vmatpush.bf16.msra.mxu0 %v988
    %1227 = vmatpush.bf16.msra.mxu0 %v984
    %1228 = vmatpush.bf16.msra.mxu0 %v980
    %1229 = vmatpush.bf16.msra.mxu0 %v976
    %1230 = vmatpush.bf16.msra.mxu0 %v972
    %1231 = vmatpush.bf16.msra.mxu0 %v968
    %1232 = vmatmul.bf16.gmra.mxu0 %v442
    %v1233 = vpop.f32.mrf.mxu0
    %v1234 = vadd.f32 %v576, %v1233
    %v1235 = vpop.f32.mrf.mxu0
    %v1236 = vadd.f32 %v576, %v1235
    %1237 = vdwg.mxu0
    %1238 = vmatpush.bf16.msra.mxu0 %v1028
    %1239 = vmatpush.bf16.msra.mxu0 %v1024
    %1240 = vmatpush.bf16.msra.mxu0 %v1020
    %1241 = vmatpush.bf16.msra.mxu0 %v1016
    %1242 = vmatpush.bf16.msra.mxu0 %v1012
    %1243 = vmatpush.bf16.msra.mxu0 %v1008
    %1244 = vmatpush.bf16.msra.mxu0 %v1004
    %1245 = vmatpush.bf16.msra.mxu0 %v1000
    %1246 = vmatmul.bf16.gmra.mxu0 %v443
    %v1247 = vpop.f32.mrf.mxu0
    %v1248 = vadd.f32 %v1234, %v1247
    %v1249 = vpop.f32.mrf.mxu0
    %v1250 = vadd.f32 %v1236, %v1249
    %1251 = vdwg.mxu0
    %1252 = vmatpush.bf16.msra.mxu0 %v1060
    %1253 = vmatpush.bf16.msra.mxu0 %v1056
    %1254 = vmatpush.bf16.msra.mxu0 %v1052
    %1255 = vmatpush.bf16.msra.mxu0 %v1048
    %1256 = vmatpush.bf16.msra.mxu0 %v1044
    %1257 = vmatpush.bf16.msra.mxu0 %v1040
    %1258 = vmatpush.bf16.msra.mxu0 %v1036
    %1259 = vmatpush.bf16.msra.mxu0 %v1032
    %1260 = vmatmul.bf16.gmra.mxu0 %v444
    %v1261 = vpop.f32.mrf.mxu0
    %v1262 = vadd.f32 %v1248, %v1261
    %v1263 = vpop.f32.mrf.mxu0
    %v1264 = vadd.f32 %v1250, %v1263
    %1265 = vdwg.mxu0
    %1266 = vmatpush.bf16.msra.mxu0 %v1092
    %1267 = vmatpush.bf16.msra.mxu0 %v1088
    %1268 = vmatpush.bf16.msra.mxu0 %v1084
    %1269 = vmatpush.bf16.msra.mxu0 %v1080
    %1270 = vmatpush.bf16.msra.mxu0 %v1076
    %1271 = vmatpush.bf16.msra.mxu0 %v1072
    %1272 = vmatpush.bf16.msra.mxu0 %v1068
    %1273 = vmatpush.bf16.msra.mxu0 %v1064
    %1274 = vmatmul.bf16.gmra.mxu0 %v445
    %v1275 = vpop.f32.mrf.mxu0
    %v1276 = vadd.f32 %v1262, %v1275
    %v1277 = vpop.f32.mrf.mxu0
    %v1278 = vadd.f32 %v1264, %v1277
    %1279 = vdwg.mxu0
    %1280 = vmatpush.bf16.msra.mxu0 %v997
    %1281 = vmatpush.bf16.msra.mxu0 %v993
    %1282 = vmatpush.bf16.msra.mxu0 %v989
    %1283 = vmatpush.bf16.msra.mxu0 %v985
    %1284 = vmatpush.bf16.msra.mxu0 %v981
    %1285 = vmatpush.bf16.msra.mxu0 %v977
    %1286 = vmatpush.bf16.msra.mxu0 %v973
    %1287 = vmatpush.bf16.msra.mxu0 %v969
    %1288 = vmatmul.bf16.gmra.mxu0 %v442
    %v1289 = vpop.f32.mrf.mxu0
    %v1290 = vadd.f32 %v577, %v1289
    %v1291 = vpop.f32.mrf.mxu0
    %v1292 = vadd.f32 %v577, %v1291
    %1293 = vdwg.mxu0
    %1294 = vmatpush.bf16.msra.mxu0 %v1029
    %1295 = vmatpush.bf16.msra.mxu0 %v1025
    %1296 = vmatpush.bf16.msra.mxu0 %v1021
    %1297 = vmatpush.bf16.msra.mxu0 %v1017
    %1298 = vmatpush.bf16.msra.mxu0 %v1013
    %1299 = vmatpush.bf16.msra.mxu0 %v1009
    %1300 = vmatpush.bf16.msra.mxu0 %v1005
    %1301 = vmatpush.bf16.msra.mxu0 %v1001
    %1302 = vmatmul.bf16.gmra.mxu0 %v443
    %v1303 = vpop.f32.mrf.mxu0
    %v1304 = vadd.f32 %v1290, %v1303
    %v1305 = vpop.f32.mrf.mxu0
    %v1306 = vadd.f32 %v1292, %v1305
    %1307 = vdwg.mxu0
    %1308 = vmatpush.bf16.msra.mxu0 %v1061
    %1309 = vmatpush.bf16.msra.mxu0 %v1057
    %1310 = vmatpush.bf16.msra.mxu0 %v1053
    %1311 = vmatpush.bf16.msra.mxu0 %v1049
    %1312 = vmatpush.bf16.msra.mxu0 %v1045
    %1313 = vmatpush.bf16.msra.mxu0 %v1041
    %1314 = vmatpush.bf16.msra.mxu0 %v1037
    %1315 = vmatpush.bf16.msra.mxu0 %v1033
    %1316 = vmatmul.bf16.gmra.mxu0 %v444
    %v1317 = vpop.f32.mrf.mxu0
    %v1318 = vadd.f32 %v1304, %v1317
    %v1319 = vpop.f32.mrf.mxu0
    %v1320 = vadd.f32 %v1306, %v1319
    %1321 = vdwg.mxu0
    %1322 = vmatpush.bf16.msra.mxu0 %v1093
    %1323 = vmatpush.bf16.msra.mxu0 %v1089
    %1324 = vmatpush.bf16.msra.mxu0 %v1085
    %1325 = vmatpush.bf16.msra.mxu0 %v1081
    %1326 = vmatpush.bf16.msra.mxu0 %v1077
    %1327 = vmatpush.bf16.msra.mxu0 %v1073
    %1328 = vmatpush.bf16.msra.mxu0 %v1069
    %1329 = vmatpush.bf16.msra.mxu0 %v1065
    %1330 = vmatmul.bf16.gmra.mxu0 %v445
    %v1331 = vpop.f32.mrf.mxu0
    %v1332 = vadd.f32 %v1318, %v1331
    %v1333 = vpop.f32.mrf.mxu0
    %v1334 = vadd.f32 %v1320, %v1333
    %1335 = vdwg.mxu0
    %1336 = vmatpush.bf16.msra.mxu0 %v998
    %1337 = vmatpush.bf16.msra.mxu0 %v994
    %1338 = vmatpush.bf16.msra.mxu0 %v990
    %1339 = vmatpush.bf16.msra.mxu0 %v986
    %1340 = vmatpush.bf16.msra.mxu0 %v982
    %1341 = vmatpush.bf16.msra.mxu0 %v978
    %1342 = vmatpush.bf16.msra.mxu0 %v974
    %1343 = vmatpush.bf16.msra.mxu0 %v970
    %1344 = vmatmul.bf16.gmra.mxu0 %v442
    %v1345 = vpop.f32.mrf.mxu0
    %v1346 = vadd.f32 %v578, %v1345
    %v1347 = vpop.f32.mrf.mxu0
    %v1348 = vadd.f32 %v578, %v1347
    %1349 = vdwg.mxu0
    %1350 = vmatpush.bf16.msra.mxu0 %v1030
    %1351 = vmatpush.bf16.msra.mxu0 %v1026
    %1352 = vmatpush.bf16.msra.mxu0 %v1022
    %1353 = vmatpush.bf16.msra.mxu0 %v1018
    %1354 = vmatpush.bf16.msra.mxu0 %v1014
    %1355 = vmatpush.bf16.msra.mxu0 %v1010
    %1356 = vmatpush.bf16.msra.mxu0 %v1006
    %1357 = vmatpush.bf16.msra.mxu0 %v1002
    %1358 = vmatmul.bf16.gmra.mxu0 %v443
    %v1359 = vpop.f32.mrf.mxu0
    %v1360 = vadd.f32 %v1346, %v1359
    %v1361 = vpop.f32.mrf.mxu0
    %v1362 = vadd.f32 %v1348, %v1361
    %1363 = vdwg.mxu0
    %1364 = vmatpush.bf16.msra.mxu0 %v1062
    %1365 = vmatpush.bf16.msra.mxu0 %v1058
    %1366 = vmatpush.bf16.msra.mxu0 %v1054
    %1367 = vmatpush.bf16.msra.mxu0 %v1050
    %1368 = vmatpush.bf16.msra.mxu0 %v1046
    %1369 = vmatpush.bf16.msra.mxu0 %v1042
    %1370 = vmatpush.bf16.msra.mxu0 %v1038
    %1371 = vmatpush.bf16.msra.mxu0 %v1034
    %1372 = vmatmul.bf16.gmra.mxu0 %v444
    %v1373 = vpop.f32.mrf.mxu0
    %v1374 = vadd.f32 %v1360, %v1373
    %v1375 = vpop.f32.mrf.mxu0
    %v1376 = vadd.f32 %v1362, %v1375
    %1377 = vdwg.mxu0
    %1378 = vmatpush.bf16.msra.mxu0 %v1094
    %1379 = vmatpush.bf16.msra.mxu0 %v1090
    %1380 = vmatpush.bf16.msra.mxu0 %v1086
    %1381 = vmatpush.bf16.msra.mxu0 %v1082
    %1382 = vmatpush.bf16.msra.mxu0 %v1078
    %1383 = vmatpush.bf16.msra.mxu0 %v1074
    %1384 = vmatpush.bf16.msra.mxu0 %v1070
    %1385 = vmatpush.bf16.msra.mxu0 %v1066
    %1386 = vmatmul.bf16.gmra.mxu0 %v445
    %v1387 = vpop.f32.mrf.mxu0
    %v1388 = vadd.f32 %v1374, %v1387
    %v1389 = vpop.f32.mrf.mxu0
    %v1390 = vadd.f32 %v1376, %v1389
    %1391 = vdwg.mxu0
    %1392 = vmatpush.bf16.msra.mxu0 %v999
    %1393 = vmatpush.bf16.msra.mxu0 %v995
    %1394 = vmatpush.bf16.msra.mxu0 %v991
    %1395 = vmatpush.bf16.msra.mxu0 %v987
    %1396 = vmatpush.bf16.msra.mxu0 %v983
    %1397 = vmatpush.bf16.msra.mxu0 %v979
    %1398 = vmatpush.bf16.msra.mxu0 %v975
    %1399 = vmatpush.bf16.msra.mxu0 %v971
    %1400 = vmatmul.bf16.gmra.mxu0 %v442
    %v1401 = vpop.f32.mrf.mxu0
    %v1402 = vadd.f32 %v579, %v1401
    %v1403 = vpop.f32.mrf.mxu0
    %v1404 = vadd.f32 %v579, %v1403
    %1405 = vdwg.mxu0
    %1406 = vmatpush.bf16.msra.mxu0 %v1031
    %1407 = vmatpush.bf16.msra.mxu0 %v1027
    %1408 = vmatpush.bf16.msra.mxu0 %v1023
    %1409 = vmatpush.bf16.msra.mxu0 %v1019
    %1410 = vmatpush.bf16.msra.mxu0 %v1015
    %1411 = vmatpush.bf16.msra.mxu0 %v1011
    %1412 = vmatpush.bf16.msra.mxu0 %v1007
    %1413 = vmatpush.bf16.msra.mxu0 %v1003
    %1414 = vmatmul.bf16.gmra.mxu0 %v443
    %v1415 = vpop.f32.mrf.mxu0
    %v1416 = vadd.f32 %v1402, %v1415
    %v1417 = vpop.f32.mrf.mxu0
    %v1418 = vadd.f32 %v1404, %v1417
    %1419 = vdwg.mxu0
    %1420 = vmatpush.bf16.msra.mxu0 %v1063
    %1421 = vmatpush.bf16.msra.mxu0 %v1059
    %1422 = vmatpush.bf16.msra.mxu0 %v1055
    %1423 = vmatpush.bf16.msra.mxu0 %v1051
    %1424 = vmatpush.bf16.msra.mxu0 %v1047
    %1425 = vmatpush.bf16.msra.mxu0 %v1043
    %1426 = vmatpush.bf16.msra.mxu0 %v1039
    %1427 = vmatpush.bf16.msra.mxu0 %v1035
    %1428 = vmatmul.bf16.gmra.mxu0 %v444
    %v1429 = vpop.f32.mrf.mxu0
    %v1430 = vadd.f32 %v1416, %v1429
    %v1431 = vpop.f32.mrf.mxu0
    %v1432 = vadd.f32 %v1418, %v1431
    %1433 = vdwg.mxu0
    %1434 = vmatpush.bf16.msra.mxu0 %v1095
    %1435 = vmatpush.bf16.msra.mxu0 %v1091
    %1436 = vmatpush.bf16.msra.mxu0 %v1087
    %1437 = vmatpush.bf16.msra.mxu0 %v1083
    %1438 = vmatpush.bf16.msra.mxu0 %v1079
    %1439 = vmatpush.bf16.msra.mxu0 %v1075
    %1440 = vmatpush.bf16.msra.mxu0 %v1071
    %1441 = vmatpush.bf16.msra.mxu0 %v1067
    %1442 = vmatmul.bf16.gmra.mxu0 %v445
    %v1443 = vpop.f32.mrf.mxu0
    %v1444 = vadd.f32 %v1430, %v1443
    %v1445 = vpop.f32.mrf.mxu0
    %v1446 = vadd.f32 %v1432, %v1445
    %1447 = vdwg.mxu0
    %v1448 = vmax.f32 %v1276, 0.0
    %v1449 = vmax.f32 %v1332, 0.0
    %v1450 = vmax.f32 %v1388, 0.0
    %v1451 = vmax.f32 %v1444, 0.0
    %v1452 = vmax.f32 %v1278, 0.0
    %v1453 = vmax.f32 %v1334, 0.0
    %v1454 = vmax.f32 %v1390, 0.0
    %v1455 = vmax.f32 %v1446, 0.0
    %s1456 = smul.u32 %s438, 5
    %s1457 = sshll.u32 %s1456, 4
    %1458 = dma.done %s123, %s1457
    %v1459 = vpack.c.bf16 %v1452, %v1448
    %v1460 = vpack.c.bf16 %v1453, %v1449
    %v1461 = vpack.c.bf16 %v1454, %v1450
    %v1462 = vpack.c.bf16 %v1455, %v1451
    %v1463 = vld [vmem:[#allocation4] sm:$0xff]
    %v1464 = vld [vmem:[#allocation4 + $0x8] sm:$0xff]
    %v1465 = vld [vmem:[#allocation4 + $0x10] sm:$0xf]
    %v1466 = vld [vmem:[#allocation4 + $0x14] sm:$0xff]
    %v1467 = vld [vmem:[#allocation4 + $0x1c] sm:$0xff]
    %v1468 = vld [vmem:[#allocation4 + $0x24] sm:$0xf]
    %v1469 = vld [vmem:[#allocation4 + $0x28] sm:$0xff]
    %v1470 = vld [vmem:[#allocation4 + $0x30] sm:$0xff]
    %v1471 = vld [vmem:[#allocation4 + $0x38] sm:$0xf]
    %v1472 = vld [vmem:[#allocation4 + $0x3c] sm:$0xff]
    %v1473 = vld [vmem:[#allocation4 + $0x44] sm:$0xff]
    %v1474 = vld [vmem:[#allocation4 + $0x4c] sm:$0xf]
    %v1475 = vld [vmem:[#allocation4 + $0x50] sm:$0xff]
    %v1476 = vld [vmem:[#allocation4 + $0x58] sm:$0xff]
    %v1477 = vld [vmem:[#allocation4 + $0x60] sm:$0xf]
    %v1478 = vld [vmem:[#allocation4 + $0x64] sm:$0xff]
    %v1479 = vld [vmem:[#allocation4 + $0x6c] sm:$0xff]
    %v1480 = vld [vmem:[#allocation4 + $0x74] sm:$0xf]
    %v1481 = vld [vmem:[#allocation4 + $0x78] sm:$0xff]
    %v1482 = vld [vmem:[#allocation4 + $0x80] sm:$0xff]
    %v1483 = vld [vmem:[#allocation4 + $0x88] sm:$0xf]
    %v1484 = vld [vmem:[#allocation4 + $0x8c] sm:$0xff]
    %v1485 = vld [vmem:[#allocation4 + $0x94] sm:$0xff]
    %v1486 = vld [vmem:[#allocation4 + $0x9c] sm:$0xf]
    %v1487 = vld [vmem:[#allocation4 + $0xa0] sm:$0xff]
    %v1488 = vld [vmem:[#allocation4 + $0xa8] sm:$0xff]
    %v1489 = vld [vmem:[#allocation4 + $0xb0] sm:$0xf]
    %v1490 = vld [vmem:[#allocation4 + $0xb4] sm:$0xff]
    %v1491 = vld [vmem:[#allocation4 + $0xbc] sm:$0xff]
    %v1492 = vld [vmem:[#allocation4 + $0xc4] sm:$0xf]
    %v1493 = vld [vmem:[#allocation4 + $0xc8] sm:$0xff]
    %v1494 = vld [vmem:[#allocation4 + $0xd0] sm:$0xff]
    %v1495 = vld [vmem:[#allocation4 + $0xd8] sm:$0xf]
    %v1496 = vld [vmem:[#allocation4 + $0xdc] sm:$0xff]
    %v1497 = vld [vmem:[#allocation4 + $0xe4] sm:$0xff]
    %v1498 = vld [vmem:[#allocation4 + $0xec] sm:$0xf]
    %v1499 = vld [vmem:[#allocation4 + $0xf0] sm:$0xff]
    %v1500 = vld [vmem:[#allocation4 + $0xf8] sm:$0xff]
    %v1501 = vld [vmem:[#allocation4 + $0x100] sm:$0xf]
    %v1502 = vld [vmem:[#allocation4 + $0x104] sm:$0xff]
    %v1503 = vld [vmem:[#allocation4 + $0x10c] sm:$0xff]
    %v1504 = vld [vmem:[#allocation4 + $0x114] sm:$0xf]
    %v1505 = vld [vmem:[#allocation4 + $0x118] sm:$0xff]
    %v1506 = vld [vmem:[#allocation4 + $0x120] sm:$0xff]
    %v1507 = vld [vmem:[#allocation4 + $0x128] sm:$0xf]
    %v1508 = vld [vmem:[#allocation4 + $0x12c] sm:$0xff]
    %v1509 = vld [vmem:[#allocation4 + $0x134] sm:$0xff]
    %v1510 = vld [vmem:[#allocation4 + $0x13c] sm:$0xf]
    %v1511 = vld [vmem:[#allocation4 + $0x140] sm:$0xff]
    %v1512 = vld [vmem:[#allocation4 + $0x148] sm:$0xff]
    %v1513 = vld [vmem:[#allocation4 + $0x150] sm:$0xf]
    %v1514 = vld [vmem:[#allocation4 + $0x154] sm:$0xff]
    %v1515 = vld [vmem:[#allocation4 + $0x15c] sm:$0xff]
    %v1516 = vld [vmem:[#allocation4 + $0x164] sm:$0xf]
    %v1517 = vld [vmem:[#allocation4 + $0x168] sm:$0xff]
    %v1518 = vld [vmem:[#allocation4 + $0x170] sm:$0xff]
    %v1519 = vld [vmem:[#allocation4 + $0x178] sm:$0xf]
    %v1520 = vld [vmem:[#allocation4 + $0x17c] sm:$0xff]
    %v1521 = vld [vmem:[#allocation4 + $0x184] sm:$0xff]
    %v1522 = vld [vmem:[#allocation4 + $0x18c] sm:$0xf]
    %v1523 = vld [vmem:[#allocation4 + $0x190] sm:$0xff]
    %v1524 = vld [vmem:[#allocation4 + $0x198] sm:$0xff]
    %v1525 = vld [vmem:[#allocation4 + $0x1a0] sm:$0xf]
    %v1526 = vld [vmem:[#allocation4 + $0x1a4] sm:$0xff]
    %v1527 = vld [vmem:[#allocation4 + $0x1ac] sm:$0xff]
    %v1528 = vld [vmem:[#allocation4 + $0x1b4] sm:$0xf]
    %v1529 = vld [vmem:[#allocation4 + $0x1b8] sm:$0xff]
    %v1530 = vld [vmem:[#allocation4 + $0x1c0] sm:$0xff]
    %v1531 = vld [vmem:[#allocation4 + $0x1c8] sm:$0xf]
    %v1532 = vld [vmem:[#allocation4 + $0x1cc] sm:$0xff]
    %v1533 = vld [vmem:[#allocation4 + $0x1d4] sm:$0xff]
    %v1534 = vld [vmem:[#allocation4 + $0x1dc] sm:$0xf]
    %v1535 = vld [vmem:[#allocation4 + $0x1e0] sm:$0xff]
    %v1536 = vld [vmem:[#allocation4 + $0x1e8] sm:$0xff]
    %v1537 = vld [vmem:[#allocation4 + $0x1f0] sm:$0xf]
    %v1538 = vld [vmem:[#allocation4 + $0x1f4] sm:$0xff]
    %v1539 = vld [vmem:[#allocation4 + $0x1fc] sm:$0xff]
    %v1540 = vld [vmem:[#allocation4 + $0x204] sm:$0xf]
    %v1541 = vld [vmem:[#allocation4 + $0x208] sm:$0xff]
    %v1542 = vld [vmem:[#allocation4 + $0x210] sm:$0xff]
    %v1543 = vld [vmem:[#allocation4 + $0x218] sm:$0xf]
    %v1544 = vld [vmem:[#allocation4 + $0x21c] sm:$0xff]
    %v1545 = vld [vmem:[#allocation4 + $0x224] sm:$0xff]
    %v1546 = vld [vmem:[#allocation4 + $0x22c] sm:$0xf]
    %v1547 = vld [vmem:[#allocation4 + $0x230] sm:$0xff]
    %v1548 = vld [vmem:[#allocation4 + $0x238] sm:$0xff]
    %v1549 = vld [vmem:[#allocation4 + $0x240] sm:$0xf]
    %v1550 = vld [vmem:[#allocation4 + $0x244] sm:$0xff]
    %v1551 = vld [vmem:[#allocation4 + $0x24c] sm:$0xff]
    %v1552 = vld [vmem:[#allocation4 + $0x254] sm:$0xf]
    %v1553 = vld [vmem:[#allocation4 + $0x258] sm:$0xff]
    %v1554 = vld [vmem:[#allocation4 + $0x260] sm:$0xff]
    %v1555 = vld [vmem:[#allocation4 + $0x268] sm:$0xf]
    %v1556 = vld [vmem:[#allocation4 + $0x26c] sm:$0xff]
    %v1557 = vld [vmem:[#allocation4 + $0x274] sm:$0xff]
    %v1558 = vld [vmem:[#allocation4 + $0x27c] sm:$0xf]
    %v1559 = vld [vmem:[#allocation4 + $0x280] sm:$0xff]
    %v1560 = vld [vmem:[#allocation4 + $0x288] sm:$0xff]
    %v1561 = vld [vmem:[#allocation4 + $0x290] sm:$0xf]
    %v1562 = vld [vmem:[#allocation4 + $0x294] sm:$0xff]
    %v1563 = vld [vmem:[#allocation4 + $0x29c] sm:$0xff]
    %v1564 = vld [vmem:[#allocation4 + $0x2a4] sm:$0xf]
    %v1565 = vld [vmem:[#allocation4 + $0x2a8] sm:$0xff]
    %v1566 = vld [vmem:[#allocation4 + $0x2b0] sm:$0xff]
    %v1567 = vld [vmem:[#allocation4 + $0x2b8] sm:$0xf]
    %v1568 = vld [vmem:[#allocation4 + $0x2bc] sm:$0xff]
    %v1569 = vld [vmem:[#allocation4 + $0x2c4] sm:$0xff]
    %v1570 = vld [vmem:[#allocation4 + $0x2cc] sm:$0xf]
    %v1571 = vld [vmem:[#allocation4 + $0x2d0] sm:$0xff]
    %v1572 = vld [vmem:[#allocation4 + $0x2d8] sm:$0xff]
    %v1573 = vld [vmem:[#allocation4 + $0x2e0] sm:$0xf]
    %v1574 = vld [vmem:[#allocation4 + $0x2e4] sm:$0xff]
    %v1575 = vld [vmem:[#allocation4 + $0x2ec] sm:$0xff]
    %v1576 = vld [vmem:[#allocation4 + $0x2f4] sm:$0xf]
    %v1577 = vld [vmem:[#allocation4 + $0x2f8] sm:$0xff]
    %v1578 = vld [vmem:[#allocation4 + $0x300] sm:$0xff]
    %v1579 = vld [vmem:[#allocation4 + $0x308] sm:$0xf]
    %v1580 = vld [vmem:[#allocation4 + $0x30c] sm:$0xff]
    %v1581 = vld [vmem:[#allocation4 + $0x314] sm:$0xff]
    %v1582 = vld [vmem:[#allocation4 + $0x31c] sm:$0xf]
    %v1583 = vld [vmem:[#allocation4 + $0x320] sm:$0xff]
    %v1584 = vld [vmem:[#allocation4 + $0x328] sm:$0xff]
    %v1585 = vld [vmem:[#allocation4 + $0x330] sm:$0xf]
    %v1586 = vld [vmem:[#allocation4 + $0x334] sm:$0xff]
    %v1587 = vld [vmem:[#allocation4 + $0x33c] sm:$0xff]
    %v1588 = vld [vmem:[#allocation4 + $0x344] sm:$0xf]
    %v1589 = vld [vmem:[#allocation4 + $0x348] sm:$0xff]
    %v1590 = vld [vmem:[#allocation4 + $0x350] sm:$0xff]
    %v1591 = vld [vmem:[#allocation4 + $0x358] sm:$0xf]
    %v1592 = vld [vmem:[#allocation4 + $0x35c] sm:$0xff]
    %v1593 = vld [vmem:[#allocation4 + $0x364] sm:$0xff]
    %v1594 = vld [vmem:[#allocation4 + $0x36c] sm:$0xf]
    %v1595 = vld [vmem:[#allocation4 + $0x370] sm:$0xff]
    %v1596 = vld [vmem:[#allocation4 + $0x378] sm:$0xff]
    %v1597 = vld [vmem:[#allocation4 + $0x380] sm:$0xf]
    %v1598 = vld [vmem:[#allocation4 + $0x384] sm:$0xff]
    %v1599 = vld [vmem:[#allocation4 + $0x38c] sm:$0xff]
    %v1600 = vld [vmem:[#allocation4 + $0x394] sm:$0xf]
    %v1601 = vld [vmem:[#allocation4 + $0x398] sm:$0xff]
    %v1602 = vld [vmem:[#allocation4 + $0x3a0] sm:$0xff]
    %v1603 = vld [vmem:[#allocation4 + $0x3a8] sm:$0xf]
    %v1604 = vld [vmem:[#allocation4 + $0x3ac] sm:$0xff]
    %v1605 = vld [vmem:[#allocation4 + $0x3b4] sm:$0xff]
    %v1606 = vld [vmem:[#allocation4 + $0x3bc] sm:$0xf]
    %v1607 = vld [vmem:[#allocation4 + $0x3c0] sm:$0xff]
    %v1608 = vld [vmem:[#allocation4 + $0x3c8] sm:$0xff]
    %v1609 = vld [vmem:[#allocation4 + $0x3d0] sm:$0xf]
    %v1610 = vld [vmem:[#allocation4 + $0x3d4] sm:$0xff]
    %v1611 = vld [vmem:[#allocation4 + $0x3dc] sm:$0xff]
    %v1612 = vld [vmem:[#allocation4 + $0x3e4] sm:$0xf]
    %v1613 = vld [vmem:[#allocation4 + $0x3e8] sm:$0xff]
    %v1614 = vld [vmem:[#allocation4 + $0x3f0] sm:$0xff]
    %v1615 = vld [vmem:[#allocation4 + $0x3f8] sm:$0xf]
    %v1616 = vld [vmem:[#allocation4 + $0x3fc] sm:$0xff]
    %v1617 = vld [vmem:[#allocation4 + $0x404] sm:$0xff]
    %v1618 = vld [vmem:[#allocation4 + $0x40c] sm:$0xf]
    %v1619 = vld [vmem:[#allocation4 + $0x410] sm:$0xff]
    %v1620 = vld [vmem:[#allocation4 + $0x418] sm:$0xff]
    %v1621 = vld [vmem:[#allocation4 + $0x420] sm:$0xf]
    %v1622 = vld [vmem:[#allocation4 + $0x424] sm:$0xff]
    %v1623 = vld [vmem:[#allocation4 + $0x42c] sm:$0xff]
    %v1624 = vld [vmem:[#allocation4 + $0x434] sm:$0xf]
    %v1625 = vld [vmem:[#allocation4 + $0x438] sm:$0xff]
    %v1626 = vld [vmem:[#allocation4 + $0x440] sm:$0xff]
    %v1627 = vld [vmem:[#allocation4 + $0x448] sm:$0xf]
    %v1628 = vld [vmem:[#allocation4 + $0x44c] sm:$0xff]
    %v1629 = vld [vmem:[#allocation4 + $0x454] sm:$0xff]
    %v1630 = vld [vmem:[#allocation4 + $0x45c] sm:$0xf]
    %v1631 = vld [vmem:[#allocation4 + $0x460] sm:$0xff]
    %v1632 = vld [vmem:[#allocation4 + $0x468] sm:$0xff]
    %v1633 = vld [vmem:[#allocation4 + $0x470] sm:$0xf]
    %v1634 = vld [vmem:[#allocation4 + $0x474] sm:$0xff]
    %v1635 = vld [vmem:[#allocation4 + $0x47c] sm:$0xff]
    %v1636 = vld [vmem:[#allocation4 + $0x484] sm:$0xf]
    %v1637 = vld [vmem:[#allocation4 + $0x488] sm:$0xff]
    %v1638 = vld [vmem:[#allocation4 + $0x490] sm:$0xff]
    %v1639 = vld [vmem:[#allocation4 + $0x498] sm:$0xf]
    %v1640 = vld [vmem:[#allocation4 + $0x49c] sm:$0xff]
    %v1641 = vld [vmem:[#allocation4 + $0x4a4] sm:$0xff]
    %v1642 = vld [vmem:[#allocation4 + $0x4ac] sm:$0xf]
    %v1643 = vld [vmem:[#allocation4 + $0x4b0] sm:$0xff]
    %v1644 = vld [vmem:[#allocation4 + $0x4b8] sm:$0xff]
    %v1645 = vld [vmem:[#allocation4 + $0x4c0] sm:$0xf]
    %v1646 = vld [vmem:[#allocation4 + $0x4c4] sm:$0xff]
    %v1647 = vld [vmem:[#allocation4 + $0x4cc] sm:$0xff]
    %v1648 = vld [vmem:[#allocation4 + $0x4d4] sm:$0xf]
    %v1649 = vld [vmem:[#allocation4 + $0x4d8] sm:$0xff]
    %v1650 = vld [vmem:[#allocation4 + $0x4e0] sm:$0xff]
    %v1651 = vld [vmem:[#allocation4 + $0x4e8] sm:$0xf]
    %v1652 = vld [vmem:[#allocation4 + $0x4ec] sm:$0xff]
    %v1653 = vld [vmem:[#allocation4 + $0x4f4] sm:$0xff]
    %v1654 = vld [vmem:[#allocation4 + $0x4fc] sm:$0xf]
    %v1655 = vld [vmem:[#allocation12] sm:$0x1f]
    %v1657 = vperm.slane %v1655, 0
    %v1658 = vperm.slane %v1655, 1
    %v1659 = vperm.slane %v1655, 2
    %v1660 = vperm.slane %v1655, 3
    %v1661 = vperm.slane %v1655, 4
    %v1859 = vunpack.c.l.b16 %v1463
    %v1860 = vunpack.c.h.b16 %v1463
    %v1861 = vunpack.c.l.b16 %v1464
    %v1862 = vunpack.c.h.b16 %v1464
    %v1863 = vunpack.c.l.b16 %v1465
    %v1864 = vunpack.c.l.b16 %v1466
    %v1865 = vunpack.c.h.b16 %v1466
    %v1866 = vunpack.c.l.b16 %v1467
    %v1867 = vunpack.c.h.b16 %v1467
    %v1868 = vunpack.c.l.b16 %v1468
    %v1869 = vunpack.c.l.b16 %v1469
    %v1870 = vunpack.c.h.b16 %v1469
    %v1871 = vunpack.c.l.b16 %v1470
    %v1872 = vunpack.c.h.b16 %v1470
    %v1873 = vunpack.c.l.b16 %v1471
    %v1874 = vunpack.c.l.b16 %v1472
    %v1875 = vunpack.c.h.b16 %v1472
    %v1876 = vunpack.c.l.b16 %v1473
    %v1877 = vunpack.c.h.b16 %v1473
    %v1878 = vunpack.c.l.b16 %v1474
    %v1879 = vunpack.c.l.b16 %v1475
    %v1880 = vunpack.c.h.b16 %v1475
    %v1881 = vunpack.c.l.b16 %v1476
    %v1882 = vunpack.c.h.b16 %v1476
    %v1883 = vunpack.c.l.b16 %v1477
    %v1884 = vunpack.c.l.b16 %v1478
    %v1885 = vunpack.c.h.b16 %v1478
    %v1886 = vunpack.c.l.b16 %v1479
    %v1887 = vunpack.c.h.b16 %v1479
    %v1888 = vunpack.c.l.b16 %v1480
    %v1889 = vunpack.c.l.b16 %v1481
    %v1890 = vunpack.c.h.b16 %v1481
    %v1891 = vunpack.c.l.b16 %v1482
    %v1892 = vunpack.c.h.b16 %v1482
    %v1893 = vunpack.c.l.b16 %v1483
    %v1894 = vunpack.c.l.b16 %v1484
    %v1895 = vunpack.c.h.b16 %v1484
    %v1896 = vunpack.c.l.b16 %v1485
    %v1897 = vunpack.c.h.b16 %v1485
    %v1898 = vunpack.c.l.b16 %v1486
    %v1899 = vunpack.c.l.b16 %v1487
    %v1900 = vunpack.c.h.b16 %v1487
    %v1901 = vunpack.c.l.b16 %v1488
    %v1902 = vunpack.c.h.b16 %v1488
    %v1903 = vunpack.c.l.b16 %v1489
    %v1904 = vunpack.c.l.b16 %v1490
    %v1905 = vunpack.c.h.b16 %v1490
    %v1906 = vunpack.c.l.b16 %v1491
    %v1907 = vunpack.c.h.b16 %v1491
    %v1908 = vunpack.c.l.b16 %v1492
    %v1909 = vunpack.c.l.b16 %v1493
    %v1910 = vunpack.c.h.b16 %v1493
    %v1911 = vunpack.c.l.b16 %v1494
    %v1912 = vunpack.c.h.b16 %v1494
    %v1913 = vunpack.c.l.b16 %v1495
    %v1914 = vunpack.c.l.b16 %v1496
    %v1915 = vunpack.c.h.b16 %v1496
    %v1916 = vunpack.c.l.b16 %v1497
    %v1917 = vunpack.c.h.b16 %v1497
    %v1918 = vunpack.c.l.b16 %v1498
    %v1919 = vunpack.c.l.b16 %v1499
    %v1920 = vunpack.c.h.b16 %v1499
    %v1921 = vunpack.c.l.b16 %v1500
    %v1922 = vunpack.c.h.b16 %v1500
    %v1923 = vunpack.c.l.b16 %v1501
    %v1924 = vunpack.c.l.b16 %v1502
    %v1925 = vunpack.c.h.b16 %v1502
    %v1926 = vunpack.c.l.b16 %v1503
    %v1927 = vunpack.c.h.b16 %v1503
    %v1928 = vunpack.c.l.b16 %v1504
    %v1929 = vunpack.c.l.b16 %v1505
    %v1930 = vunpack.c.h.b16 %v1505
    %v1931 = vunpack.c.l.b16 %v1506
    %v1932 = vunpack.c.h.b16 %v1506
    %v1933 = vunpack.c.l.b16 %v1507
    %v1934 = vunpack.c.l.b16 %v1508
    %v1935 = vunpack.c.h.b16 %v1508
    %v1936 = vunpack.c.l.b16 %v1509
    %v1937 = vunpack.c.h.b16 %v1509
    %v1938 = vunpack.c.l.b16 %v1510
    %v1939 = vunpack.c.l.b16 %v1511
    %v1940 = vunpack.c.h.b16 %v1511
    %v1941 = vunpack.c.l.b16 %v1512
    %v1942 = vunpack.c.h.b16 %v1512
    %v1943 = vunpack.c.l.b16 %v1513
    %v1944 = vunpack.c.l.b16 %v1514
    %v1945 = vunpack.c.h.b16 %v1514
    %v1946 = vunpack.c.l.b16 %v1515
    %v1947 = vunpack.c.h.b16 %v1515
    %v1948 = vunpack.c.l.b16 %v1516
    %v1949 = vunpack.c.l.b16 %v1517
    %v1950 = vunpack.c.h.b16 %v1517
    %v1951 = vunpack.c.l.b16 %v1518
    %v1952 = vunpack.c.h.b16 %v1518
    %v1953 = vunpack.c.l.b16 %v1519
    %v1954 = vunpack.c.l.b16 %v1520
    %v1955 = vunpack.c.h.b16 %v1520
    %v1956 = vunpack.c.l.b16 %v1521
    %v1957 = vunpack.c.h.b16 %v1521
    %v1958 = vunpack.c.l.b16 %v1522
    %v1959 = vunpack.c.l.b16 %v1523
    %v1960 = vunpack.c.h.b16 %v1523
    %v1961 = vunpack.c.l.b16 %v1524
    %v1962 = vunpack.c.h.b16 %v1524
    %v1963 = vunpack.c.l.b16 %v1525
    %v1964 = vunpack.c.l.b16 %v1526
    %v1965 = vunpack.c.h.b16 %v1526
    %v1966 = vunpack.c.l.b16 %v1527
    %v1967 = vunpack.c.h.b16 %v1527
    %v1968 = vunpack.c.l.b16 %v1528
    %v1969 = vunpack.c.l.b16 %v1529
    %v1970 = vunpack.c.h.b16 %v1529
    %v1971 = vunpack.c.l.b16 %v1530
    %v1972 = vunpack.c.h.b16 %v1530
    %v1973 = vunpack.c.l.b16 %v1531
    %v1974 = vunpack.c.l.b16 %v1532
    %v1975 = vunpack.c.h.b16 %v1532
    %v1976 = vunpack.c.l.b16 %v1533
    %v1977 = vunpack.c.h.b16 %v1533
    %v1978 = vunpack.c.l.b16 %v1534
    %v1979 = vunpack.c.l.b16 %v1535
    %v1980 = vunpack.c.h.b16 %v1535
    %v1981 = vunpack.c.l.b16 %v1536
    %v1982 = vunpack.c.h.b16 %v1536
    %v1983 = vunpack.c.l.b16 %v1537
    %v1984 = vunpack.c.l.b16 %v1538
    %v1985 = vunpack.c.h.b16 %v1538
    %v1986 = vunpack.c.l.b16 %v1539
    %v1987 = vunpack.c.h.b16 %v1539
    %v1988 = vunpack.c.l.b16 %v1540
    %v1989 = vunpack.c.l.b16 %v1541
    %v1990 = vunpack.c.h.b16 %v1541
    %v1991 = vunpack.c.l.b16 %v1542
    %v1992 = vunpack.c.h.b16 %v1542
    %v1993 = vunpack.c.l.b16 %v1543
    %v1994 = vunpack.c.l.b16 %v1544
    %v1995 = vunpack.c.h.b16 %v1544
    %v1996 = vunpack.c.l.b16 %v1545
    %v1997 = vunpack.c.h.b16 %v1545
    %v1998 = vunpack.c.l.b16 %v1546
    %v1999 = vunpack.c.l.b16 %v1547
    %v2000 = vunpack.c.h.b16 %v1547
    %v2001 = vunpack.c.l.b16 %v1548
    %v2002 = vunpack.c.h.b16 %v1548
    %v2003 = vunpack.c.l.b16 %v1549
    %v2004 = vunpack.c.l.b16 %v1550
    %v2005 = vunpack.c.h.b16 %v1550
    %v2006 = vunpack.c.l.b16 %v1551
    %v2007 = vunpack.c.h.b16 %v1551
    %v2008 = vunpack.c.l.b16 %v1552
    %v2009 = vunpack.c.l.b16 %v1553
    %v2010 = vunpack.c.h.b16 %v1553
    %v2011 = vunpack.c.l.b16 %v1554
    %v2012 = vunpack.c.h.b16 %v1554
    %v2013 = vunpack.c.l.b16 %v1555
    %v2014 = vunpack.c.l.b16 %v1556
    %v2015 = vunpack.c.h.b16 %v1556
    %v2016 = vunpack.c.l.b16 %v1557
    %v2017 = vunpack.c.h.b16 %v1557
    %v2018 = vunpack.c.l.b16 %v1558
    %v2019 = vunpack.c.l.b16 %v1559
    %v2020 = vunpack.c.h.b16 %v1559
    %v2021 = vunpack.c.l.b16 %v1560
    %v2022 = vunpack.c.h.b16 %v1560
    %v2023 = vunpack.c.l.b16 %v1561
    %v2024 = vunpack.c.l.b16 %v1562
    %v2025 = vunpack.c.h.b16 %v1562
    %v2026 = vunpack.c.l.b16 %v1563
    %v2027 = vunpack.c.h.b16 %v1563
    %v2028 = vunpack.c.l.b16 %v1564
    %v2029 = vunpack.c.l.b16 %v1565
    %v2030 = vunpack.c.h.b16 %v1565
    %v2031 = vunpack.c.l.b16 %v1566
    %v2032 = vunpack.c.h.b16 %v1566
    %v2033 = vunpack.c.l.b16 %v1567
    %v2034 = vunpack.c.l.b16 %v1568
    %v2035 = vunpack.c.h.b16 %v1568
    %v2036 = vunpack.c.l.b16 %v1569
    %v2037 = vunpack.c.h.b16 %v1569
    %v2038 = vunpack.c.l.b16 %v1570
    %v2039 = vunpack.c.l.b16 %v1571
    %v2040 = vunpack.c.h.b16 %v1571
    %v2041 = vunpack.c.l.b16 %v1572
    %v2042 = vunpack.c.h.b16 %v1572
    %v2043 = vunpack.c.l.b16 %v1573
    %v2044 = vunpack.c.l.b16 %v1574
    %v2045 = vunpack.c.h.b16 %v1574
    %v2046 = vunpack.c.l.b16 %v1575
    %v2047 = vunpack.c.h.b16 %v1575
    %v2048 = vunpack.c.l.b16 %v1576
    %v2049 = vunpack.c.l.b16 %v1577
    %v2050 = vunpack.c.h.b16 %v1577
    %v2051 = vunpack.c.l.b16 %v1578
    %v2052 = vunpack.c.h.b16 %v1578
    %v2053 = vunpack.c.l.b16 %v1579
    %v2054 = vunpack.c.l.b16 %v1580
    %v2055 = vunpack.c.h.b16 %v1580
    %v2056 = vunpack.c.l.b16 %v1581
    %v2057 = vunpack.c.h.b16 %v1581
    %v2058 = vunpack.c.l.b16 %v1582
    %v2059 = vunpack.c.l.b16 %v1583
    %v2060 = vunpack.c.h.b16 %v1583
    %v2061 = vunpack.c.l.b16 %v1584
    %v2062 = vunpack.c.h.b16 %v1584
    %v2063 = vunpack.c.l.b16 %v1585
    %v2064 = vunpack.c.l.b16 %v1586
    %v2065 = vunpack.c.h.b16 %v1586
    %v2066 = vunpack.c.l.b16 %v1587
    %v2067 = vunpack.c.h.b16 %v1587
    %v2068 = vunpack.c.l.b16 %v1588
    %v2069 = vunpack.c.l.b16 %v1589
    %v2070 = vunpack.c.h.b16 %v1589
    %v2071 = vunpack.c.l.b16 %v1590
    %v2072 = vunpack.c.h.b16 %v1590
    %v2073 = vunpack.c.l.b16 %v1591
    %v2074 = vunpack.c.l.b16 %v1592
    %v2075 = vunpack.c.h.b16 %v1592
    %v2076 = vunpack.c.l.b16 %v1593
    %v2077 = vunpack.c.h.b16 %v1593
    %v2078 = vunpack.c.l.b16 %v1594
    %v2079 = vunpack.c.l.b16 %v1595
    %v2080 = vunpack.c.h.b16 %v1595
    %v2081 = vunpack.c.l.b16 %v1596
    %v2082 = vunpack.c.h.b16 %v1596
    %v2083 = vunpack.c.l.b16 %v1597
    %v2084 = vunpack.c.l.b16 %v1598
    %v2085 = vunpack.c.h.b16 %v1598
    %v2086 = vunpack.c.l.b16 %v1599
    %v2087 = vunpack.c.h.b16 %v1599
    %v2088 = vunpack.c.l.b16 %v1600
    %v2089 = vunpack.c.l.b16 %v1601
    %v2090 = vunpack.c.h.b16 %v1601
    %v2091 = vunpack.c.l.b16 %v1602
    %v2092 = vunpack.c.h.b16 %v1602
    %v2093 = vunpack.c.l.b16 %v1603
    %v2094 = vunpack.c.l.b16 %v1604
    %v2095 = vunpack.c.h.b16 %v1604
    %v2096 = vunpack.c.l.b16 %v1605
    %v2097 = vunpack.c.h.b16 %v1605
    %v2098 = vunpack.c.l.b16 %v1606
    %v2099 = vunpack.c.l.b16 %v1607
    %v2100 = vunpack.c.h.b16 %v1607
    %v2101 = vunpack.c.l.b16 %v1608
    %v2102 = vunpack.c.h.b16 %v1608
    %v2103 = vunpack.c.l.b16 %v1609
    %v2104 = vunpack.c.l.b16 %v1610
    %v2105 = vunpack.c.h.b16 %v1610
    %v2106 = vunpack.c.l.b16 %v1611
    %v2107 = vunpack.c.h.b16 %v1611
    %v2108 = vunpack.c.l.b16 %v1612
    %v2109 = vunpack.c.l.b16 %v1613
    %v2110 = vunpack.c.h.b16 %v1613
    %v2111 = vunpack.c.l.b16 %v1614
    %v2112 = vunpack.c.h.b16 %v1614
    %v2113 = vunpack.c.l.b16 %v1615
    %v2114 = vunpack.c.l.b16 %v1616
    %v2115 = vunpack.c.h.b16 %v1616
    %v2116 = vunpack.c.l.b16 %v1617
    %v2117 = vunpack.c.h.b16 %v1617
    %v2118 = vunpack.c.l.b16 %v1618
    %v2119 = vunpack.c.l.b16 %v1619
    %v2120 = vunpack.c.h.b16 %v1619
    %v2121 = vunpack.c.l.b16 %v1620
    %v2122 = vunpack.c.h.b16 %v1620
    %v2123 = vunpack.c.l.b16 %v1621
    %v2124 = vunpack.c.l.b16 %v1622
    %v2125 = vunpack.c.h.b16 %v1622
    %v2126 = vunpack.c.l.b16 %v1623
    %v2127 = vunpack.c.h.b16 %v1623
    %v2128 = vunpack.c.l.b16 %v1624
    %v2129 = vunpack.c.l.b16 %v1625
    %v2130 = vunpack.c.h.b16 %v1625
    %v2131 = vunpack.c.l.b16 %v1626
    %v2132 = vunpack.c.h.b16 %v1626
    %v2133 = vunpack.c.l.b16 %v1627
    %v2134 = vunpack.c.l.b16 %v1628
    %v2135 = vunpack.c.h.b16 %v1628
    %v2136 = vunpack.c.l.b16 %v1629
    %v2137 = vunpack.c.h.b16 %v1629
    %v2138 = vunpack.c.l.b16 %v1630
    %v2139 = vunpack.c.l.b16 %v1631
    %v2140 = vunpack.c.h.b16 %v1631
    %v2141 = vunpack.c.l.b16 %v1632
    %v2142 = vunpack.c.h.b16 %v1632
    %v2143 = vunpack.c.l.b16 %v1633
    %v2144 = vunpack.c.l.b16 %v1634
    %v2145 = vunpack.c.h.b16 %v1634
    %v2146 = vunpack.c.l.b16 %v1635
    %v2147 = vunpack.c.h.b16 %v1635
    %v2148 = vunpack.c.l.b16 %v1636
    %v2149 = vunpack.c.l.b16 %v1637
    %v2150 = vunpack.c.h.b16 %v1637
    %v2151 = vunpack.c.l.b16 %v1638
    %v2152 = vunpack.c.h.b16 %v1638
    %v2153 = vunpack.c.l.b16 %v1639
    %v2154 = vunpack.c.l.b16 %v1640
    %v2155 = vunpack.c.h.b16 %v1640
    %v2156 = vunpack.c.l.b16 %v1641
    %v2157 = vunpack.c.h.b16 %v1641
    %v2158 = vunpack.c.l.b16 %v1642
    %v2159 = vunpack.c.l.b16 %v1643
    %v2160 = vunpack.c.h.b16 %v1643
    %v2161 = vunpack.c.l.b16 %v1644
    %v2162 = vunpack.c.h.b16 %v1644
    %v2163 = vunpack.c.l.b16 %v1645
    %v2164 = vunpack.c.l.b16 %v1646
    %v2165 = vunpack.c.h.b16 %v1646
    %v2166 = vunpack.c.l.b16 %v1647
    %v2167 = vunpack.c.h.b16 %v1647
    %v2168 = vunpack.c.l.b16 %v1648
    %v2169 = vunpack.c.l.b16 %v1649
    %v2170 = vunpack.c.h.b16 %v1649
    %v2171 = vunpack.c.l.b16 %v1650
    %v2172 = vunpack.c.h.b16 %v1650
    %v2173 = vunpack.c.l.b16 %v1651
    %v2174 = vunpack.c.l.b16 %v1652
    %v2175 = vunpack.c.h.b16 %v1652
    %v2176 = vunpack.c.l.b16 %v1653
    %v2177 = vunpack.c.h.b16 %v1653
    %v2178 = vunpack.c.l.b16 %v1654
    %v2179 = vpack.c.b16 %v1864, %v1859
    %v2180 = vpack.c.b16 %v1865, %v1860
    %v2181 = vpack.c.b16 %v1866, %v1861
    %v2182 = vpack.c.b16 %v1867, %v1862
    %v2183 = vpack.c.b16 %v1868, %v1863
    %v2184 = vpack.c.b16 %v1874, %v1869
    %v2185 = vpack.c.b16 %v1875, %v1870
    %v2186 = vpack.c.b16 %v1876, %v1871
    %v2187 = vpack.c.b16 %v1877, %v1872
    %v2188 = vpack.c.b16 %v1878, %v1873
    %v2189 = vpack.c.b16 %v1884, %v1879
    %v2190 = vpack.c.b16 %v1885, %v1880
    %v2191 = vpack.c.b16 %v1886, %v1881
    %v2192 = vpack.c.b16 %v1887, %v1882
    %v2193 = vpack.c.b16 %v1888, %v1883
    %v2194 = vpack.c.b16 %v1894, %v1889
    %v2195 = vpack.c.b16 %v1895, %v1890
    %v2196 = vpack.c.b16 %v1896, %v1891
    %v2197 = vpack.c.b16 %v1897, %v1892
    %v2198 = vpack.c.b16 %v1898, %v1893
    %v2199 = vpack.c.b16 %v1904, %v1899
    %v2200 = vpack.c.b16 %v1905, %v1900
    %v2201 = vpack.c.b16 %v1906, %v1901
    %v2202 = vpack.c.b16 %v1907, %v1902
    %v2203 = vpack.c.b16 %v1908, %v1903
    %v2204 = vpack.c.b16 %v1914, %v1909
    %v2205 = vpack.c.b16 %v1915, %v1910
    %v2206 = vpack.c.b16 %v1916, %v1911
    %v2207 = vpack.c.b16 %v1917, %v1912
    %v2208 = vpack.c.b16 %v1918, %v1913
    %v2209 = vpack.c.b16 %v1924, %v1919
    %v2210 = vpack.c.b16 %v1925, %v1920
    %v2211 = vpack.c.b16 %v1926, %v1921
    %v2212 = vpack.c.b16 %v1927, %v1922
    %v2213 = vpack.c.b16 %v1928, %v1923
    %v2214 = vpack.c.b16 %v1934, %v1929
    %v2215 = vpack.c.b16 %v1935, %v1930
    %v2216 = vpack.c.b16 %v1936, %v1931
    %v2217 = vpack.c.b16 %v1937, %v1932
    %v2218 = vpack.c.b16 %v1938, %v1933
    %v2219 = vpack.c.b16 %v1944, %v1939
    %v2220 = vpack.c.b16 %v1945, %v1940
    %v2221 = vpack.c.b16 %v1946, %v1941
    %v2222 = vpack.c.b16 %v1947, %v1942
    %v2223 = vpack.c.b16 %v1948, %v1943
    %v2224 = vpack.c.b16 %v1954, %v1949
    %v2225 = vpack.c.b16 %v1955, %v1950
    %v2226 = vpack.c.b16 %v1956, %v1951
    %v2227 = vpack.c.b16 %v1957, %v1952
    %v2228 = vpack.c.b16 %v1958, %v1953
    %v2229 = vpack.c.b16 %v1964, %v1959
    %v2230 = vpack.c.b16 %v1965, %v1960
    %v2231 = vpack.c.b16 %v1966, %v1961
    %v2232 = vpack.c.b16 %v1967, %v1962
    %v2233 = vpack.c.b16 %v1968, %v1963
    %v2234 = vpack.c.b16 %v1974, %v1969
    %v2235 = vpack.c.b16 %v1975, %v1970
    %v2236 = vpack.c.b16 %v1976, %v1971
    %v2237 = vpack.c.b16 %v1977, %v1972
    %v2238 = vpack.c.b16 %v1978, %v1973
    %v2239 = vpack.c.b16 %v1984, %v1979
    %v2240 = vpack.c.b16 %v1985, %v1980
    %v2241 = vpack.c.b16 %v1986, %v1981
    %v2242 = vpack.c.b16 %v1987, %v1982
    %v2243 = vpack.c.b16 %v1988, %v1983
    %v2244 = vpack.c.b16 %v1994, %v1989
    %v2245 = vpack.c.b16 %v1995, %v1990
    %v2246 = vpack.c.b16 %v1996, %v1991
    %v2247 = vpack.c.b16 %v1997, %v1992
    %v2248 = vpack.c.b16 %v1998, %v1993
    %v2249 = vpack.c.b16 %v2004, %v1999
    %v2250 = vpack.c.b16 %v2005, %v2000
    %v2251 = vpack.c.b16 %v2006, %v2001
    %v2252 = vpack.c.b16 %v2007, %v2002
    %v2253 = vpack.c.b16 %v2008, %v2003
    %v2254 = vpack.c.b16 %v2014, %v2009
    %v2255 = vpack.c.b16 %v2015, %v2010
    %v2256 = vpack.c.b16 %v2016, %v2011
    %v2257 = vpack.c.b16 %v2017, %v2012
    %v2258 = vpack.c.b16 %v2018, %v2013
    %v2259 = vpack.c.b16 %v2024, %v2019
    %v2260 = vpack.c.b16 %v2025, %v2020
    %v2261 = vpack.c.b16 %v2026, %v2021
    %v2262 = vpack.c.b16 %v2027, %v2022
    %v2263 = vpack.c.b16 %v2028, %v2023
    %v2264 = vpack.c.b16 %v2034, %v2029
    %v2265 = vpack.c.b16 %v2035, %v2030
    %v2266 = vpack.c.b16 %v2036, %v2031
    %v2267 = vpack.c.b16 %v2037, %v2032
    %v2268 = vpack.c.b16 %v2038, %v2033
    %v2269 = vpack.c.b16 %v2044, %v2039
    %v2270 = vpack.c.b16 %v2045, %v2040
    %v2271 = vpack.c.b16 %v2046, %v2041
    %v2272 = vpack.c.b16 %v2047, %v2042
    %v2273 = vpack.c.b16 %v2048, %v2043
    %v2274 = vpack.c.b16 %v2054, %v2049
    %v2275 = vpack.c.b16 %v2055, %v2050
    %v2276 = vpack.c.b16 %v2056, %v2051
    %v2277 = vpack.c.b16 %v2057, %v2052
    %v2278 = vpack.c.b16 %v2058, %v2053
    %v2279 = vpack.c.b16 %v2064, %v2059
    %v2280 = vpack.c.b16 %v2065, %v2060
    %v2281 = vpack.c.b16 %v2066, %v2061
    %v2282 = vpack.c.b16 %v2067, %v2062
    %v2283 = vpack.c.b16 %v2068, %v2063
    %v2284 = vpack.c.b16 %v2074, %v2069
    %v2285 = vpack.c.b16 %v2075, %v2070
    %v2286 = vpack.c.b16 %v2076, %v2071
    %v2287 = vpack.c.b16 %v2077, %v2072
    %v2288 = vpack.c.b16 %v2078, %v2073
    %v2289 = vpack.c.b16 %v2084, %v2079
    %v2290 = vpack.c.b16 %v2085, %v2080
    %v2291 = vpack.c.b16 %v2086, %v2081
    %v2292 = vpack.c.b16 %v2087, %v2082
    %v2293 = vpack.c.b16 %v2088, %v2083
    %v2294 = vpack.c.b16 %v2094, %v2089
    %v2295 = vpack.c.b16 %v2095, %v2090
    %v2296 = vpack.c.b16 %v2096, %v2091
    %v2297 = vpack.c.b16 %v2097, %v2092
    %v2298 = vpack.c.b16 %v2098, %v2093
    %v2299 = vpack.c.b16 %v2104, %v2099
    %v2300 = vpack.c.b16 %v2105, %v2100
    %v2301 = vpack.c.b16 %v2106, %v2101
    %v2302 = vpack.c.b16 %v2107, %v2102
    %v2303 = vpack.c.b16 %v2108, %v2103
    %v2304 = vpack.c.b16 %v2114, %v2109
    %v2305 = vpack.c.b16 %v2115, %v2110
    %v2306 = vpack.c.b16 %v2116, %v2111
    %v2307 = vpack.c.b16 %v2117, %v2112
    %v2308 = vpack.c.b16 %v2118, %v2113
    %v2309 = vpack.c.b16 %v2124, %v2119
    %v2310 = vpack.c.b16 %v2125, %v2120
    %v2311 = vpack.c.b16 %v2126, %v2121
    %v2312 = vpack.c.b16 %v2127, %v2122
    %v2313 = vpack.c.b16 %v2128, %v2123
    %v2314 = vpack.c.b16 %v2134, %v2129
    %v2315 = vpack.c.b16 %v2135, %v2130
    %v2316 = vpack.c.b16 %v2136, %v2131
    %v2317 = vpack.c.b16 %v2137, %v2132
    %v2318 = vpack.c.b16 %v2138, %v2133
    %v2319 = vpack.c.b16 %v2144, %v2139
    %v2320 = vpack.c.b16 %v2145, %v2140
    %v2321 = vpack.c.b16 %v2146, %v2141
    %v2322 = vpack.c.b16 %v2147, %v2142
    %v2323 = vpack.c.b16 %v2148, %v2143
    %v2324 = vpack.c.b16 %v2154, %v2149
    %v2325 = vpack.c.b16 %v2155, %v2150
    %v2326 = vpack.c.b16 %v2156, %v2151
    %v2327 = vpack.c.b16 %v2157, %v2152
    %v2328 = vpack.c.b16 %v2158, %v2153
    %v2329 = vpack.c.b16 %v2164, %v2159
    %v2330 = vpack.c.b16 %v2165, %v2160
    %v2331 = vpack.c.b16 %v2166, %v2161
    %v2332 = vpack.c.b16 %v2167, %v2162
    %v2333 = vpack.c.b16 %v2168, %v2163
    %v2334 = vpack.c.b16 %v2174, %v2169
    %v2335 = vpack.c.b16 %v2175, %v2170
    %v2336 = vpack.c.b16 %v2176, %v2171
    %v2337 = vpack.c.b16 %v2177, %v2172
    %v2338 = vpack.c.b16 %v2178, %v2173
    %2499 = vmatpush.bf16.msra.mxu0 %v2214
    %2500 = vmatpush.bf16.msra.mxu0 %v2209
    %2501 = vmatpush.bf16.msra.mxu0 %v2204
    %2502 = vmatpush.bf16.msra.mxu0 %v2199
    %2503 = vmatpush.bf16.msra.mxu0 %v2194
    %2504 = vmatpush.bf16.msra.mxu0 %v2189
    %2505 = vmatpush.bf16.msra.mxu0 %v2184
    %2506 = vmatpush.bf16.msra.mxu0 %v2179
    %2507 = vmatmul.bf16.gmra.mxu0 %v1459
    %v2508 = vpop.f32.mrf.mxu0
    %v2509 = vadd.f32 %v1657, %v2508
    %v2510 = vpop.f32.mrf.mxu0
    %v2511 = vadd.f32 %v1657, %v2510
    %2512 = vdwg.mxu0
    %2513 = vmatpush.bf16.msra.mxu0 %v2254
    %2514 = vmatpush.bf16.msra.mxu0 %v2249
    %2515 = vmatpush.bf16.msra.mxu0 %v2244
    %2516 = vmatpush.bf16.msra.mxu0 %v2239
    %2517 = vmatpush.bf16.msra.mxu0 %v2234
    %2518 = vmatpush.bf16.msra.mxu0 %v2229
    %2519 = vmatpush.bf16.msra.mxu0 %v2224
    %2520 = vmatpush.bf16.msra.mxu0 %v2219
    %2521 = vmatmul.bf16.gmra.mxu0 %v1460
    %v2522 = vpop.f32.mrf.mxu0
    %v2523 = vadd.f32 %v2509, %v2522
    %v2524 = vpop.f32.mrf.mxu0
    %v2525 = vadd.f32 %v2511, %v2524
    %2526 = vdwg.mxu0
    %2527 = vmatpush.bf16.msra.mxu0 %v2294
    %2528 = vmatpush.bf16.msra.mxu0 %v2289
    %2529 = vmatpush.bf16.msra.mxu0 %v2284
    %2530 = vmatpush.bf16.msra.mxu0 %v2279
    %2531 = vmatpush.bf16.msra.mxu0 %v2274
    %2532 = vmatpush.bf16.msra.mxu0 %v2269
    %2533 = vmatpush.bf16.msra.mxu0 %v2264
    %2534 = vmatpush.bf16.msra.mxu0 %v2259
    %2535 = vmatmul.bf16.gmra.mxu0 %v1461
    %v2536 = vpop.f32.mrf.mxu0
    %v2537 = vadd.f32 %v2523, %v2536
    %v2538 = vpop.f32.mrf.mxu0
    %v2539 = vadd.f32 %v2525, %v2538
    %2540 = vdwg.mxu0
    %2541 = vmatpush.bf16.msra.mxu0 %v2334
    %2542 = vmatpush.bf16.msra.mxu0 %v2329
    %2543 = vmatpush.bf16.msra.mxu0 %v2324
    %2544 = vmatpush.bf16.msra.mxu0 %v2319
    %2545 = vmatpush.bf16.msra.mxu0 %v2314
    %2546 = vmatpush.bf16.msra.mxu0 %v2309
    %2547 = vmatpush.bf16.msra.mxu0 %v2304
    %2548 = vmatpush.bf16.msra.mxu0 %v2299
    %2549 = vmatmul.bf16.gmra.mxu0 %v1462
    %v2550 = vpop.f32.mrf.mxu0
    %v2551 = vadd.f32 %v2537, %v2550
    %v2552 = vpop.f32.mrf.mxu0
    %v2553 = vadd.f32 %v2539, %v2552
    %2554 = vdwg.mxu0
    %2555 = vmatpush.bf16.msra.mxu0 %v2215
    %2556 = vmatpush.bf16.msra.mxu0 %v2210
    %2557 = vmatpush.bf16.msra.mxu0 %v2205
    %2558 = vmatpush.bf16.msra.mxu0 %v2200
    %2559 = vmatpush.bf16.msra.mxu0 %v2195
    %2560 = vmatpush.bf16.msra.mxu0 %v2190
    %2561 = vmatpush.bf16.msra.mxu0 %v2185
    %2562 = vmatpush.bf16.msra.mxu0 %v2180
    %2563 = vmatmul.bf16.gmra.mxu0 %v1459
    %v2564 = vpop.f32.mrf.mxu0
    %v2565 = vadd.f32 %v1658, %v2564
    %v2566 = vpop.f32.mrf.mxu0
    %v2567 = vadd.f32 %v1658, %v2566
    %2568 = vdwg.mxu0
    %2569 = vmatpush.bf16.msra.mxu0 %v2255
    %2570 = vmatpush.bf16.msra.mxu0 %v2250
    %2571 = vmatpush.bf16.msra.mxu0 %v2245
    %2572 = vmatpush.bf16.msra.mxu0 %v2240
    %2573 = vmatpush.bf16.msra.mxu0 %v2235
    %2574 = vmatpush.bf16.msra.mxu0 %v2230
    %2575 = vmatpush.bf16.msra.mxu0 %v2225
    %2576 = vmatpush.bf16.msra.mxu0 %v2220
    %2577 = vmatmul.bf16.gmra.mxu0 %v1460
    %v2578 = vpop.f32.mrf.mxu0
    %v2579 = vadd.f32 %v2565, %v2578
    %v2580 = vpop.f32.mrf.mxu0
    %v2581 = vadd.f32 %v2567, %v2580
    %2582 = vdwg.mxu0
    %2583 = vmatpush.bf16.msra.mxu0 %v2295
    %2584 = vmatpush.bf16.msra.mxu0 %v2290
    %2585 = vmatpush.bf16.msra.mxu0 %v2285
    %2586 = vmatpush.bf16.msra.mxu0 %v2280
    %2587 = vmatpush.bf16.msra.mxu0 %v2275
    %2588 = vmatpush.bf16.msra.mxu0 %v2270
    %2589 = vmatpush.bf16.msra.mxu0 %v2265
    %2590 = vmatpush.bf16.msra.mxu0 %v2260
    %2591 = vmatmul.bf16.gmra.mxu0 %v1461
    %v2592 = vpop.f32.mrf.mxu0
    %v2593 = vadd.f32 %v2579, %v2592
    %v2594 = vpop.f32.mrf.mxu0
    %v2595 = vadd.f32 %v2581, %v2594
    %2596 = vdwg.mxu0
    %2597 = vmatpush.bf16.msra.mxu0 %v2335
    %2598 = vmatpush.bf16.msra.mxu0 %v2330
    %2599 = vmatpush.bf16.msra.mxu0 %v2325
    %2600 = vmatpush.bf16.msra.mxu0 %v2320
    %2601 = vmatpush.bf16.msra.mxu0 %v2315
    %2602 = vmatpush.bf16.msra.mxu0 %v2310
    %2603 = vmatpush.bf16.msra.mxu0 %v2305
    %2604 = vmatpush.bf16.msra.mxu0 %v2300
    %2605 = vmatmul.bf16.gmra.mxu0 %v1462
    %v2606 = vpop.f32.mrf.mxu0
    %v2607 = vadd.f32 %v2593, %v2606
    %v2608 = vpop.f32.mrf.mxu0
    %v2609 = vadd.f32 %v2595, %v2608
    %2610 = vdwg.mxu0
    %2611 = vmatpush.bf16.msra.mxu0 %v2216
    %2612 = vmatpush.bf16.msra.mxu0 %v2211
    %2613 = vmatpush.bf16.msra.mxu0 %v2206
    %2614 = vmatpush.bf16.msra.mxu0 %v2201
    %2615 = vmatpush.bf16.msra.mxu0 %v2196
    %2616 = vmatpush.bf16.msra.mxu0 %v2191
    %2617 = vmatpush.bf16.msra.mxu0 %v2186
    %2618 = vmatpush.bf16.msra.mxu0 %v2181
    %2619 = vmatmul.bf16.gmra.mxu0 %v1459
    %v2620 = vpop.f32.mrf.mxu0
    %v2621 = vadd.f32 %v1659, %v2620
    %v2622 = vpop.f32.mrf.mxu0
    %v2623 = vadd.f32 %v1659, %v2622
    %2624 = vdwg.mxu0
    %2625 = vmatpush.bf16.msra.mxu0 %v2256
    %2626 = vmatpush.bf16.msra.mxu0 %v2251
    %2627 = vmatpush.bf16.msra.mxu0 %v2246
    %2628 = vmatpush.bf16.msra.mxu0 %v2241
    %2629 = vmatpush.bf16.msra.mxu0 %v2236
    %2630 = vmatpush.bf16.msra.mxu0 %v2231
    %2631 = vmatpush.bf16.msra.mxu0 %v2226
    %2632 = vmatpush.bf16.msra.mxu0 %v2221
    %2633 = vmatmul.bf16.gmra.mxu0 %v1460
    %v2634 = vpop.f32.mrf.mxu0
    %v2635 = vadd.f32 %v2621, %v2634
    %v2636 = vpop.f32.mrf.mxu0
    %v2637 = vadd.f32 %v2623, %v2636
    %2638 = vdwg.mxu0
    %2639 = vmatpush.bf16.msra.mxu0 %v2296
    %2640 = vmatpush.bf16.msra.mxu0 %v2291
    %2641 = vmatpush.bf16.msra.mxu0 %v2286
    %2642 = vmatpush.bf16.msra.mxu0 %v2281
    %2643 = vmatpush.bf16.msra.mxu0 %v2276
    %2644 = vmatpush.bf16.msra.mxu0 %v2271
    %2645 = vmatpush.bf16.msra.mxu0 %v2266
    %2646 = vmatpush.bf16.msra.mxu0 %v2261
    %2647 = vmatmul.bf16.gmra.mxu0 %v1461
    %v2648 = vpop.f32.mrf.mxu0
    %v2649 = vadd.f32 %v2635, %v2648
    %v2650 = vpop.f32.mrf.mxu0
    %v2651 = vadd.f32 %v2637, %v2650
    %2652 = vdwg.mxu0
    %2653 = vmatpush.bf16.msra.mxu0 %v2336
    %2654 = vmatpush.bf16.msra.mxu0 %v2331
    %2655 = vmatpush.bf16.msra.mxu0 %v2326
    %2656 = vmatpush.bf16.msra.mxu0 %v2321
    %2657 = vmatpush.bf16.msra.mxu0 %v2316
    %2658 = vmatpush.bf16.msra.mxu0 %v2311
    %2659 = vmatpush.bf16.msra.mxu0 %v2306
    %2660 = vmatpush.bf16.msra.mxu0 %v2301
    %2661 = vmatmul.bf16.gmra.mxu0 %v1462
    %v2662 = vpop.f32.mrf.mxu0
    %v2663 = vadd.f32 %v2649, %v2662
    %v2664 = vpop.f32.mrf.mxu0
    %v2665 = vadd.f32 %v2651, %v2664
    %2666 = vdwg.mxu0
    %2667 = vmatpush.bf16.msra.mxu0 %v2217
    %2668 = vmatpush.bf16.msra.mxu0 %v2212
    %2669 = vmatpush.bf16.msra.mxu0 %v2207
    %2670 = vmatpush.bf16.msra.mxu0 %v2202
    %2671 = vmatpush.bf16.msra.mxu0 %v2197
    %2672 = vmatpush.bf16.msra.mxu0 %v2192
    %2673 = vmatpush.bf16.msra.mxu0 %v2187
    %2674 = vmatpush.bf16.msra.mxu0 %v2182
    %2675 = vmatmul.bf16.gmra.mxu0 %v1459
    %v2676 = vpop.f32.mrf.mxu0
    %v2677 = vadd.f32 %v1660, %v2676
    %v2678 = vpop.f32.mrf.mxu0
    %v2679 = vadd.f32 %v1660, %v2678
    %2680 = vdwg.mxu0
    %2681 = vmatpush.bf16.msra.mxu0 %v2257
    %2682 = vmatpush.bf16.msra.mxu0 %v2252
    %2683 = vmatpush.bf16.msra.mxu0 %v2247
    %2684 = vmatpush.bf16.msra.mxu0 %v2242
    %2685 = vmatpush.bf16.msra.mxu0 %v2237
    %2686 = vmatpush.bf16.msra.mxu0 %v2232
    %2687 = vmatpush.bf16.msra.mxu0 %v2227
    %2688 = vmatpush.bf16.msra.mxu0 %v2222
    %2689 = vmatmul.bf16.gmra.mxu0 %v1460
    %v2690 = vpop.f32.mrf.mxu0
    %v2691 = vadd.f32 %v2677, %v2690
    %v2692 = vpop.f32.mrf.mxu0
    %v2693 = vadd.f32 %v2679, %v2692
    %2694 = vdwg.mxu0
    %2695 = vmatpush.bf16.msra.mxu0 %v2297
    %2696 = vmatpush.bf16.msra.mxu0 %v2292
    %2697 = vmatpush.bf16.msra.mxu0 %v2287
    %2698 = vmatpush.bf16.msra.mxu0 %v2282
    %2699 = vmatpush.bf16.msra.mxu0 %v2277
    %2700 = vmatpush.bf16.msra.mxu0 %v2272
    %2701 = vmatpush.bf16.msra.mxu0 %v2267
    %2702 = vmatpush.bf16.msra.mxu0 %v2262
    %2703 = vmatmul.bf16.gmra.mxu0 %v1461
    %v2704 = vpop.f32.mrf.mxu0
    %v2705 = vadd.f32 %v2691, %v2704
    %v2706 = vpop.f32.mrf.mxu0
    %v2707 = vadd.f32 %v2693, %v2706
    %2708 = vdwg.mxu0
    %2709 = vmatpush.bf16.msra.mxu0 %v2337
    %2710 = vmatpush.bf16.msra.mxu0 %v2332
    %2711 = vmatpush.bf16.msra.mxu0 %v2327
    %2712 = vmatpush.bf16.msra.mxu0 %v2322
    %2713 = vmatpush.bf16.msra.mxu0 %v2317
    %2714 = vmatpush.bf16.msra.mxu0 %v2312
    %2715 = vmatpush.bf16.msra.mxu0 %v2307
    %2716 = vmatpush.bf16.msra.mxu0 %v2302
    %2717 = vmatmul.bf16.gmra.mxu0 %v1462
    %v2718 = vpop.f32.mrf.mxu0
    %v2719 = vadd.f32 %v2705, %v2718
    %v2720 = vpop.f32.mrf.mxu0
    %v2721 = vadd.f32 %v2707, %v2720
    %2722 = vdwg.mxu0
    %2723 = vmatpush.bf16.msra.mxu0 %v2218
    %2724 = vmatpush.bf16.msra.mxu0 %v2213
    %2725 = vmatpush.bf16.msra.mxu0 %v2208
    %2726 = vmatpush.bf16.msra.mxu0 %v2203
    %2727 = vmatpush.bf16.msra.mxu0 %v2198
    %2728 = vmatpush.bf16.msra.mxu0 %v2193
    %2729 = vmatpush.bf16.msra.mxu0 %v2188
    %2730 = vmatpush.bf16.msra.mxu0 %v2183
    %2731 = vmatmul.bf16.gmra.mxu0 %v1459
    %v2732 = vpop.f32.mrf.mxu0
    %v2733 = vadd.f32 %v1661, %v2732
    %v2734 = vpop.f32.mrf.mxu0
    %v2735 = vadd.f32 %v1661, %v2734
    %2736 = vdwg.mxu0
    %2737 = vmatpush.bf16.msra.mxu0 %v2258
    %2738 = vmatpush.bf16.msra.mxu0 %v2253
    %2739 = vmatpush.bf16.msra.mxu0 %v2248
    %2740 = vmatpush.bf16.msra.mxu0 %v2243
    %2741 = vmatpush.bf16.msra.mxu0 %v2238
    %2742 = vmatpush.bf16.msra.mxu0 %v2233
    %2743 = vmatpush.bf16.msra.mxu0 %v2228
    %2744 = vmatpush.bf16.msra.mxu0 %v2223
    %2745 = vmatmul.bf16.gmra.mxu0 %v1460
    %v2746 = vpop.f32.mrf.mxu0
    %v2747 = vadd.f32 %v2733, %v2746
    %v2748 = vpop.f32.mrf.mxu0
    %v2749 = vadd.f32 %v2735, %v2748
    %2750 = vdwg.mxu0
    %2751 = vmatpush.bf16.msra.mxu0 %v2298
    %2752 = vmatpush.bf16.msra.mxu0 %v2293
    %2753 = vmatpush.bf16.msra.mxu0 %v2288
    %2754 = vmatpush.bf16.msra.mxu0 %v2283
    %2755 = vmatpush.bf16.msra.mxu0 %v2278
    %2756 = vmatpush.bf16.msra.mxu0 %v2273
    %2757 = vmatpush.bf16.msra.mxu0 %v2268
    %2758 = vmatpush.bf16.msra.mxu0 %v2263
    %2759 = vmatmul.bf16.gmra.mxu0 %v1461
    %v2760 = vpop.f32.mrf.mxu0
    %v2761 = vadd.f32 %v2747, %v2760
    %v2762 = vpop.f32.mrf.mxu0
    %v2763 = vadd.f32 %v2749, %v2762
    %2764 = vdwg.mxu0
    %2765 = vmatpush.bf16.msra.mxu0 %v2338
    %2766 = vmatpush.bf16.msra.mxu0 %v2333
    %2767 = vmatpush.bf16.msra.mxu0 %v2328
    %2768 = vmatpush.bf16.msra.mxu0 %v2323
    %2769 = vmatpush.bf16.msra.mxu0 %v2318
    %2770 = vmatpush.bf16.msra.mxu0 %v2313
    %2771 = vmatpush.bf16.msra.mxu0 %v2308
    %2772 = vmatpush.bf16.msra.mxu0 %v2303
    %2773 = vmatmul.bf16.gmra.mxu0 %v1462
    %v2774 = vpop.f32.mrf.mxu0
    %v2775 = vadd.f32 %v2761, %v2774
    %v2776 = vpop.f32.mrf.mxu0
    %v2777 = vadd.f32 %v2763, %v2776
    %2778 = vdwg.mxu0
    %v2779 = vmax.f32 %v2551, 0.0
    %v2780 = vmax.f32 %v2607, 0.0
    %v2781 = vmax.f32 %v2663, 0.0
    %v2782 = vmax.f32 %v2719, 0.0
    %v2783 = vmax.f32 %v2775, 0.0
    %v2784 = vmax.f32 %v2553, 0.0
    %v2785 = vmax.f32 %v2609, 0.0
    %v2786 = vmax.f32 %v2665, 0.0
    %v2787 = vmax.f32 %v2721, 0.0
    %v2788 = vmax.f32 %v2777, 0.0
    %s2789 = smul.u32 4, 80
    %s2790 = smul.u32 %s2789, 7
    %s2791 = sshll.u32 %s2790, 4
    %2792 = dma.done %s137, %s2791
    %v2793 = vpack.c.bf16 %v2784, %v2779
    %v2794 = vpack.c.bf16 %v2785, %v2780
    %v2795 = vpack.c.bf16 %v2786, %v2781
    %v2796 = vpack.c.bf16 %v2787, %v2782
    %v2797 = vpack.c.bf16 %v2788, %v2783
    %v2798 = vld [vmem:[#allocation5] sm:$0xff]
    %v2799 = vld [vmem:[#allocation5 + $0x8] sm:$0xff]
    %v2800 = vld [vmem:[#allocation5 + $0x10] sm:$0xff]
    %v2801 = vld [vmem:[#allocation5 + $0x18] sm:$0xf]
    %v2802 = vld [vmem:[#allocation5 + $0x1c] sm:$0xff]
    %v2803 = vld [vmem:[#allocation5 + $0x24] sm:$0xff]
    %v2804 = vld [vmem:[#allocation5 + $0x2c] sm:$0xff]
    %v2805 = vld [vmem:[#allocation5 + $0x34] sm:$0xf]
    %v2806 = vld [vmem:[#allocation5 + $0x38] sm:$0xff]
    %v2807 = vld [vmem:[#allocation5 + $0x40] sm:$0xff]
    %v2808 = vld [vmem:[#allocation5 + $0x48] sm:$0xff]
    %v2809 = vld [vmem:[#allocation5 + $0x50] sm:$0xf]
    %v2810 = vld [vmem:[#allocation5 + $0x54] sm:$0xff]
    %v2811 = vld [vmem:[#allocation5 + $0x5c] sm:$0xff]
    %v2812 = vld [vmem:[#allocation5 + $0x64] sm:$0xff]
    %v2813 = vld [vmem:[#allocation5 + $0x6c] sm:$0xf]
    %v2814 = vld [vmem:[#allocation5 + $0x70] sm:$0xff]
    %v2815 = vld [vmem:[#allocation5 + $0x78] sm:$0xff]
    %v2816 = vld [vmem:[#allocation5 + $0x80] sm:$0xff]
    %v2817 = vld [vmem:[#allocation5 + $0x88] sm:$0xf]
    %v2818 = vld [vmem:[#allocation5 + $0x8c] sm:$0xff]
    %v2819 = vld [vmem:[#allocation5 + $0x94] sm:$0xff]
    %v2820 = vld [vmem:[#allocation5 + $0x9c] sm:$0xff]
    %v2821 = vld [vmem:[#allocation5 + $0xa4] sm:$0xf]
    %v2822 = vld [vmem:[#allocation5 + $0xa8] sm:$0xff]
    %v2823 = vld [vmem:[#allocation5 + $0xb0] sm:$0xff]
    %v2824 = vld [vmem:[#allocation5 + $0xb8] sm:$0xff]
    %v2825 = vld [vmem:[#allocation5 + $0xc0] sm:$0xf]
    %v2826 = vld [vmem:[#allocation5 + $0xc4] sm:$0xff]
    %v2827 = vld [vmem:[#allocation5 + $0xcc] sm:$0xff]
    %v2828 = vld [vmem:[#allocation5 + $0xd4] sm:$0xff]
    %v2829 = vld [vmem:[#allocation5 + $0xdc] sm:$0xf]
    %v2830 = vld [vmem:[#allocation5 + $0xe0] sm:$0xff]
    %v2831 = vld [vmem:[#allocation5 + $0xe8] sm:$0xff]
    %v2832 = vld [vmem:[#allocation5 + $0xf0] sm:$0xff]
    %v2833 = vld [vmem:[#allocation5 + $0xf8] sm:$0xf]
    %v2834 = vld [vmem:[#allocation5 + $0xfc] sm:$0xff]
    %v2835 = vld [vmem:[#allocation5 + $0x104] sm:$0xff]
    %v2836 = vld [vmem:[#allocation5 + $0x10c] sm:$0xff]
    %v2837 = vld [vmem:[#allocation5 + $0x114] sm:$0xf]
    %v2838 = vld [vmem:[#allocation5 + $0x118] sm:$0xff]
    %v2839 = vld [vmem:[#allocation5 + $0x120] sm:$0xff]
    %v2840 = vld [vmem:[#allocation5 + $0x128] sm:$0xff]
    %v2841 = vld [vmem:[#allocation5 + $0x130] sm:$0xf]
    %v2842 = vld [vmem:[#allocation5 + $0x134] sm:$0xff]
    %v2843 = vld [vmem:[#allocation5 + $0x13c] sm:$0xff]
    %v2844 = vld [vmem:[#allocation5 + $0x144] sm:$0xff]
    %v2845 = vld [vmem:[#allocation5 + $0x14c] sm:$0xf]
    %v2846 = vld [vmem:[#allocation5 + $0x150] sm:$0xff]
    %v2847 = vld [vmem:[#allocation5 + $0x158] sm:$0xff]
    %v2848 = vld [vmem:[#allocation5 + $0x160] sm:$0xff]
    %v2849 = vld [vmem:[#allocation5 + $0x168] sm:$0xf]
    %v2850 = vld [vmem:[#allocation5 + $0x16c] sm:$0xff]
    %v2851 = vld [vmem:[#allocation5 + $0x174] sm:$0xff]
    %v2852 = vld [vmem:[#allocation5 + $0x17c] sm:$0xff]
    %v2853 = vld [vmem:[#allocation5 + $0x184] sm:$0xf]
    %v2854 = vld [vmem:[#allocation5 + $0x188] sm:$0xff]
    %v2855 = vld [vmem:[#allocation5 + $0x190] sm:$0xff]
    %v2856 = vld [vmem:[#allocation5 + $0x198] sm:$0xff]
    %v2857 = vld [vmem:[#allocation5 + $0x1a0] sm:$0xf]
    %v2858 = vld [vmem:[#allocation5 + $0x1a4] sm:$0xff]
    %v2859 = vld [vmem:[#allocation5 + $0x1ac] sm:$0xff]
    %v2860 = vld [vmem:[#allocation5 + $0x1b4] sm:$0xff]
    %v2861 = vld [vmem:[#allocation5 + $0x1bc] sm:$0xf]
    %v2862 = vld [vmem:[#allocation5 + $0x1c0] sm:$0xff]
    %v2863 = vld [vmem:[#allocation5 + $0x1c8] sm:$0xff]
    %v2864 = vld [vmem:[#allocation5 + $0x1d0] sm:$0xff]
    %v2865 = vld [vmem:[#allocation5 + $0x1d8] sm:$0xf]
    %v2866 = vld [vmem:[#allocation5 + $0x1dc] sm:$0xff]
    %v2867 = vld [vmem:[#allocation5 + $0x1e4] sm:$0xff]
    %v2868 = vld [vmem:[#allocation5 + $0x1ec] sm:$0xff]
    %v2869 = vld [vmem:[#allocation5 + $0x1f4] sm:$0xf]
    %v2870 = vld [vmem:[#allocation5 + $0x1f8] sm:$0xff]
    %v2871 = vld [vmem:[#allocation5 + $0x200] sm:$0xff]
    %v2872 = vld [vmem:[#allocation5 + $0x208] sm:$0xff]
    %v2873 = vld [vmem:[#allocation5 + $0x210] sm:$0xf]
    %v2874 = vld [vmem:[#allocation5 + $0x214] sm:$0xff]
    %v2875 = vld [vmem:[#allocation5 + $0x21c] sm:$0xff]
    %v2876 = vld [vmem:[#allocation5 + $0x224] sm:$0xff]
    %v2877 = vld [vmem:[#allocation5 + $0x22c] sm:$0xf]
    %v2878 = vld [vmem:[#allocation5 + $0x230] sm:$0xff]
    %v2879 = vld [vmem:[#allocation5 + $0x238] sm:$0xff]
    %v2880 = vld [vmem:[#allocation5 + $0x240] sm:$0xff]
    %v2881 = vld [vmem:[#allocation5 + $0x248] sm:$0xf]
    %v2882 = vld [vmem:[#allocation5 + $0x24c] sm:$0xff]
    %v2883 = vld [vmem:[#allocation5 + $0x254] sm:$0xff]
    %v2884 = vld [vmem:[#allocation5 + $0x25c] sm:$0xff]
    %v2885 = vld [vmem:[#allocation5 + $0x264] sm:$0xf]
    %v2886 = vld [vmem:[#allocation5 + $0x268] sm:$0xff]
    %v2887 = vld [vmem:[#allocation5 + $0x270] sm:$0xff]
    %v2888 = vld [vmem:[#allocation5 + $0x278] sm:$0xff]
    %v2889 = vld [vmem:[#allocation5 + $0x280] sm:$0xf]
    %v2890 = vld [vmem:[#allocation5 + $0x284] sm:$0xff]
    %v2891 = vld [vmem:[#allocation5 + $0x28c] sm:$0xff]
    %v2892 = vld [vmem:[#allocation5 + $0x294] sm:$0xff]
    %v2893 = vld [vmem:[#allocation5 + $0x29c] sm:$0xf]
    %v2894 = vld [vmem:[#allocation5 + $0x2a0] sm:$0xff]
    %v2895 = vld [vmem:[#allocation5 + $0x2a8] sm:$0xff]
    %v2896 = vld [vmem:[#allocation5 + $0x2b0] sm:$0xff]
    %v2897 = vld [vmem:[#allocation5 + $0x2b8] sm:$0xf]
    %v2898 = vld [vmem:[#allocation5 + $0x2bc] sm:$0xff]
    %v2899 = vld [vmem:[#allocation5 + $0x2c4] sm:$0xff]
    %v2900 = vld [vmem:[#allocation5 + $0x2cc] sm:$0xff]
    %v2901 = vld [vmem:[#allocation5 + $0x2d4] sm:$0xf]
    %v2902 = vld [vmem:[#allocation5 + $0x2d8] sm:$0xff]
    %v2903 = vld [vmem:[#allocation5 + $0x2e0] sm:$0xff]
    %v2904 = vld [vmem:[#allocation5 + $0x2e8] sm:$0xff]
    %v2905 = vld [vmem:[#allocation5 + $0x2f0] sm:$0xf]
    %v2906 = vld [vmem:[#allocation5 + $0x2f4] sm:$0xff]
    %v2907 = vld [vmem:[#allocation5 + $0x2fc] sm:$0xff]
    %v2908 = vld [vmem:[#allocation5 + $0x304] sm:$0xff]
    %v2909 = vld [vmem:[#allocation5 + $0x30c] sm:$0xf]
    %v2910 = vld [vmem:[#allocation5 + $0x310] sm:$0xff]
    %v2911 = vld [vmem:[#allocation5 + $0x318] sm:$0xff]
    %v2912 = vld [vmem:[#allocation5 + $0x320] sm:$0xff]
    %v2913 = vld [vmem:[#allocation5 + $0x328] sm:$0xf]
    %v2914 = vld [vmem:[#allocation5 + $0x32c] sm:$0xff]
    %v2915 = vld [vmem:[#allocation5 + $0x334] sm:$0xff]
    %v2916 = vld [vmem:[#allocation5 + $0x33c] sm:$0xff]
    %v2917 = vld [vmem:[#allocation5 + $0x344] sm:$0xf]
    %v2918 = vld [vmem:[#allocation5 + $0x348] sm:$0xff]
    %v2919 = vld [vmem:[#allocation5 + $0x350] sm:$0xff]
    %v2920 = vld [vmem:[#allocation5 + $0x358] sm:$0xff]
    %v2921 = vld [vmem:[#allocation5 + $0x360] sm:$0xf]
    %v2922 = vld [vmem:[#allocation5 + $0x364] sm:$0xff]
    %v2923 = vld [vmem:[#allocation5 + $0x36c] sm:$0xff]
    %v2924 = vld [vmem:[#allocation5 + $0x374] sm:$0xff]
    %v2925 = vld [vmem:[#allocation5 + $0x37c] sm:$0xf]
    %v2926 = vld [vmem:[#allocation5 + $0x380] sm:$0xff]
    %v2927 = vld [vmem:[#allocation5 + $0x388] sm:$0xff]
    %v2928 = vld [vmem:[#allocation5 + $0x390] sm:$0xff]
    %v2929 = vld [vmem:[#allocation5 + $0x398] sm:$0xf]
    %v2930 = vld [vmem:[#allocation5 + $0x39c] sm:$0xff]
    %v2931 = vld [vmem:[#allocation5 + $0x3a4] sm:$0xff]
    %v2932 = vld [vmem:[#allocation5 + $0x3ac] sm:$0xff]
    %v2933 = vld [vmem:[#allocation5 + $0x3b4] sm:$0xf]
    %v2934 = vld [vmem:[#allocation5 + $0x3b8] sm:$0xff]
    %v2935 = vld [vmem:[#allocation5 + $0x3c0] sm:$0xff]
    %v2936 = vld [vmem:[#allocation5 + $0x3c8] sm:$0xff]
    %v2937 = vld [vmem:[#allocation5 + $0x3d0] sm:$0xf]
    %v2938 = vld [vmem:[#allocation5 + $0x3d4] sm:$0xff]
    %v2939 = vld [vmem:[#allocation5 + $0x3dc] sm:$0xff]
    %v2940 = vld [vmem:[#allocation5 + $0x3e4] sm:$0xff]
    %v2941 = vld [vmem:[#allocation5 + $0x3ec] sm:$0xf]
    %v2942 = vld [vmem:[#allocation5 + $0x3f0] sm:$0xff]
    %v2943 = vld [vmem:[#allocation5 + $0x3f8] sm:$0xff]
    %v2944 = vld [vmem:[#allocation5 + $0x400] sm:$0xff]
    %v2945 = vld [vmem:[#allocation5 + $0x408] sm:$0xf]
    %v2946 = vld [vmem:[#allocation5 + $0x40c] sm:$0xff]
    %v2947 = vld [vmem:[#allocation5 + $0x414] sm:$0xff]
    %v2948 = vld [vmem:[#allocation5 + $0x41c] sm:$0xff]
    %v2949 = vld [vmem:[#allocation5 + $0x424] sm:$0xf]
    %v2950 = vld [vmem:[#allocation5 + $0x428] sm:$0xff]
    %v2951 = vld [vmem:[#allocation5 + $0x430] sm:$0xff]
    %v2952 = vld [vmem:[#allocation5 + $0x438] sm:$0xff]
    %v2953 = vld [vmem:[#allocation5 + $0x440] sm:$0xf]
    %v2954 = vld [vmem:[#allocation5 + $0x444] sm:$0xff]
    %v2955 = vld [vmem:[#allocation5 + $0x44c] sm:$0xff]
    %v2956 = vld [vmem:[#allocation5 + $0x454] sm:$0xff]
    %v2957 = vld [vmem:[#allocation5 + $0x45c] sm:$0xf]
    %v2958 = vld [vmem:[#allocation5 + $0x460] sm:$0xff]
    %v2959 = vld [vmem:[#allocation5 + $0x468] sm:$0xff]
    %v2960 = vld [vmem:[#allocation5 + $0x470] sm:$0xff]
    %v2961 = vld [vmem:[#allocation5 + $0x478] sm:$0xf]
    %v2962 = vld [vmem:[#allocation5 + $0x47c] sm:$0xff]
    %v2963 = vld [vmem:[#allocation5 + $0x484] sm:$0xff]
    %v2964 = vld [vmem:[#allocation5 + $0x48c] sm:$0xff]
    %v2965 = vld [vmem:[#allocation5 + $0x494] sm:$0xf]
    %v2966 = vld [vmem:[#allocation5 + $0x498] sm:$0xff]
    %v2967 = vld [vmem:[#allocation5 + $0x4a0] sm:$0xff]
    %v2968 = vld [vmem:[#allocation5 + $0x4a8] sm:$0xff]
    %v2969 = vld [vmem:[#allocation5 + $0x4b0] sm:$0xf]
    %v2970 = vld [vmem:[#allocation5 + $0x4b4] sm:$0xff]
    %v2971 = vld [vmem:[#allocation5 + $0x4bc] sm:$0xff]
    %v2972 = vld [vmem:[#allocation5 + $0x4c4] sm:$0xff]
    %v2973 = vld [vmem:[#allocation5 + $0x4cc] sm:$0xf]
    %v2974 = vld [vmem:[#allocation5 + $0x4d0] sm:$0xff]
    %v2975 = vld [vmem:[#allocation5 + $0x4d8] sm:$0xff]
    %v2976 = vld [vmem:[#allocation5 + $0x4e0] sm:$0xff]
    %v2977 = vld [vmem:[#allocation5 + $0x4e8] sm:$0xf]
    %v2978 = vld [vmem:[#allocation5 + $0x4ec] sm:$0xff]
    %v2979 = vld [vmem:[#allocation5 + $0x4f4] sm:$0xff]
    %v2980 = vld [vmem:[#allocation5 + $0x4fc] sm:$0xff]
    %v2981 = vld [vmem:[#allocation5 + $0x504] sm:$0xf]
    %v2982 = vld [vmem:[#allocation5 + $0x508] sm:$0xff]
    %v2983 = vld [vmem:[#allocation5 + $0x510] sm:$0xff]
    %v2984 = vld [vmem:[#allocation5 + $0x518] sm:$0xff]
    %v2985 = vld [vmem:[#allocation5 + $0x520] sm:$0xf]
    %v2986 = vld [vmem:[#allocation5 + $0x524] sm:$0xff]
    %v2987 = vld [vmem:[#allocation5 + $0x52c] sm:$0xff]
    %v2988 = vld [vmem:[#allocation5 + $0x534] sm:$0xff]
    %v2989 = vld [vmem:[#allocation5 + $0x53c] sm:$0xf]
    %v2990 = vld [vmem:[#allocation5 + $0x540] sm:$0xff]
    %v2991 = vld [vmem:[#allocation5 + $0x548] sm:$0xff]
    %v2992 = vld [vmem:[#allocation5 + $0x550] sm:$0xff]
    %v2993 = vld [vmem:[#allocation5 + $0x558] sm:$0xf]
    %v2994 = vld [vmem:[#allocation5 + $0x55c] sm:$0xff]
    %v2995 = vld [vmem:[#allocation5 + $0x564] sm:$0xff]
    %v2996 = vld [vmem:[#allocation5 + $0x56c] sm:$0xff]
    %v2997 = vld [vmem:[#allocation5 + $0x574] sm:$0xf]
    %v2998 = vld [vmem:[#allocation5 + $0x578] sm:$0xff]
    %v2999 = vld [vmem:[#allocation5 + $0x580] sm:$0xff]
    %v3000 = vld [vmem:[#allocation5 + $0x588] sm:$0xff]
    %v3001 = vld [vmem:[#allocation5 + $0x590] sm:$0xf]
    %v3002 = vld [vmem:[#allocation5 + $0x594] sm:$0xff]
    %v3003 = vld [vmem:[#allocation5 + $0x59c] sm:$0xff]
    %v3004 = vld [vmem:[#allocation5 + $0x5a4] sm:$0xff]
    %v3005 = vld [vmem:[#allocation5 + $0x5ac] sm:$0xf]
    %v3006 = vld [vmem:[#allocation5 + $0x5b0] sm:$0xff]
    %v3007 = vld [vmem:[#allocation5 + $0x5b8] sm:$0xff]
    %v3008 = vld [vmem:[#allocation5 + $0x5c0] sm:$0xff]
    %v3009 = vld [vmem:[#allocation5 + $0x5c8] sm:$0xf]
    %v3010 = vld [vmem:[#allocation5 + $0x5cc] sm:$0xff]
    %v3011 = vld [vmem:[#allocation5 + $0x5d4] sm:$0xff]
    %v3012 = vld [vmem:[#allocation5 + $0x5dc] sm:$0xff]
    %v3013 = vld [vmem:[#allocation5 + $0x5e4] sm:$0xf]
    %v3014 = vld [vmem:[#allocation5 + $0x5e8] sm:$0xff]
    %v3015 = vld [vmem:[#allocation5 + $0x5f0] sm:$0xff]
    %v3016 = vld [vmem:[#allocation5 + $0x5f8] sm:$0xff]
    %v3017 = vld [vmem:[#allocation5 + $0x600] sm:$0xf]
    %v3018 = vld [vmem:[#allocation5 + $0x604] sm:$0xff]
    %v3019 = vld [vmem:[#allocation5 + $0x60c] sm:$0xff]
    %v3020 = vld [vmem:[#allocation5 + $0x614] sm:$0xff]
    %v3021 = vld [vmem:[#allocation5 + $0x61c] sm:$0xf]
    %v3022 = vld [vmem:[#allocation5 + $0x620] sm:$0xff]
    %v3023 = vld [vmem:[#allocation5 + $0x628] sm:$0xff]
    %v3024 = vld [vmem:[#allocation5 + $0x630] sm:$0xff]
    %v3025 = vld [vmem:[#allocation5 + $0x638] sm:$0xf]
    %v3026 = vld [vmem:[#allocation5 + $0x63c] sm:$0xff]
    %v3027 = vld [vmem:[#allocation5 + $0x644] sm:$0xff]
    %v3028 = vld [vmem:[#allocation5 + $0x64c] sm:$0xff]
    %v3029 = vld [vmem:[#allocation5 + $0x654] sm:$0xf]
    %v3030 = vld [vmem:[#allocation5 + $0x658] sm:$0xff]
    %v3031 = vld [vmem:[#allocation5 + $0x660] sm:$0xff]
    %v3032 = vld [vmem:[#allocation5 + $0x668] sm:$0xff]
    %v3033 = vld [vmem:[#allocation5 + $0x670] sm:$0xf]
    %v3034 = vld [vmem:[#allocation5 + $0x674] sm:$0xff]
    %v3035 = vld [vmem:[#allocation5 + $0x67c] sm:$0xff]
    %v3036 = vld [vmem:[#allocation5 + $0x684] sm:$0xff]
    %v3037 = vld [vmem:[#allocation5 + $0x68c] sm:$0xf]
    %v3038 = vld [vmem:[#allocation5 + $0x690] sm:$0xff]
    %v3039 = vld [vmem:[#allocation5 + $0x698] sm:$0xff]
    %v3040 = vld [vmem:[#allocation5 + $0x6a0] sm:$0xff]
    %v3041 = vld [vmem:[#allocation5 + $0x6a8] sm:$0xf]
    %v3042 = vld [vmem:[#allocation5 + $0x6ac] sm:$0xff]
    %v3043 = vld [vmem:[#allocation5 + $0x6b4] sm:$0xff]
    %v3044 = vld [vmem:[#allocation5 + $0x6bc] sm:$0xff]
    %v3045 = vld [vmem:[#allocation5 + $0x6c4] sm:$0xf]
    %v3046 = vld [vmem:[#allocation5 + $0x6c8] sm:$0xff]
    %v3047 = vld [vmem:[#allocation5 + $0x6d0] sm:$0xff]
    %v3048 = vld [vmem:[#allocation5 + $0x6d8] sm:$0xff]
    %v3049 = vld [vmem:[#allocation5 + $0x6e0] sm:$0xf]
    %v3050 = vld [vmem:[#allocation5 + $0x6e4] sm:$0xff]
    %v3051 = vld [vmem:[#allocation5 + $0x6ec] sm:$0xff]
    %v3052 = vld [vmem:[#allocation5 + $0x6f4] sm:$0xff]
    %v3053 = vld [vmem:[#allocation5 + $0x6fc] sm:$0xf]
    %v3054 = vld [vmem:[#allocation5 + $0x700] sm:$0xff]
    %v3055 = vld [vmem:[#allocation5 + $0x708] sm:$0xff]
    %v3056 = vld [vmem:[#allocation5 + $0x710] sm:$0xff]
    %v3057 = vld [vmem:[#allocation5 + $0x718] sm:$0xf]
    %v3058 = vld [vmem:[#allocation5 + $0x71c] sm:$0xff]
    %v3059 = vld [vmem:[#allocation5 + $0x724] sm:$0xff]
    %v3060 = vld [vmem:[#allocation5 + $0x72c] sm:$0xff]
    %v3061 = vld [vmem:[#allocation5 + $0x734] sm:$0xf]
    %v3062 = vld [vmem:[#allocation5 + $0x738] sm:$0xff]
    %v3063 = vld [vmem:[#allocation5 + $0x740] sm:$0xff]
    %v3064 = vld [vmem:[#allocation5 + $0x748] sm:$0xff]
    %v3065 = vld [vmem:[#allocation5 + $0x750] sm:$0xf]
    %v3066 = vld [vmem:[#allocation5 + $0x754] sm:$0xff]
    %v3067 = vld [vmem:[#allocation5 + $0x75c] sm:$0xff]
    %v3068 = vld [vmem:[#allocation5 + $0x764] sm:$0xff]
    %v3069 = vld [vmem:[#allocation5 + $0x76c] sm:$0xf]
    %v3070 = vld [vmem:[#allocation5 + $0x770] sm:$0xff]
    %v3071 = vld [vmem:[#allocation5 + $0x778] sm:$0xff]
    %v3072 = vld [vmem:[#allocation5 + $0x780] sm:$0xff]
    %v3073 = vld [vmem:[#allocation5 + $0x788] sm:$0xf]
    %v3074 = vld [vmem:[#allocation5 + $0x78c] sm:$0xff]
    %v3075 = vld [vmem:[#allocation5 + $0x794] sm:$0xff]
    %v3076 = vld [vmem:[#allocation5 + $0x79c] sm:$0xff]
    %v3077 = vld [vmem:[#allocation5 + $0x7a4] sm:$0xf]
    %v3078 = vld [vmem:[#allocation5 + $0x7a8] sm:$0xff]
    %v3079 = vld [vmem:[#allocation5 + $0x7b0] sm:$0xff]
    %v3080 = vld [vmem:[#allocation5 + $0x7b8] sm:$0xff]
    %v3081 = vld [vmem:[#allocation5 + $0x7c0] sm:$0xf]
    %v3082 = vld [vmem:[#allocation5 + $0x7c4] sm:$0xff]
    %v3083 = vld [vmem:[#allocation5 + $0x7cc] sm:$0xff]
    %v3084 = vld [vmem:[#allocation5 + $0x7d4] sm:$0xff]
    %v3085 = vld [vmem:[#allocation5 + $0x7dc] sm:$0xf]
    %v3086 = vld [vmem:[#allocation5 + $0x7e0] sm:$0xff]
    %v3087 = vld [vmem:[#allocation5 + $0x7e8] sm:$0xff]
    %v3088 = vld [vmem:[#allocation5 + $0x7f0] sm:$0xff]
    %v3089 = vld [vmem:[#allocation5 + $0x7f8] sm:$0xf]
    %v3090 = vld [vmem:[#allocation5 + $0x7fc] sm:$0xff]
    %v3091 = vld [vmem:[#allocation5 + $0x804] sm:$0xff]
    %v3092 = vld [vmem:[#allocation5 + $0x80c] sm:$0xff]
    %v3093 = vld [vmem:[#allocation5 + $0x814] sm:$0xf]
    %v3094 = vld [vmem:[#allocation5 + $0x818] sm:$0xff]
    %v3095 = vld [vmem:[#allocation5 + $0x820] sm:$0xff]
    %v3096 = vld [vmem:[#allocation5 + $0x828] sm:$0xff]
    %v3097 = vld [vmem:[#allocation5 + $0x830] sm:$0xf]
    %v3098 = vld [vmem:[#allocation5 + $0x834] sm:$0xff]
    %v3099 = vld [vmem:[#allocation5 + $0x83c] sm:$0xff]
    %v3100 = vld [vmem:[#allocation5 + $0x844] sm:$0xff]
    %v3101 = vld [vmem:[#allocation5 + $0x84c] sm:$0xf]
    %v3102 = vld [vmem:[#allocation5 + $0x850] sm:$0xff]
    %v3103 = vld [vmem:[#allocation5 + $0x858] sm:$0xff]
    %v3104 = vld [vmem:[#allocation5 + $0x860] sm:$0xff]
    %v3105 = vld [vmem:[#allocation5 + $0x868] sm:$0xf]
    %v3106 = vld [vmem:[#allocation5 + $0x86c] sm:$0xff]
    %v3107 = vld [vmem:[#allocation5 + $0x874] sm:$0xff]
    %v3108 = vld [vmem:[#allocation5 + $0x87c] sm:$0xff]
    %v3109 = vld [vmem:[#allocation5 + $0x884] sm:$0xf]
    %v3110 = vld [vmem:[#allocation5 + $0x888] sm:$0xff]
    %v3111 = vld [vmem:[#allocation5 + $0x890] sm:$0xff]
    %v3112 = vld [vmem:[#allocation5 + $0x898] sm:$0xff]
    %v3113 = vld [vmem:[#allocation5 + $0x8a0] sm:$0xf]
    %v3114 = vld [vmem:[#allocation5 + $0x8a4] sm:$0xff]
    %v3115 = vld [vmem:[#allocation5 + $0x8ac] sm:$0xff]
    %v3116 = vld [vmem:[#allocation5 + $0x8b4] sm:$0xff]
    %v3117 = vld [vmem:[#allocation5 + $0x8bc] sm:$0xf]
    %v3118 = vld [vmem:[#allocation13] sm:$0xff]
    %v3120 = vperm.slane %v3118, 0
    %v3121 = vperm.slane %v3118, 1
    %v3122 = vperm.slane %v3118, 2
    %v3123 = vperm.slane %v3118, 3
    %v3124 = vperm.slane %v3118, 4
    %v3125 = vperm.slane %v3118, 5
    %v3126 = vperm.slane %v3118, 6
    %v3454 = vunpack.c.l.b16 %v2798
    %v3455 = vunpack.c.h.b16 %v2798
    %v3456 = vunpack.c.l.b16 %v2799
    %v3457 = vunpack.c.h.b16 %v2799
    %v3458 = vunpack.c.l.b16 %v2800
    %v3459 = vunpack.c.h.b16 %v2800
    %v3460 = vunpack.c.l.b16 %v2801
    %v3461 = vunpack.c.l.b16 %v2802
    %v3462 = vunpack.c.h.b16 %v2802
    %v3463 = vunpack.c.l.b16 %v2803
    %v3464 = vunpack.c.h.b16 %v2803
    %v3465 = vunpack.c.l.b16 %v2804
    %v3466 = vunpack.c.h.b16 %v2804
    %v3467 = vunpack.c.l.b16 %v2805
    %v3468 = vunpack.c.l.b16 %v2806
    %v3469 = vunpack.c.h.b16 %v2806
    %v3470 = vunpack.c.l.b16 %v2807
    %v3471 = vunpack.c.h.b16 %v2807
    %v3472 = vunpack.c.l.b16 %v2808
    %v3473 = vunpack.c.h.b16 %v2808
    %v3474 = vunpack.c.l.b16 %v2809
    %v3475 = vunpack.c.l.b16 %v2810
    %v3476 = vunpack.c.h.b16 %v2810
    %v3477 = vunpack.c.l.b16 %v2811
    %v3478 = vunpack.c.h.b16 %v2811
    %v3479 = vunpack.c.l.b16 %v2812
    %v3480 = vunpack.c.h.b16 %v2812
    %v3481 = vunpack.c.l.b16 %v2813
    %v3482 = vunpack.c.l.b16 %v2814
    %v3483 = vunpack.c.h.b16 %v2814
    %v3484 = vunpack.c.l.b16 %v2815
    %v3485 = vunpack.c.h.b16 %v2815
    %v3486 = vunpack.c.l.b16 %v2816
    %v3487 = vunpack.c.h.b16 %v2816
    %v3488 = vunpack.c.l.b16 %v2817
    %v3489 = vunpack.c.l.b16 %v2818
    %v3490 = vunpack.c.h.b16 %v2818
    %v3491 = vunpack.c.l.b16 %v2819
    %v3492 = vunpack.c.h.b16 %v2819
    %v3493 = vunpack.c.l.b16 %v2820
    %v3494 = vunpack.c.h.b16 %v2820
    %v3495 = vunpack.c.l.b16 %v2821
    %v3496 = vunpack.c.l.b16 %v2822
    %v3497 = vunpack.c.h.b16 %v2822
    %v3498 = vunpack.c.l.b16 %v2823
    %v3499 = vunpack.c.h.b16 %v2823
    %v3500 = vunpack.c.l.b16 %v2824
    %v3501 = vunpack.c.h.b16 %v2824
    %v3502 = vunpack.c.l.b16 %v2825
    %v3503 = vunpack.c.l.b16 %v2826
    %v3504 = vunpack.c.h.b16 %v2826
    %v3505 = vunpack.c.l.b16 %v2827
    %v3506 = vunpack.c.h.b16 %v2827
    %v3507 = vunpack.c.l.b16 %v2828
    %v3508 = vunpack.c.h.b16 %v2828
    %v3509 = vunpack.c.l.b16 %v2829
    %v3510 = vunpack.c.l.b16 %v2830
    %v3511 = vunpack.c.h.b16 %v2830
    %v3512 = vunpack.c.l.b16 %v2831
    %v3513 = vunpack.c.h.b16 %v2831
    %v3514 = vunpack.c.l.b16 %v2832
    %v3515 = vunpack.c.h.b16 %v2832
    %v3516 = vunpack.c.l.b16 %v2833
    %v3517 = vunpack.c.l.b16 %v2834
    %v3518 = vunpack.c.h.b16 %v2834
    %v3519 = vunpack.c.l.b16 %v2835
    %v3520 = vunpack.c.h.b16 %v2835
    %v3521 = vunpack.c.l.b16 %v2836
    %v3522 = vunpack.c.h.b16 %v2836
    %v3523 = vunpack.c.l.b16 %v2837
    %v3524 = vunpack.c.l.b16 %v2838
    %v3525 = vunpack.c.h.b16 %v2838
    %v3526 = vunpack.c.l.b16 %v2839
    %v3527 = vunpack.c.h.b16 %v2839
    %v3528 = vunpack.c.l.b16 %v2840
    %v3529 = vunpack.c.h.b16 %v2840
    %v3530 = vunpack.c.l.b16 %v2841
    %v3531 = vunpack.c.l.b16 %v2842
    %v3532 = vunpack.c.h.b16 %v2842
    %v3533 = vunpack.c.l.b16 %v2843
    %v3534 = vunpack.c.h.b16 %v2843
    %v3535 = vunpack.c.l.b16 %v2844
    %v3536 = vunpack.c.h.b16 %v2844
    %v3537 = vunpack.c.l.b16 %v2845
    %v3538 = vunpack.c.l.b16 %v2846
    %v3539 = vunpack.c.h.b16 %v2846
    %v3540 = vunpack.c.l.b16 %v2847
    %v3541 = vunpack.c.h.b16 %v2847
    %v3542 = vunpack.c.l.b16 %v2848
    %v3543 = vunpack.c.h.b16 %v2848
    %v3544 = vunpack.c.l.b16 %v2849
    %v3545 = vunpack.c.l.b16 %v2850
    %v3546 = vunpack.c.h.b16 %v2850
    %v3547 = vunpack.c.l.b16 %v2851
    %v3548 = vunpack.c.h.b16 %v2851
    %v3549 = vunpack.c.l.b16 %v2852
    %v3550 = vunpack.c.h.b16 %v2852
    %v3551 = vunpack.c.l.b16 %v2853
    %v3552 = vunpack.c.l.b16 %v2854
    %v3553 = vunpack.c.h.b16 %v2854
    %v3554 = vunpack.c.l.b16 %v2855
    %v3555 = vunpack.c.h.b16 %v2855
    %v3556 = vunpack.c.l.b16 %v2856
    %v3557 = vunpack.c.h.b16 %v2856
    %v3558 = vunpack.c.l.b16 %v2857
    %v3559 = vunpack.c.l.b16 %v2858
    %v3560 = vunpack.c.h.b16 %v2858
    %v3561 = vunpack.c.l.b16 %v2859
    %v3562 = vunpack.c.h.b16 %v2859
    %v3563 = vunpack.c.l.b16 %v2860
    %v3564 = vunpack.c.h.b16 %v2860
    %v3565 = vunpack.c.l.b16 %v2861
    %v3566 = vunpack.c.l.b16 %v2862
    %v3567 = vunpack.c.h.b16 %v2862
    %v3568 = vunpack.c.l.b16 %v2863
    %v3569 = vunpack.c.h.b16 %v2863
    %v3570 = vunpack.c.l.b16 %v2864
    %v3571 = vunpack.c.h.b16 %v2864
    %v3572 = vunpack.c.l.b16 %v2865
    %v3573 = vunpack.c.l.b16 %v2866
    %v3574 = vunpack.c.h.b16 %v2866
    %v3575 = vunpack.c.l.b16 %v2867
    %v3576 = vunpack.c.h.b16 %v2867
    %v3577 = vunpack.c.l.b16 %v2868
    %v3578 = vunpack.c.h.b16 %v2868
    %v3579 = vunpack.c.l.b16 %v2869
    %v3580 = vunpack.c.l.b16 %v2870
    %v3581 = vunpack.c.h.b16 %v2870
    %v3582 = vunpack.c.l.b16 %v2871
    %v3583 = vunpack.c.h.b16 %v2871
    %v3584 = vunpack.c.l.b16 %v2872
    %v3585 = vunpack.c.h.b16 %v2872
    %v3586 = vunpack.c.l.b16 %v2873
    %v3587 = vunpack.c.l.b16 %v2874
    %v3588 = vunpack.c.h.b16 %v2874
    %v3589 = vunpack.c.l.b16 %v2875
    %v3590 = vunpack.c.h.b16 %v2875
    %v3591 = vunpack.c.l.b16 %v2876
    %v3592 = vunpack.c.h.b16 %v2876
    %v3593 = vunpack.c.l.b16 %v2877
    %v3594 = vunpack.c.l.b16 %v2878
    %v3595 = vunpack.c.h.b16 %v2878
    %v3596 = vunpack.c.l.b16 %v2879
    %v3597 = vunpack.c.h.b16 %v2879
    %v3598 = vunpack.c.l.b16 %v2880
    %v3599 = vunpack.c.h.b16 %v2880
    %v3600 = vunpack.c.l.b16 %v2881
    %v3601 = vunpack.c.l.b16 %v2882
    %v3602 = vunpack.c.h.b16 %v2882
    %v3603 = vunpack.c.l.b16 %v2883
    %v3604 = vunpack.c.h.b16 %v2883
    %v3605 = vunpack.c.l.b16 %v2884
    %v3606 = vunpack.c.h.b16 %v2884
    %v3607 = vunpack.c.l.b16 %v2885
    %v3608 = vunpack.c.l.b16 %v2886
    %v3609 = vunpack.c.h.b16 %v2886
    %v3610 = vunpack.c.l.b16 %v2887
    %v3611 = vunpack.c.h.b16 %v2887
    %v3612 = vunpack.c.l.b16 %v2888
    %v3613 = vunpack.c.h.b16 %v2888
    %v3614 = vunpack.c.l.b16 %v2889
    %v3615 = vunpack.c.l.b16 %v2890
    %v3616 = vunpack.c.h.b16 %v2890
    %v3617 = vunpack.c.l.b16 %v2891
    %v3618 = vunpack.c.h.b16 %v2891
    %v3619 = vunpack.c.l.b16 %v2892
    %v3620 = vunpack.c.h.b16 %v2892
    %v3621 = vunpack.c.l.b16 %v2893
    %v3622 = vunpack.c.l.b16 %v2894
    %v3623 = vunpack.c.h.b16 %v2894
    %v3624 = vunpack.c.l.b16 %v2895
    %v3625 = vunpack.c.h.b16 %v2895
    %v3626 = vunpack.c.l.b16 %v2896
    %v3627 = vunpack.c.h.b16 %v2896
    %v3628 = vunpack.c.l.b16 %v2897
    %v3629 = vunpack.c.l.b16 %v2898
    %v3630 = vunpack.c.h.b16 %v2898
    %v3631 = vunpack.c.l.b16 %v2899
    %v3632 = vunpack.c.h.b16 %v2899
    %v3633 = vunpack.c.l.b16 %v2900
    %v3634 = vunpack.c.h.b16 %v2900
    %v3635 = vunpack.c.l.b16 %v2901
    %v3636 = vunpack.c.l.b16 %v2902
    %v3637 = vunpack.c.h.b16 %v2902
    %v3638 = vunpack.c.l.b16 %v2903
    %v3639 = vunpack.c.h.b16 %v2903
    %v3640 = vunpack.c.l.b16 %v2904
    %v3641 = vunpack.c.h.b16 %v2904
    %v3642 = vunpack.c.l.b16 %v2905
    %v3643 = vunpack.c.l.b16 %v2906
    %v3644 = vunpack.c.h.b16 %v2906
    %v3645 = vunpack.c.l.b16 %v2907
    %v3646 = vunpack.c.h.b16 %v2907
    %v3647 = vunpack.c.l.b16 %v2908
    %v3648 = vunpack.c.h.b16 %v2908
    %v3649 = vunpack.c.l.b16 %v2909
    %v3650 = vunpack.c.l.b16 %v2910
    %v3651 = vunpack.c.h.b16 %v2910
    %v3652 = vunpack.c.l.b16 %v2911
    %v3653 = vunpack.c.h.b16 %v2911
    %v3654 = vunpack.c.l.b16 %v2912
    %v3655 = vunpack.c.h.b16 %v2912
    %v3656 = vunpack.c.l.b16 %v2913
    %v3657 = vunpack.c.l.b16 %v2914
    %v3658 = vunpack.c.h.b16 %v2914
    %v3659 = vunpack.c.l.b16 %v2915
    %v3660 = vunpack.c.h.b16 %v2915
    %v3661 = vunpack.c.l.b16 %v2916
    %v3662 = vunpack.c.h.b16 %v2916
    %v3663 = vunpack.c.l.b16 %v2917
    %v3664 = vunpack.c.l.b16 %v2918
    %v3665 = vunpack.c.h.b16 %v2918
    %v3666 = vunpack.c.l.b16 %v2919
    %v3667 = vunpack.c.h.b16 %v2919
    %v3668 = vunpack.c.l.b16 %v2920
    %v3669 = vunpack.c.h.b16 %v2920
    %v3670 = vunpack.c.l.b16 %v2921
    %v3671 = vunpack.c.l.b16 %v2922
    %v3672 = vunpack.c.h.b16 %v2922
    %v3673 = vunpack.c.l.b16 %v2923
    %v3674 = vunpack.c.h.b16 %v2923
    %v3675 = vunpack.c.l.b16 %v2924
    %v3676 = vunpack.c.h.b16 %v2924
    %v3677 = vunpack.c.l.b16 %v2925
    %v3678 = vunpack.c.l.b16 %v2926
    %v3679 = vunpack.c.h.b16 %v2926
    %v3680 = vunpack.c.l.b16 %v2927
    %v3681 = vunpack.c.h.b16 %v2927
    %v3682 = vunpack.c.l.b16 %v2928
    %v3683 = vunpack.c.h.b16 %v2928
    %v3684 = vunpack.c.l.b16 %v2929
    %v3685 = vunpack.c.l.b16 %v2930
    %v3686 = vunpack.c.h.b16 %v2930
    %v3687 = vunpack.c.l.b16 %v2931
    %v3688 = vunpack.c.h.b16 %v2931
    %v3689 = vunpack.c.l.b16 %v2932
    %v3690 = vunpack.c.h.b16 %v2932
    %v3691 = vunpack.c.l.b16 %v2933
    %v3692 = vunpack.c.l.b16 %v2934
    %v3693 = vunpack.c.h.b16 %v2934
    %v3694 = vunpack.c.l.b16 %v2935
    %v3695 = vunpack.c.h.b16 %v2935
    %v3696 = vunpack.c.l.b16 %v2936
    %v3697 = vunpack.c.h.b16 %v2936
    %v3698 = vunpack.c.l.b16 %v2937
    %v3699 = vunpack.c.l.b16 %v2938
    %v3700 = vunpack.c.h.b16 %v2938
    %v3701 = vunpack.c.l.b16 %v2939
    %v3702 = vunpack.c.h.b16 %v2939
    %v3703 = vunpack.c.l.b16 %v2940
    %v3704 = vunpack.c.h.b16 %v2940
    %v3705 = vunpack.c.l.b16 %v2941
    %v3706 = vunpack.c.l.b16 %v2942
    %v3707 = vunpack.c.h.b16 %v2942
    %v3708 = vunpack.c.l.b16 %v2943
    %v3709 = vunpack.c.h.b16 %v2943
    %v3710 = vunpack.c.l.b16 %v2944
    %v3711 = vunpack.c.h.b16 %v2944
    %v3712 = vunpack.c.l.b16 %v2945
    %v3713 = vunpack.c.l.b16 %v2946
    %v3714 = vunpack.c.h.b16 %v2946
    %v3715 = vunpack.c.l.b16 %v2947
    %v3716 = vunpack.c.h.b16 %v2947
    %v3717 = vunpack.c.l.b16 %v2948
    %v3718 = vunpack.c.h.b16 %v2948
    %v3719 = vunpack.c.l.b16 %v2949
    %v3720 = vunpack.c.l.b16 %v2950
    %v3721 = vunpack.c.h.b16 %v2950
    %v3722 = vunpack.c.l.b16 %v2951
    %v3723 = vunpack.c.h.b16 %v2951
    %v3724 = vunpack.c.l.b16 %v2952
    %v3725 = vunpack.c.h.b16 %v2952
    %v3726 = vunpack.c.l.b16 %v2953
    %v3727 = vunpack.c.l.b16 %v2954
    %v3728 = vunpack.c.h.b16 %v2954
    %v3729 = vunpack.c.l.b16 %v2955
    %v3730 = vunpack.c.h.b16 %v2955
    %v3731 = vunpack.c.l.b16 %v2956
    %v3732 = vunpack.c.h.b16 %v2956
    %v3733 = vunpack.c.l.b16 %v2957
    %v3734 = vunpack.c.l.b16 %v2958
    %v3735 = vunpack.c.h.b16 %v2958
    %v3736 = vunpack.c.l.b16 %v2959
    %v3737 = vunpack.c.h.b16 %v2959
    %v3738 = vunpack.c.l.b16 %v2960
    %v3739 = vunpack.c.h.b16 %v2960
    %v3740 = vunpack.c.l.b16 %v2961
    %v3741 = vunpack.c.l.b16 %v2962
    %v3742 = vunpack.c.h.b16 %v2962
    %v3743 = vunpack.c.l.b16 %v2963
    %v3744 = vunpack.c.h.b16 %v2963
    %v3745 = vunpack.c.l.b16 %v2964
    %v3746 = vunpack.c.h.b16 %v2964
    %v3747 = vunpack.c.l.b16 %v2965
    %v3748 = vunpack.c.l.b16 %v2966
    %v3749 = vunpack.c.h.b16 %v2966
    %v3750 = vunpack.c.l.b16 %v2967
    %v3751 = vunpack.c.h.b16 %v2967
    %v3752 = vunpack.c.l.b16 %v2968
    %v3753 = vunpack.c.h.b16 %v2968
    %v3754 = vunpack.c.l.b16 %v2969
    %v3755 = vunpack.c.l.b16 %v2970
    %v3756 = vunpack.c.h.b16 %v2970
    %v3757 = vunpack.c.l.b16 %v2971
    %v3758 = vunpack.c.h.b16 %v2971
    %v3759 = vunpack.c.l.b16 %v2972
    %v3760 = vunpack.c.h.b16 %v2972
    %v3761 = vunpack.c.l.b16 %v2973
    %v3762 = vunpack.c.l.b16 %v2974
    %v3763 = vunpack.c.h.b16 %v2974
    %v3764 = vunpack.c.l.b16 %v2975
    %v3765 = vunpack.c.h.b16 %v2975
    %v3766 = vunpack.c.l.b16 %v2976
    %v3767 = vunpack.c.h.b16 %v2976
    %v3768 = vunpack.c.l.b16 %v2977
    %v3769 = vunpack.c.l.b16 %v2978
    %v3770 = vunpack.c.h.b16 %v2978
    %v3771 = vunpack.c.l.b16 %v2979
    %v3772 = vunpack.c.h.b16 %v2979
    %v3773 = vunpack.c.l.b16 %v2980
    %v3774 = vunpack.c.h.b16 %v2980
    %v3775 = vunpack.c.l.b16 %v2981
    %v3776 = vunpack.c.l.b16 %v2982
    %v3777 = vunpack.c.h.b16 %v2982
    %v3778 = vunpack.c.l.b16 %v2983
    %v3779 = vunpack.c.h.b16 %v2983
    %v3780 = vunpack.c.l.b16 %v2984
    %v3781 = vunpack.c.h.b16 %v2984
    %v3782 = vunpack.c.l.b16 %v2985
    %v3783 = vunpack.c.l.b16 %v2986
    %v3784 = vunpack.c.h.b16 %v2986
    %v3785 = vunpack.c.l.b16 %v2987
    %v3786 = vunpack.c.h.b16 %v2987
    %v3787 = vunpack.c.l.b16 %v2988
    %v3788 = vunpack.c.h.b16 %v2988
    %v3789 = vunpack.c.l.b16 %v2989
    %v3790 = vunpack.c.l.b16 %v2990
    %v3791 = vunpack.c.h.b16 %v2990
    %v3792 = vunpack.c.l.b16 %v2991
    %v3793 = vunpack.c.h.b16 %v2991
    %v3794 = vunpack.c.l.b16 %v2992
    %v3795 = vunpack.c.h.b16 %v2992
    %v3796 = vunpack.c.l.b16 %v2993
    %v3797 = vunpack.c.l.b16 %v2994
    %v3798 = vunpack.c.h.b16 %v2994
    %v3799 = vunpack.c.l.b16 %v2995
    %v3800 = vunpack.c.h.b16 %v2995
    %v3801 = vunpack.c.l.b16 %v2996
    %v3802 = vunpack.c.h.b16 %v2996
    %v3803 = vunpack.c.l.b16 %v2997
    %v3804 = vunpack.c.l.b16 %v2998
    %v3805 = vunpack.c.h.b16 %v2998
    %v3806 = vunpack.c.l.b16 %v2999
    %v3807 = vunpack.c.h.b16 %v2999
    %v3808 = vunpack.c.l.b16 %v3000
    %v3809 = vunpack.c.h.b16 %v3000
    %v3810 = vunpack.c.l.b16 %v3001
    %v3811 = vunpack.c.l.b16 %v3002
    %v3812 = vunpack.c.h.b16 %v3002
    %v3813 = vunpack.c.l.b16 %v3003
    %v3814 = vunpack.c.h.b16 %v3003
    %v3815 = vunpack.c.l.b16 %v3004
    %v3816 = vunpack.c.h.b16 %v3004
    %v3817 = vunpack.c.l.b16 %v3005
    %v3818 = vunpack.c.l.b16 %v3006
    %v3819 = vunpack.c.h.b16 %v3006
    %v3820 = vunpack.c.l.b16 %v3007
    %v3821 = vunpack.c.h.b16 %v3007
    %v3822 = vunpack.c.l.b16 %v3008
    %v3823 = vunpack.c.h.b16 %v3008
    %v3824 = vunpack.c.l.b16 %v3009
    %v3825 = vunpack.c.l.b16 %v3010
    %v3826 = vunpack.c.h.b16 %v3010
    %v3827 = vunpack.c.l.b16 %v3011
    %v3828 = vunpack.c.h.b16 %v3011
    %v3829 = vunpack.c.l.b16 %v3012
    %v3830 = vunpack.c.h.b16 %v3012
    %v3831 = vunpack.c.l.b16 %v3013
    %v3832 = vunpack.c.l.b16 %v3014
    %v3833 = vunpack.c.h.b16 %v3014
    %v3834 = vunpack.c.l.b16 %v3015
    %v3835 = vunpack.c.h.b16 %v3015
    %v3836 = vunpack.c.l.b16 %v3016
    %v3837 = vunpack.c.h.b16 %v3016
    %v3838 = vunpack.c.l.b16 %v3017
    %v3839 = vunpack.c.l.b16 %v3018
    %v3840 = vunpack.c.h.b16 %v3018
    %v3841 = vunpack.c.l.b16 %v3019
    %v3842 = vunpack.c.h.b16 %v3019
    %v3843 = vunpack.c.l.b16 %v3020
    %v3844 = vunpack.c.h.b16 %v3020
    %v3845 = vunpack.c.l.b16 %v3021
    %v3846 = vunpack.c.l.b16 %v3022
    %v3847 = vunpack.c.h.b16 %v3022
    %v3848 = vunpack.c.l.b16 %v3023
    %v3849 = vunpack.c.h.b16 %v3023
    %v3850 = vunpack.c.l.b16 %v3024
    %v3851 = vunpack.c.h.b16 %v3024
    %v3852 = vunpack.c.l.b16 %v3025
    %v3853 = vunpack.c.l.b16 %v3026
    %v3854 = vunpack.c.h.b16 %v3026
    %v3855 = vunpack.c.l.b16 %v3027
    %v3856 = vunpack.c.h.b16 %v3027
    %v3857 = vunpack.c.l.b16 %v3028
    %v3858 = vunpack.c.h.b16 %v3028
    %v3859 = vunpack.c.l.b16 %v3029
    %v3860 = vunpack.c.l.b16 %v3030
    %v3861 = vunpack.c.h.b16 %v3030
    %v3862 = vunpack.c.l.b16 %v3031
    %v3863 = vunpack.c.h.b16 %v3031
    %v3864 = vunpack.c.l.b16 %v3032
    %v3865 = vunpack.c.h.b16 %v3032
    %v3866 = vunpack.c.l.b16 %v3033
    %v3867 = vunpack.c.l.b16 %v3034
    %v3868 = vunpack.c.h.b16 %v3034
    %v3869 = vunpack.c.l.b16 %v3035
    %v3870 = vunpack.c.h.b16 %v3035
    %v3871 = vunpack.c.l.b16 %v3036
    %v3872 = vunpack.c.h.b16 %v3036
    %v3873 = vunpack.c.l.b16 %v3037
    %v3874 = vunpack.c.l.b16 %v3038
    %v3875 = vunpack.c.h.b16 %v3038
    %v3876 = vunpack.c.l.b16 %v3039
    %v3877 = vunpack.c.h.b16 %v3039
    %v3878 = vunpack.c.l.b16 %v3040
    %v3879 = vunpack.c.h.b16 %v3040
    %v3880 = vunpack.c.l.b16 %v3041
    %v3881 = vunpack.c.l.b16 %v3042
    %v3882 = vunpack.c.h.b16 %v3042
    %v3883 = vunpack.c.l.b16 %v3043
    %v3884 = vunpack.c.h.b16 %v3043
    %v3885 = vunpack.c.l.b16 %v3044
    %v3886 = vunpack.c.h.b16 %v3044
    %v3887 = vunpack.c.l.b16 %v3045
    %v3888 = vunpack.c.l.b16 %v3046
    %v3889 = vunpack.c.h.b16 %v3046
    %v3890 = vunpack.c.l.b16 %v3047
    %v3891 = vunpack.c.h.b16 %v3047
    %v3892 = vunpack.c.l.b16 %v3048
    %v3893 = vunpack.c.h.b16 %v3048
    %v3894 = vunpack.c.l.b16 %v3049
    %v3895 = vunpack.c.l.b16 %v3050
    %v3896 = vunpack.c.h.b16 %v3050
    %v3897 = vunpack.c.l.b16 %v3051
    %v3898 = vunpack.c.h.b16 %v3051
    %v3899 = vunpack.c.l.b16 %v3052
    %v3900 = vunpack.c.h.b16 %v3052
    %v3901 = vunpack.c.l.b16 %v3053
    %v3902 = vunpack.c.l.b16 %v3054
    %v3903 = vunpack.c.h.b16 %v3054
    %v3904 = vunpack.c.l.b16 %v3055
    %v3905 = vunpack.c.h.b16 %v3055
    %v3906 = vunpack.c.l.b16 %v3056
    %v3907 = vunpack.c.h.b16 %v3056
    %v3908 = vunpack.c.l.b16 %v3057
    %v3909 = vunpack.c.l.b16 %v3058
    %v3910 = vunpack.c.h.b16 %v3058
    %v3911 = vunpack.c.l.b16 %v3059
    %v3912 = vunpack.c.h.b16 %v3059
    %v3913 = vunpack.c.l.b16 %v3060
    %v3914 = vunpack.c.h.b16 %v3060
    %v3915 = vunpack.c.l.b16 %v3061
    %v3916 = vunpack.c.l.b16 %v3062
    %v3917 = vunpack.c.h.b16 %v3062
    %v3918 = vunpack.c.l.b16 %v3063
    %v3919 = vunpack.c.h.b16 %v3063
    %v3920 = vunpack.c.l.b16 %v3064
    %v3921 = vunpack.c.h.b16 %v3064
    %v3922 = vunpack.c.l.b16 %v3065
    %v3923 = vunpack.c.l.b16 %v3066
    %v3924 = vunpack.c.h.b16 %v3066
    %v3925 = vunpack.c.l.b16 %v3067
    %v3926 = vunpack.c.h.b16 %v3067
    %v3927 = vunpack.c.l.b16 %v3068
    %v3928 = vunpack.c.h.b16 %v3068
    %v3929 = vunpack.c.l.b16 %v3069
    %v3930 = vunpack.c.l.b16 %v3070
    %v3931 = vunpack.c.h.b16 %v3070
    %v3932 = vunpack.c.l.b16 %v3071
    %v3933 = vunpack.c.h.b16 %v3071
    %v3934 = vunpack.c.l.b16 %v3072
    %v3935 = vunpack.c.h.b16 %v3072
    %v3936 = vunpack.c.l.b16 %v3073
    %v3937 = vunpack.c.l.b16 %v3074
    %v3938 = vunpack.c.h.b16 %v3074
    %v3939 = vunpack.c.l.b16 %v3075
    %v3940 = vunpack.c.h.b16 %v3075
    %v3941 = vunpack.c.l.b16 %v3076
    %v3942 = vunpack.c.h.b16 %v3076
    %v3943 = vunpack.c.l.b16 %v3077
    %v3944 = vunpack.c.l.b16 %v3078
    %v3945 = vunpack.c.h.b16 %v3078
    %v3946 = vunpack.c.l.b16 %v3079
    %v3947 = vunpack.c.h.b16 %v3079
    %v3948 = vunpack.c.l.b16 %v3080
    %v3949 = vunpack.c.h.b16 %v3080
    %v3950 = vunpack.c.l.b16 %v3081
    %v3951 = vunpack.c.l.b16 %v3082
    %v3952 = vunpack.c.h.b16 %v3082
    %v3953 = vunpack.c.l.b16 %v3083
    %v3954 = vunpack.c.h.b16 %v3083
    %v3955 = vunpack.c.l.b16 %v3084
    %v3956 = vunpack.c.h.b16 %v3084
    %v3957 = vunpack.c.l.b16 %v3085
    %v3958 = vunpack.c.l.b16 %v3086
    %v3959 = vunpack.c.h.b16 %v3086
    %v3960 = vunpack.c.l.b16 %v3087
    %v3961 = vunpack.c.h.b16 %v3087
    %v3962 = vunpack.c.l.b16 %v3088
    %v3963 = vunpack.c.h.b16 %v3088
    %v3964 = vunpack.c.l.b16 %v3089
    %v3965 = vunpack.c.l.b16 %v3090
    %v3966 = vunpack.c.h.b16 %v3090
    %v3967 = vunpack.c.l.b16 %v3091
    %v3968 = vunpack.c.h.b16 %v3091
    %v3969 = vunpack.c.l.b16 %v3092
    %v3970 = vunpack.c.h.b16 %v3092
    %v3971 = vunpack.c.l.b16 %v3093
    %v3972 = vunpack.c.l.b16 %v3094
    %v3973 = vunpack.c.h.b16 %v3094
    %v3974 = vunpack.c.l.b16 %v3095
    %v3975 = vunpack.c.h.b16 %v3095
    %v3976 = vunpack.c.l.b16 %v3096
    %v3977 = vunpack.c.h.b16 %v3096
    %v3978 = vunpack.c.l.b16 %v3097
    %v3979 = vunpack.c.l.b16 %v3098
    %v3980 = vunpack.c.h.b16 %v3098
    %v3981 = vunpack.c.l.b16 %v3099
    %v3982 = vunpack.c.h.b16 %v3099
    %v3983 = vunpack.c.l.b16 %v3100
    %v3984 = vunpack.c.h.b16 %v3100
    %v3985 = vunpack.c.l.b16 %v3101
    %v3986 = vunpack.c.l.b16 %v3102
    %v3987 = vunpack.c.h.b16 %v3102
    %v3988 = vunpack.c.l.b16 %v3103
    %v3989 = vunpack.c.h.b16 %v3103
    %v3990 = vunpack.c.l.b16 %v3104
    %v3991 = vunpack.c.h.b16 %v3104
    %v3992 = vunpack.c.l.b16 %v3105
    %v3993 = vunpack.c.l.b16 %v3106
    %v3994 = vunpack.c.h.b16 %v3106
    %v3995 = vunpack.c.l.b16 %v3107
    %v3996 = vunpack.c.h.b16 %v3107
    %v3997 = vunpack.c.l.b16 %v3108
    %v3998 = vunpack.c.h.b16 %v3108
    %v3999 = vunpack.c.l.b16 %v3109
    %v4000 = vunpack.c.l.b16 %v3110
    %v4001 = vunpack.c.h.b16 %v3110
    %v4002 = vunpack.c.l.b16 %v3111
    %v4003 = vunpack.c.h.b16 %v3111
    %v4004 = vunpack.c.l.b16 %v3112
    %v4005 = vunpack.c.h.b16 %v3112
    %v4006 = vunpack.c.l.b16 %v3113
    %v4007 = vunpack.c.l.b16 %v3114
    %v4008 = vunpack.c.h.b16 %v3114
    %v4009 = vunpack.c.l.b16 %v3115
    %v4010 = vunpack.c.h.b16 %v3115
    %v4011 = vunpack.c.l.b16 %v3116
    %v4012 = vunpack.c.h.b16 %v3116
    %v4013 = vunpack.c.l.b16 %v3117
    %v4014 = vpack.c.b16 %v3461, %v3454
    %v4015 = vpack.c.b16 %v3462, %v3455
    %v4016 = vpack.c.b16 %v3463, %v3456
    %v4017 = vpack.c.b16 %v3464, %v3457
    %v4018 = vpack.c.b16 %v3465, %v3458
    %v4019 = vpack.c.b16 %v3466, %v3459
    %v4020 = vpack.c.b16 %v3467, %v3460
    %v4021 = vpack.c.b16 %v3475, %v3468
    %v4022 = vpack.c.b16 %v3476, %v3469
    %v4023 = vpack.c.b16 %v3477, %v3470
    %v4024 = vpack.c.b16 %v3478, %v3471
    %v4025 = vpack.c.b16 %v3479, %v3472
    %v4026 = vpack.c.b16 %v3480, %v3473
    %v4027 = vpack.c.b16 %v3481, %v3474
    %v4028 = vpack.c.b16 %v3489, %v3482
    %v4029 = vpack.c.b16 %v3490, %v3483
    %v4030 = vpack.c.b16 %v3491, %v3484
    %v4031 = vpack.c.b16 %v3492, %v3485
    %v4032 = vpack.c.b16 %v3493, %v3486
    %v4033 = vpack.c.b16 %v3494, %v3487
    %v4034 = vpack.c.b16 %v3495, %v3488
    %v4035 = vpack.c.b16 %v3503, %v3496
    %v4036 = vpack.c.b16 %v3504, %v3497
    %v4037 = vpack.c.b16 %v3505, %v3498
    %v4038 = vpack.c.b16 %v3506, %v3499
    %v4039 = vpack.c.b16 %v3507, %v3500
    %v4040 = vpack.c.b16 %v3508, %v3501
    %v4041 = vpack.c.b16 %v3509, %v3502
    %v4042 = vpack.c.b16 %v3517, %v3510
    %v4043 = vpack.c.b16 %v3518, %v3511
    %v4044 = vpack.c.b16 %v3519, %v3512
    %v4045 = vpack.c.b16 %v3520, %v3513
    %v4046 = vpack.c.b16 %v3521, %v3514
    %v4047 = vpack.c.b16 %v3522, %v3515
    %v4048 = vpack.c.b16 %v3523, %v3516
    %v4049 = vpack.c.b16 %v3531, %v3524
    %v4050 = vpack.c.b16 %v3532, %v3525
    %v4051 = vpack.c.b16 %v3533, %v3526
    %v4052 = vpack.c.b16 %v3534, %v3527
    %v4053 = vpack.c.b16 %v3535, %v3528
    %v4054 = vpack.c.b16 %v3536, %v3529
    %v4055 = vpack.c.b16 %v3537, %v3530
    %v4056 = vpack.c.b16 %v3545, %v3538
    %v4057 = vpack.c.b16 %v3546, %v3539
    %v4058 = vpack.c.b16 %v3547, %v3540
    %v4059 = vpack.c.b16 %v3548, %v3541
    %v4060 = vpack.c.b16 %v3549, %v3542
    %v4061 = vpack.c.b16 %v3550, %v3543
    %v4062 = vpack.c.b16 %v3551, %v3544
    %v4063 = vpack.c.b16 %v3559, %v3552
    %v4064 = vpack.c.b16 %v3560, %v3553
    %v4065 = vpack.c.b16 %v3561, %v3554
    %v4066 = vpack.c.b16 %v3562, %v3555
    %v4067 = vpack.c.b16 %v3563, %v3556
    %v4068 = vpack.c.b16 %v3564, %v3557
    %v4069 = vpack.c.b16 %v3565, %v3558
    %v4070 = vpack.c.b16 %v3573, %v3566
    %v4071 = vpack.c.b16 %v3574, %v3567
    %v4072 = vpack.c.b16 %v3575, %v3568
    %v4073 = vpack.c.b16 %v3576, %v3569
    %v4074 = vpack.c.b16 %v3577, %v3570
    %v4075 = vpack.c.b16 %v3578, %v3571
    %v4076 = vpack.c.b16 %v3579, %v3572
    %v4077 = vpack.c.b16 %v3587, %v3580
    %v4078 = vpack.c.b16 %v3588, %v3581
    %v4079 = vpack.c.b16 %v3589, %v3582
    %v4080 = vpack.c.b16 %v3590, %v3583
    %v4081 = vpack.c.b16 %v3591, %v3584
    %v4082 = vpack.c.b16 %v3592, %v3585
    %v4083 = vpack.c.b16 %v3593, %v3586
    %v4084 = vpack.c.b16 %v3601, %v3594
    %v4085 = vpack.c.b16 %v3602, %v3595
    %v4086 = vpack.c.b16 %v3603, %v3596
    %v4087 = vpack.c.b16 %v3604, %v3597
    %v4088 = vpack.c.b16 %v3605, %v3598
    %v4089 = vpack.c.b16 %v3606, %v3599
    %v4090 = vpack.c.b16 %v3607, %v3600
    %v4091 = vpack.c.b16 %v3615, %v3608
    %v4092 = vpack.c.b16 %v3616, %v3609
    %v4093 = vpack.c.b16 %v3617, %v3610
    %v4094 = vpack.c.b16 %v3618, %v3611
    %v4095 = vpack.c.b16 %v3619, %v3612
    %v4096 = vpack.c.b16 %v3620, %v3613
    %v4097 = vpack.c.b16 %v3621, %v3614
    %v4098 = vpack.c.b16 %v3629, %v3622
    %v4099 = vpack.c.b16 %v3630, %v3623
    %v4100 = vpack.c.b16 %v3631, %v3624
    %v4101 = vpack.c.b16 %v3632, %v3625
    %v4102 = vpack.c.b16 %v3633, %v3626
    %v4103 = vpack.c.b16 %v3634, %v3627
    %v4104 = vpack.c.b16 %v3635, %v3628
    %v4105 = vpack.c.b16 %v3643, %v3636
    %v4106 = vpack.c.b16 %v3644, %v3637
    %v4107 = vpack.c.b16 %v3645, %v3638
    %v4108 = vpack.c.b16 %v3646, %v3639
    %v4109 = vpack.c.b16 %v3647, %v3640
    %v4110 = vpack.c.b16 %v3648, %v3641
    %v4111 = vpack.c.b16 %v3649, %v3642
    %v4112 = vpack.c.b16 %v3657, %v3650
    %v4113 = vpack.c.b16 %v3658, %v3651
    %v4114 = vpack.c.b16 %v3659, %v3652
    %v4115 = vpack.c.b16 %v3660, %v3653
    %v4116 = vpack.c.b16 %v3661, %v3654
    %v4117 = vpack.c.b16 %v3662, %v3655
    %v4118 = vpack.c.b16 %v3663, %v3656
    %v4119 = vpack.c.b16 %v3671, %v3664
    %v4120 = vpack.c.b16 %v3672, %v3665
    %v4121 = vpack.c.b16 %v3673, %v3666
    %v4122 = vpack.c.b16 %v3674, %v3667
    %v4123 = vpack.c.b16 %v3675, %v3668
    %v4124 = vpack.c.b16 %v3676, %v3669
    %v4125 = vpack.c.b16 %v3677, %v3670
    %v4126 = vpack.c.b16 %v3685, %v3678
    %v4127 = vpack.c.b16 %v3686, %v3679
    %v4128 = vpack.c.b16 %v3687, %v3680
    %v4129 = vpack.c.b16 %v3688, %v3681
    %v4130 = vpack.c.b16 %v3689, %v3682
    %v4131 = vpack.c.b16 %v3690, %v3683
    %v4132 = vpack.c.b16 %v3691, %v3684
    %v4133 = vpack.c.b16 %v3699, %v3692
    %v4134 = vpack.c.b16 %v3700, %v3693
    %v4135 = vpack.c.b16 %v3701, %v3694
    %v4136 = vpack.c.b16 %v3702, %v3695
    %v4137 = vpack.c.b16 %v3703, %v3696
    %v4138 = vpack.c.b16 %v3704, %v3697
    %v4139 = vpack.c.b16 %v3705, %v3698
    %v4140 = vpack.c.b16 %v3713, %v3706
    %v4141 = vpack.c.b16 %v3714, %v3707
    %v4142 = vpack.c.b16 %v3715, %v3708
    %v4143 = vpack.c.b16 %v3716, %v3709
    %v4144 = vpack.c.b16 %v3717, %v3710
    %v4145 = vpack.c.b16 %v3718, %v3711
    %v4146 = vpack.c.b16 %v3719, %v3712
    %v4147 = vpack.c.b16 %v3727, %v3720
    %v4148 = vpack.c.b16 %v3728, %v3721
    %v4149 = vpack.c.b16 %v3729, %v3722
    %v4150 = vpack.c.b16 %v3730, %v3723
    %v4151 = vpack.c.b16 %v3731, %v3724
    %v4152 = vpack.c.b16 %v3732, %v3725
    %v4153 = vpack.c.b16 %v3733, %v3726
    %v4154 = vpack.c.b16 %v3741, %v3734
    %v4155 = vpack.c.b16 %v3742, %v3735
    %v4156 = vpack.c.b16 %v3743, %v3736
    %v4157 = vpack.c.b16 %v3744, %v3737
    %v4158 = vpack.c.b16 %v3745, %v3738
    %v4159 = vpack.c.b16 %v3746, %v3739
    %v4160 = vpack.c.b16 %v3747, %v3740
    %v4161 = vpack.c.b16 %v3755, %v3748
    %v4162 = vpack.c.b16 %v3756, %v3749
    %v4163 = vpack.c.b16 %v3757, %v3750
    %v4164 = vpack.c.b16 %v3758, %v3751
    %v4165 = vpack.c.b16 %v3759, %v3752
    %v4166 = vpack.c.b16 %v3760, %v3753
    %v4167 = vpack.c.b16 %v3761, %v3754
    %v4168 = vpack.c.b16 %v3769, %v3762
    %v4169 = vpack.c.b16 %v3770, %v3763
    %v4170 = vpack.c.b16 %v3771, %v3764
    %v4171 = vpack.c.b16 %v3772, %v3765
    %v4172 = vpack.c.b16 %v3773, %v3766
    %v4173 = vpack.c.b16 %v3774, %v3767
    %v4174 = vpack.c.b16 %v3775, %v3768
    %v4175 = vpack.c.b16 %v3783, %v3776
    %v4176 = vpack.c.b16 %v3784, %v3777
    %v4177 = vpack.c.b16 %v3785, %v3778
    %v4178 = vpack.c.b16 %v3786, %v3779
    %v4179 = vpack.c.b16 %v3787, %v3780
    %v4180 = vpack.c.b16 %v3788, %v3781
    %v4181 = vpack.c.b16 %v3789, %v3782
    %v4182 = vpack.c.b16 %v3797, %v3790
    %v4183 = vpack.c.b16 %v3798, %v3791
    %v4184 = vpack.c.b16 %v3799, %v3792
    %v4185 = vpack.c.b16 %v3800, %v3793
    %v4186 = vpack.c.b16 %v3801, %v3794
    %v4187 = vpack.c.b16 %v3802, %v3795
    %v4188 = vpack.c.b16 %v3803, %v3796
    %v4189 = vpack.c.b16 %v3811, %v3804
    %v4190 = vpack.c.b16 %v3812, %v3805
    %v4191 = vpack.c.b16 %v3813, %v3806
    %v4192 = vpack.c.b16 %v3814, %v3807
    %v4193 = vpack.c.b16 %v3815, %v3808
    %v4194 = vpack.c.b16 %v3816, %v3809
    %v4195 = vpack.c.b16 %v3817, %v3810
    %v4196 = vpack.c.b16 %v3825, %v3818
    %v4197 = vpack.c.b16 %v3826, %v3819
    %v4198 = vpack.c.b16 %v3827, %v3820
    %v4199 = vpack.c.b16 %v3828, %v3821
    %v4200 = vpack.c.b16 %v3829, %v3822
    %v4201 = vpack.c.b16 %v3830, %v3823
    %v4202 = vpack.c.b16 %v3831, %v3824
    %v4203 = vpack.c.b16 %v3839, %v3832
    %v4204 = vpack.c.b16 %v3840, %v3833
    %v4205 = vpack.c.b16 %v3841, %v3834
    %v4206 = vpack.c.b16 %v3842, %v3835
    %v4207 = vpack.c.b16 %v3843, %v3836
    %v4208 = vpack.c.b16 %v3844, %v3837
    %v4209 = vpack.c.b16 %v3845, %v3838
    %v4210 = vpack.c.b16 %v3853, %v3846
    %v4211 = vpack.c.b16 %v3854, %v3847
    %v4212 = vpack.c.b16 %v3855, %v3848
    %v4213 = vpack.c.b16 %v3856, %v3849
    %v4214 = vpack.c.b16 %v3857, %v3850
    %v4215 = vpack.c.b16 %v3858, %v3851
    %v4216 = vpack.c.b16 %v3859, %v3852
    %v4217 = vpack.c.b16 %v3867, %v3860
    %v4218 = vpack.c.b16 %v3868, %v3861
    %v4219 = vpack.c.b16 %v3869, %v3862
    %v4220 = vpack.c.b16 %v3870, %v3863
    %v4221 = vpack.c.b16 %v3871, %v3864
    %v4222 = vpack.c.b16 %v3872, %v3865
    %v4223 = vpack.c.b16 %v3873, %v3866
    %v4224 = vpack.c.b16 %v3881, %v3874
    %v4225 = vpack.c.b16 %v3882, %v3875
    %v4226 = vpack.c.b16 %v3883, %v3876
    %v4227 = vpack.c.b16 %v3884, %v3877
    %v4228 = vpack.c.b16 %v3885, %v3878
    %v4229 = vpack.c.b16 %v3886, %v3879
    %v4230 = vpack.c.b16 %v3887, %v3880
    %v4231 = vpack.c.b16 %v3895, %v3888
    %v4232 = vpack.c.b16 %v3896, %v3889
    %v4233 = vpack.c.b16 %v3897, %v3890
    %v4234 = vpack.c.b16 %v3898, %v3891
    %v4235 = vpack.c.b16 %v3899, %v3892
    %v4236 = vpack.c.b16 %v3900, %v3893
    %v4237 = vpack.c.b16 %v3901, %v3894
    %v4238 = vpack.c.b16 %v3909, %v3902
    %v4239 = vpack.c.b16 %v3910, %v3903
    %v4240 = vpack.c.b16 %v3911, %v3904
    %v4241 = vpack.c.b16 %v3912, %v3905
    %v4242 = vpack.c.b16 %v3913, %v3906
    %v4243 = vpack.c.b16 %v3914, %v3907
    %v4244 = vpack.c.b16 %v3915, %v3908
    %v4245 = vpack.c.b16 %v3923, %v3916
    %v4246 = vpack.c.b16 %v3924, %v3917
    %v4247 = vpack.c.b16 %v3925, %v3918
    %v4248 = vpack.c.b16 %v3926, %v3919
    %v4249 = vpack.c.b16 %v3927, %v3920
    %v4250 = vpack.c.b16 %v3928, %v3921
    %v4251 = vpack.c.b16 %v3929, %v3922
    %v4252 = vpack.c.b16 %v3937, %v3930
    %v4253 = vpack.c.b16 %v3938, %v3931
    %v4254 = vpack.c.b16 %v3939, %v3932
    %v4255 = vpack.c.b16 %v3940, %v3933
    %v4256 = vpack.c.b16 %v3941, %v3934
    %v4257 = vpack.c.b16 %v3942, %v3935
    %v4258 = vpack.c.b16 %v3943, %v3936
    %v4259 = vpack.c.b16 %v3951, %v3944
    %v4260 = vpack.c.b16 %v3952, %v3945
    %v4261 = vpack.c.b16 %v3953, %v3946
    %v4262 = vpack.c.b16 %v3954, %v3947
    %v4263 = vpack.c.b16 %v3955, %v3948
    %v4264 = vpack.c.b16 %v3956, %v3949
    %v4265 = vpack.c.b16 %v3957, %v3950
    %v4266 = vpack.c.b16 %v3965, %v3958
    %v4267 = vpack.c.b16 %v3966, %v3959
    %v4268 = vpack.c.b16 %v3967, %v3960
    %v4269 = vpack.c.b16 %v3968, %v3961
    %v4270 = vpack.c.b16 %v3969, %v3962
    %v4271 = vpack.c.b16 %v3970, %v3963
    %v4272 = vpack.c.b16 %v3971, %v3964
    %v4273 = vpack.c.b16 %v3979, %v3972
    %v4274 = vpack.c.b16 %v3980, %v3973
    %v4275 = vpack.c.b16 %v3981, %v3974
    %v4276 = vpack.c.b16 %v3982, %v3975
    %v4277 = vpack.c.b16 %v3983, %v3976
    %v4278 = vpack.c.b16 %v3984, %v3977
    %v4279 = vpack.c.b16 %v3985, %v3978
    %v4280 = vpack.c.b16 %v3993, %v3986
    %v4281 = vpack.c.b16 %v3994, %v3987
    %v4282 = vpack.c.b16 %v3995, %v3988
    %v4283 = vpack.c.b16 %v3996, %v3989
    %v4284 = vpack.c.b16 %v3997, %v3990
    %v4285 = vpack.c.b16 %v3998, %v3991
    %v4286 = vpack.c.b16 %v3999, %v3992
    %v4287 = vpack.c.b16 %v4007, %v4000
    %v4288 = vpack.c.b16 %v4008, %v4001
    %v4289 = vpack.c.b16 %v4009, %v4002
    %v4290 = vpack.c.b16 %v4010, %v4003
    %v4291 = vpack.c.b16 %v4011, %v4004
    %v4292 = vpack.c.b16 %v4012, %v4005
    %v4293 = vpack.c.b16 %v4013, %v4006
    %4574 = vmatpush.bf16.msra.mxu0 %v4063
    %4575 = vmatpush.bf16.msra.mxu0 %v4056
    %4576 = vmatpush.bf16.msra.mxu0 %v4049
    %4577 = vmatpush.bf16.msra.mxu0 %v4042
    %4578 = vmatpush.bf16.msra.mxu0 %v4035
    %4579 = vmatpush.bf16.msra.mxu0 %v4028
    %4580 = vmatpush.bf16.msra.mxu0 %v4021
    %4581 = vmatpush.bf16.msra.mxu0 %v4014
    %4582 = vmatmul.bf16.gmra.mxu0 %v2793
    %v4583 = vpop.f32.mrf.mxu0
    %v4584 = vadd.f32 %v3120, %v4583
    %v4585 = vpop.f32.mrf.mxu0
    %v4586 = vadd.f32 %v3120, %v4585
    %4587 = vdwg.mxu0
    %4588 = vmatpush.bf16.msra.mxu0 %v4119
    %4589 = vmatpush.bf16.msra.mxu0 %v4112
    %4590 = vmatpush.bf16.msra.mxu0 %v4105
    %4591 = vmatpush.bf16.msra.mxu0 %v4098
    %4592 = vmatpush.bf16.msra.mxu0 %v4091
    %4593 = vmatpush.bf16.msra.mxu0 %v4084
    %4594 = vmatpush.bf16.msra.mxu0 %v4077
    %4595 = vmatpush.bf16.msra.mxu0 %v4070
    %4596 = vmatmul.bf16.gmra.mxu0 %v2794
    %v4597 = vpop.f32.mrf.mxu0
    %v4598 = vadd.f32 %v4584, %v4597
    %v4599 = vpop.f32.mrf.mxu0
    %v4600 = vadd.f32 %v4586, %v4599
    %4601 = vdwg.mxu0
    %4602 = vmatpush.bf16.msra.mxu0 %v4175
    %4603 = vmatpush.bf16.msra.mxu0 %v4168
    %4604 = vmatpush.bf16.msra.mxu0 %v4161
    %4605 = vmatpush.bf16.msra.mxu0 %v4154
    %4606 = vmatpush.bf16.msra.mxu0 %v4147
    %4607 = vmatpush.bf16.msra.mxu0 %v4140
    %4608 = vmatpush.bf16.msra.mxu0 %v4133
    %4609 = vmatpush.bf16.msra.mxu0 %v4126
    %4610 = vmatmul.bf16.gmra.mxu0 %v2795
    %v4611 = vpop.f32.mrf.mxu0
    %v4612 = vadd.f32 %v4598, %v4611
    %v4613 = vpop.f32.mrf.mxu0
    %v4614 = vadd.f32 %v4600, %v4613
    %4615 = vdwg.mxu0
    %4616 = vmatpush.bf16.msra.mxu0 %v4231
    %4617 = vmatpush.bf16.msra.mxu0 %v4224
    %4618 = vmatpush.bf16.msra.mxu0 %v4217
    %4619 = vmatpush.bf16.msra.mxu0 %v4210
    %4620 = vmatpush.bf16.msra.mxu0 %v4203
    %4621 = vmatpush.bf16.msra.mxu0 %v4196
    %4622 = vmatpush.bf16.msra.mxu0 %v4189
    %4623 = vmatpush.bf16.msra.mxu0 %v4182
    %4624 = vmatmul.bf16.gmra.mxu0 %v2796
    %v4625 = vpop.f32.mrf.mxu0
    %v4626 = vadd.f32 %v4612, %v4625
    %v4627 = vpop.f32.mrf.mxu0
    %v4628 = vadd.f32 %v4614, %v4627
    %4629 = vdwg.mxu0
    %4630 = vmatpush.bf16.msra.mxu0 %v4287
    %4631 = vmatpush.bf16.msra.mxu0 %v4280
    %4632 = vmatpush.bf16.msra.mxu0 %v4273
    %4633 = vmatpush.bf16.msra.mxu0 %v4266
    %4634 = vmatpush.bf16.msra.mxu0 %v4259
    %4635 = vmatpush.bf16.msra.mxu0 %v4252
    %4636 = vmatpush.bf16.msra.mxu0 %v4245
    %4637 = vmatpush.bf16.msra.mxu0 %v4238
    %4638 = vmatmul.bf16.gmra.mxu0 %v2797
    %v4639 = vpop.f32.mrf.mxu0
    %v4640 = vadd.f32 %v4626, %v4639
    %v4641 = vpop.f32.mrf.mxu0
    %v4642 = vadd.f32 %v4628, %v4641
    %4643 = vdwg.mxu0
    %4644 = vmatpush.bf16.msra.mxu0 %v4064
    %4645 = vmatpush.bf16.msra.mxu0 %v4057
    %4646 = vmatpush.bf16.msra.mxu0 %v4050
    %4647 = vmatpush.bf16.msra.mxu0 %v4043
    %4648 = vmatpush.bf16.msra.mxu0 %v4036
    %4649 = vmatpush.bf16.msra.mxu0 %v4029
    %4650 = vmatpush.bf16.msra.mxu0 %v4022
    %4651 = vmatpush.bf16.msra.mxu0 %v4015
    %4652 = vmatmul.bf16.gmra.mxu0 %v2793
    %v4653 = vpop.f32.mrf.mxu0
    %v4654 = vadd.f32 %v3121, %v4653
    %v4655 = vpop.f32.mrf.mxu0
    %v4656 = vadd.f32 %v3121, %v4655
    %4657 = vdwg.mxu0
    %4658 = vmatpush.bf16.msra.mxu0 %v4120
    %4659 = vmatpush.bf16.msra.mxu0 %v4113
    %4660 = vmatpush.bf16.msra.mxu0 %v4106
    %4661 = vmatpush.bf16.msra.mxu0 %v4099
    %4662 = vmatpush.bf16.msra.mxu0 %v4092
    %4663 = vmatpush.bf16.msra.mxu0 %v4085
    %4664 = vmatpush.bf16.msra.mxu0 %v4078
    %4665 = vmatpush.bf16.msra.mxu0 %v4071
    %4666 = vmatmul.bf16.gmra.mxu0 %v2794
    %v4667 = vpop.f32.mrf.mxu0
    %v4668 = vadd.f32 %v4654, %v4667
    %v4669 = vpop.f32.mrf.mxu0
    %v4670 = vadd.f32 %v4656, %v4669
    %4671 = vdwg.mxu0
    %4672 = vmatpush.bf16.msra.mxu0 %v4176
    %4673 = vmatpush.bf16.msra.mxu0 %v4169
    %4674 = vmatpush.bf16.msra.mxu0 %v4162
    %4675 = vmatpush.bf16.msra.mxu0 %v4155
    %4676 = vmatpush.bf16.msra.mxu0 %v4148
    %4677 = vmatpush.bf16.msra.mxu0 %v4141
    %4678 = vmatpush.bf16.msra.mxu0 %v4134
    %4679 = vmatpush.bf16.msra.mxu0 %v4127
    %4680 = vmatmul.bf16.gmra.mxu0 %v2795
    %v4681 = vpop.f32.mrf.mxu0
    %v4682 = vadd.f32 %v4668, %v4681
    %v4683 = vpop.f32.mrf.mxu0
    %v4684 = vadd.f32 %v4670, %v4683
    %4685 = vdwg.mxu0
    %4686 = vmatpush.bf16.msra.mxu0 %v4232
    %4687 = vmatpush.bf16.msra.mxu0 %v4225
    %4688 = vmatpush.bf16.msra.mxu0 %v4218
    %4689 = vmatpush.bf16.msra.mxu0 %v4211
    %4690 = vmatpush.bf16.msra.mxu0 %v4204
    %4691 = vmatpush.bf16.msra.mxu0 %v4197
    %4692 = vmatpush.bf16.msra.mxu0 %v4190
    %4693 = vmatpush.bf16.msra.mxu0 %v4183
    %4694 = vmatmul.bf16.gmra.mxu0 %v2796
    %v4695 = vpop.f32.mrf.mxu0
    %v4696 = vadd.f32 %v4682, %v4695
    %v4697 = vpop.f32.mrf.mxu0
    %v4698 = vadd.f32 %v4684, %v4697
    %4699 = vdwg.mxu0
    %4700 = vmatpush.bf16.msra.mxu0 %v4288
    %4701 = vmatpush.bf16.msra.mxu0 %v4281
    %4702 = vmatpush.bf16.msra.mxu0 %v4274
    %4703 = vmatpush.bf16.msra.mxu0 %v4267
    %4704 = vmatpush.bf16.msra.mxu0 %v4260
    %4705 = vmatpush.bf16.msra.mxu0 %v4253
    %4706 = vmatpush.bf16.msra.mxu0 %v4246
    %4707 = vmatpush.bf16.msra.mxu0 %v4239
    %4708 = vmatmul.bf16.gmra.mxu0 %v2797
    %v4709 = vpop.f32.mrf.mxu0
    %v4710 = vadd.f32 %v4696, %v4709
    %v4711 = vpop.f32.mrf.mxu0
    %v4712 = vadd.f32 %v4698, %v4711
    %4713 = vdwg.mxu0
    %4714 = vmatpush.bf16.msra.mxu0 %v4065
    %4715 = vmatpush.bf16.msra.mxu0 %v4058
    %4716 = vmatpush.bf16.msra.mxu0 %v4051
    %4717 = vmatpush.bf16.msra.mxu0 %v4044
    %4718 = vmatpush.bf16.msra.mxu0 %v4037
    %4719 = vmatpush.bf16.msra.mxu0 %v4030
    %4720 = vmatpush.bf16.msra.mxu0 %v4023
    %4721 = vmatpush.bf16.msra.mxu0 %v4016
    %4722 = vmatmul.bf16.gmra.mxu0 %v2793
    %v4723 = vpop.f32.mrf.mxu0
    %v4724 = vadd.f32 %v3122, %v4723
    %v4725 = vpop.f32.mrf.mxu0
    %v4726 = vadd.f32 %v3122, %v4725
    %4727 = vdwg.mxu0
    %4728 = vmatpush.bf16.msra.mxu0 %v4121
    %4729 = vmatpush.bf16.msra.mxu0 %v4114
    %4730 = vmatpush.bf16.msra.mxu0 %v4107
    %4731 = vmatpush.bf16.msra.mxu0 %v4100
    %4732 = vmatpush.bf16.msra.mxu0 %v4093
    %4733 = vmatpush.bf16.msra.mxu0 %v4086
    %4734 = vmatpush.bf16.msra.mxu0 %v4079
    %4735 = vmatpush.bf16.msra.mxu0 %v4072
    %4736 = vmatmul.bf16.gmra.mxu0 %v2794
    %v4737 = vpop.f32.mrf.mxu0
    %v4738 = vadd.f32 %v4724, %v4737
    %v4739 = vpop.f32.mrf.mxu0
    %v4740 = vadd.f32 %v4726, %v4739
    %4741 = vdwg.mxu0
    %4742 = vmatpush.bf16.msra.mxu0 %v4177
    %4743 = vmatpush.bf16.msra.mxu0 %v4170
    %4744 = vmatpush.bf16.msra.mxu0 %v4163
    %4745 = vmatpush.bf16.msra.mxu0 %v4156
    %4746 = vmatpush.bf16.msra.mxu0 %v4149
    %4747 = vmatpush.bf16.msra.mxu0 %v4142
    %4748 = vmatpush.bf16.msra.mxu0 %v4135
    %4749 = vmatpush.bf16.msra.mxu0 %v4128
    %4750 = vmatmul.bf16.gmra.mxu0 %v2795
    %v4751 = vpop.f32.mrf.mxu0
    %v4752 = vadd.f32 %v4738, %v4751
    %v4753 = vpop.f32.mrf.mxu0
    %v4754 = vadd.f32 %v4740, %v4753
    %4755 = vdwg.mxu0
    %4756 = vmatpush.bf16.msra.mxu0 %v4233
    %4757 = vmatpush.bf16.msra.mxu0 %v4226
    %4758 = vmatpush.bf16.msra.mxu0 %v4219
    %4759 = vmatpush.bf16.msra.mxu0 %v4212
    %4760 = vmatpush.bf16.msra.mxu0 %v4205
    %4761 = vmatpush.bf16.msra.mxu0 %v4198
    %4762 = vmatpush.bf16.msra.mxu0 %v4191
    %4763 = vmatpush.bf16.msra.mxu0 %v4184
    %4764 = vmatmul.bf16.gmra.mxu0 %v2796
    %v4765 = vpop.f32.mrf.mxu0
    %v4766 = vadd.f32 %v4752, %v4765
    %v4767 = vpop.f32.mrf.mxu0
    %v4768 = vadd.f32 %v4754, %v4767
    %4769 = vdwg.mxu0
    %4770 = vmatpush.bf16.msra.mxu0 %v4289
    %4771 = vmatpush.bf16.msra.mxu0 %v4282
    %4772 = vmatpush.bf16.msra.mxu0 %v4275
    %4773 = vmatpush.bf16.msra.mxu0 %v4268
    %4774 = vmatpush.bf16.msra.mxu0 %v4261
    %4775 = vmatpush.bf16.msra.mxu0 %v4254
    %4776 = vmatpush.bf16.msra.mxu0 %v4247
    %4777 = vmatpush.bf16.msra.mxu0 %v4240
    %4778 = vmatmul.bf16.gmra.mxu0 %v2797
    %v4779 = vpop.f32.mrf.mxu0
    %v4780 = vadd.f32 %v4766, %v4779
    %v4781 = vpop.f32.mrf.mxu0
    %v4782 = vadd.f32 %v4768, %v4781
    %4783 = vdwg.mxu0
    %4784 = vmatpush.bf16.msra.mxu0 %v4066
    %4785 = vmatpush.bf16.msra.mxu0 %v4059
    %4786 = vmatpush.bf16.msra.mxu0 %v4052
    %4787 = vmatpush.bf16.msra.mxu0 %v4045
    %4788 = vmatpush.bf16.msra.mxu0 %v4038
    %4789 = vmatpush.bf16.msra.mxu0 %v4031
    %4790 = vmatpush.bf16.msra.mxu0 %v4024
    %4791 = vmatpush.bf16.msra.mxu0 %v4017
    %4792 = vmatmul.bf16.gmra.mxu0 %v2793
    %v4793 = vpop.f32.mrf.mxu0
    %v4794 = vadd.f32 %v3123, %v4793
    %v4795 = vpop.f32.mrf.mxu0
    %v4796 = vadd.f32 %v3123, %v4795
    %4797 = vdwg.mxu0
    %4798 = vmatpush.bf16.msra.mxu0 %v4122
    %4799 = vmatpush.bf16.msra.mxu0 %v4115
    %4800 = vmatpush.bf16.msra.mxu0 %v4108
    %4801 = vmatpush.bf16.msra.mxu0 %v4101
    %4802 = vmatpush.bf16.msra.mxu0 %v4094
    %4803 = vmatpush.bf16.msra.mxu0 %v4087
    %4804 = vmatpush.bf16.msra.mxu0 %v4080
    %4805 = vmatpush.bf16.msra.mxu0 %v4073
    %4806 = vmatmul.bf16.gmra.mxu0 %v2794
    %v4807 = vpop.f32.mrf.mxu0
    %v4808 = vadd.f32 %v4794, %v4807
    %v4809 = vpop.f32.mrf.mxu0
    %v4810 = vadd.f32 %v4796, %v4809
    %4811 = vdwg.mxu0
    %4812 = vmatpush.bf16.msra.mxu0 %v4178
    %4813 = vmatpush.bf16.msra.mxu0 %v4171
    %4814 = vmatpush.bf16.msra.mxu0 %v4164
    %4815 = vmatpush.bf16.msra.mxu0 %v4157
    %4816 = vmatpush.bf16.msra.mxu0 %v4150
    %4817 = vmatpush.bf16.msra.mxu0 %v4143
    %4818 = vmatpush.bf16.msra.mxu0 %v4136
    %4819 = vmatpush.bf16.msra.mxu0 %v4129
    %4820 = vmatmul.bf16.gmra.mxu0 %v2795
    %v4821 = vpop.f32.mrf.mxu0
    %v4822 = vadd.f32 %v4808, %v4821
    %v4823 = vpop.f32.mrf.mxu0
    %v4824 = vadd.f32 %v4810, %v4823
    %4825 = vdwg.mxu0
    %4826 = vmatpush.bf16.msra.mxu0 %v4234
    %4827 = vmatpush.bf16.msra.mxu0 %v4227
    %4828 = vmatpush.bf16.msra.mxu0 %v4220
    %4829 = vmatpush.bf16.msra.mxu0 %v4213
    %4830 = vmatpush.bf16.msra.mxu0 %v4206
    %4831 = vmatpush.bf16.msra.mxu0 %v4199
    %4832 = vmatpush.bf16.msra.mxu0 %v4192
    %4833 = vmatpush.bf16.msra.mxu0 %v4185
    %4834 = vmatmul.bf16.gmra.mxu0 %v2796
    %v4835 = vpop.f32.mrf.mxu0
    %v4836 = vadd.f32 %v4822, %v4835
    %v4837 = vpop.f32.mrf.mxu0
    %v4838 = vadd.f32 %v4824, %v4837
    %4839 = vdwg.mxu0
    %4840 = vmatpush.bf16.msra.mxu0 %v4290
    %4841 = vmatpush.bf16.msra.mxu0 %v4283
    %4842 = vmatpush.bf16.msra.mxu0 %v4276
    %4843 = vmatpush.bf16.msra.mxu0 %v4269
    %4844 = vmatpush.bf16.msra.mxu0 %v4262
    %4845 = vmatpush.bf16.msra.mxu0 %v4255
    %4846 = vmatpush.bf16.msra.mxu0 %v4248
    %4847 = vmatpush.bf16.msra.mxu0 %v4241
    %4848 = vmatmul.bf16.gmra.mxu0 %v2797
    %v4849 = vpop.f32.mrf.mxu0
    %v4850 = vadd.f32 %v4836, %v4849
    %v4851 = vpop.f32.mrf.mxu0
    %v4852 = vadd.f32 %v4838, %v4851
    %4853 = vdwg.mxu0
    %4854 = vmatpush.bf16.msra.mxu0 %v4067
    %4855 = vmatpush.bf16.msra.mxu0 %v4060
    %4856 = vmatpush.bf16.msra.mxu0 %v4053
    %4857 = vmatpush.bf16.msra.mxu0 %v4046
    %4858 = vmatpush.bf16.msra.mxu0 %v4039
    %4859 = vmatpush.bf16.msra.mxu0 %v4032
    %4860 = vmatpush.bf16.msra.mxu0 %v4025
    %4861 = vmatpush.bf16.msra.mxu0 %v4018
    %4862 = vmatmul.bf16.gmra.mxu0 %v2793
    %v4863 = vpop.f32.mrf.mxu0
    %v4864 = vadd.f32 %v3124, %v4863
    %v4865 = vpop.f32.mrf.mxu0
    %v4866 = vadd.f32 %v3124, %v4865
    %4867 = vdwg.mxu0
    %4868 = vmatpush.bf16.msra.mxu0 %v4123
    %4869 = vmatpush.bf16.msra.mxu0 %v4116
    %4870 = vmatpush.bf16.msra.mxu0 %v4109
    %4871 = vmatpush.bf16.msra.mxu0 %v4102
    %4872 = vmatpush.bf16.msra.mxu0 %v4095
    %4873 = vmatpush.bf16.msra.mxu0 %v4088
    %4874 = vmatpush.bf16.msra.mxu0 %v4081
    %4875 = vmatpush.bf16.msra.mxu0 %v4074
    %4876 = vmatmul.bf16.gmra.mxu0 %v2794
    %v4877 = vpop.f32.mrf.mxu0
    %v4878 = vadd.f32 %v4864, %v4877
    %v4879 = vpop.f32.mrf.mxu0
    %v4880 = vadd.f32 %v4866, %v4879
    %4881 = vdwg.mxu0
    %4882 = vmatpush.bf16.msra.mxu0 %v4179
    %4883 = vmatpush.bf16.msra.mxu0 %v4172
    %4884 = vmatpush.bf16.msra.mxu0 %v4165
    %4885 = vmatpush.bf16.msra.mxu0 %v4158
    %4886 = vmatpush.bf16.msra.mxu0 %v4151
    %4887 = vmatpush.bf16.msra.mxu0 %v4144
    %4888 = vmatpush.bf16.msra.mxu0 %v4137
    %4889 = vmatpush.bf16.msra.mxu0 %v4130
    %4890 = vmatmul.bf16.gmra.mxu0 %v2795
    %v4891 = vpop.f32.mrf.mxu0
    %v4892 = vadd.f32 %v4878, %v4891
    %v4893 = vpop.f32.mrf.mxu0
    %v4894 = vadd.f32 %v4880, %v4893
    %4895 = vdwg.mxu0
    %4896 = vmatpush.bf16.msra.mxu0 %v4235
    %4897 = vmatpush.bf16.msra.mxu0 %v4228
    %4898 = vmatpush.bf16.msra.mxu0 %v4221
    %4899 = vmatpush.bf16.msra.mxu0 %v4214
    %4900 = vmatpush.bf16.msra.mxu0 %v4207
    %4901 = vmatpush.bf16.msra.mxu0 %v4200
    %4902 = vmatpush.bf16.msra.mxu0 %v4193
    %4903 = vmatpush.bf16.msra.mxu0 %v4186
    %4904 = vmatmul.bf16.gmra.mxu0 %v2796
    %v4905 = vpop.f32.mrf.mxu0
    %v4906 = vadd.f32 %v4892, %v4905
    %v4907 = vpop.f32.mrf.mxu0
    %v4908 = vadd.f32 %v4894, %v4907
    %4909 = vdwg.mxu0
    %4910 = vmatpush.bf16.msra.mxu0 %v4291
    %4911 = vmatpush.bf16.msra.mxu0 %v4284
    %4912 = vmatpush.bf16.msra.mxu0 %v4277
    %4913 = vmatpush.bf16.msra.mxu0 %v4270
    %4914 = vmatpush.bf16.msra.mxu0 %v4263
    %4915 = vmatpush.bf16.msra.mxu0 %v4256
    %4916 = vmatpush.bf16.msra.mxu0 %v4249
    %4917 = vmatpush.bf16.msra.mxu0 %v4242
    %4918 = vmatmul.bf16.gmra.mxu0 %v2797
    %v4919 = vpop.f32.mrf.mxu0
    %v4920 = vadd.f32 %v4906, %v4919
    %v4921 = vpop.f32.mrf.mxu0
    %v4922 = vadd.f32 %v4908, %v4921
    %4923 = vdwg.mxu0
    %4924 = vmatpush.bf16.msra.mxu0 %v4068
    %4925 = vmatpush.bf16.msra.mxu0 %v4061
    %4926 = vmatpush.bf16.msra.mxu0 %v4054
    %4927 = vmatpush.bf16.msra.mxu0 %v4047
    %4928 = vmatpush.bf16.msra.mxu0 %v4040
    %4929 = vmatpush.bf16.msra.mxu0 %v4033
    %4930 = vmatpush.bf16.msra.mxu0 %v4026
    %4931 = vmatpush.bf16.msra.mxu0 %v4019
    %4932 = vmatmul.bf16.gmra.mxu0 %v2793
    %v4933 = vpop.f32.mrf.mxu0
    %v4934 = vadd.f32 %v3125, %v4933
    %v4935 = vpop.f32.mrf.mxu0
    %v4936 = vadd.f32 %v3125, %v4935
    %4937 = vdwg.mxu0
    %4938 = vmatpush.bf16.msra.mxu0 %v4124
    %4939 = vmatpush.bf16.msra.mxu0 %v4117
    %4940 = vmatpush.bf16.msra.mxu0 %v4110
    %4941 = vmatpush.bf16.msra.mxu0 %v4103
    %4942 = vmatpush.bf16.msra.mxu0 %v4096
    %4943 = vmatpush.bf16.msra.mxu0 %v4089
    %4944 = vmatpush.bf16.msra.mxu0 %v4082
    %4945 = vmatpush.bf16.msra.mxu0 %v4075
    %4946 = vmatmul.bf16.gmra.mxu0 %v2794
    %v4947 = vpop.f32.mrf.mxu0
    %v4948 = vadd.f32 %v4934, %v4947
    %v4949 = vpop.f32.mrf.mxu0
    %v4950 = vadd.f32 %v4936, %v4949
    %4951 = vdwg.mxu0
    %4952 = vmatpush.bf16.msra.mxu0 %v4180
    %4953 = vmatpush.bf16.msra.mxu0 %v4173
    %4954 = vmatpush.bf16.msra.mxu0 %v4166
    %4955 = vmatpush.bf16.msra.mxu0 %v4159
    %4956 = vmatpush.bf16.msra.mxu0 %v4152
    %4957 = vmatpush.bf16.msra.mxu0 %v4145
    %4958 = vmatpush.bf16.msra.mxu0 %v4138
    %4959 = vmatpush.bf16.msra.mxu0 %v4131
    %4960 = vmatmul.bf16.gmra.mxu0 %v2795
    %v4961 = vpop.f32.mrf.mxu0
    %v4962 = vadd.f32 %v4948, %v4961
    %v4963 = vpop.f32.mrf.mxu0
    %v4964 = vadd.f32 %v4950, %v4963
    %4965 = vdwg.mxu0
    %4966 = vmatpush.bf16.msra.mxu0 %v4236
    %4967 = vmatpush.bf16.msra.mxu0 %v4229
    %4968 = vmatpush.bf16.msra.mxu0 %v4222
    %4969 = vmatpush.bf16.msra.mxu0 %v4215
    %4970 = vmatpush.bf16.msra.mxu0 %v4208
    %4971 = vmatpush.bf16.msra.mxu0 %v4201
    %4972 = vmatpush.bf16.msra.mxu0 %v4194
    %4973 = vmatpush.bf16.msra.mxu0 %v4187
    %4974 = vmatmul.bf16.gmra.mxu0 %v2796
    %v4975 = vpop.f32.mrf.mxu0
    %v4976 = vadd.f32 %v4962, %v4975
    %v4977 = vpop.f32.mrf.mxu0
    %v4978 = vadd.f32 %v4964, %v4977
    %4979 = vdwg.mxu0
    %4980 = vmatpush.bf16.msra.mxu0 %v4292
    %4981 = vmatpush.bf16.msra.mxu0 %v4285
    %4982 = vmatpush.bf16.msra.mxu0 %v4278
    %4983 = vmatpush.bf16.msra.mxu0 %v4271
    %4984 = vmatpush.bf16.msra.mxu0 %v4264
    %4985 = vmatpush.bf16.msra.mxu0 %v4257
    %4986 = vmatpush.bf16.msra.mxu0 %v4250
    %4987 = vmatpush.bf16.msra.mxu0 %v4243
    %4988 = vmatmul.bf16.gmra.mxu0 %v2797
    %v4989 = vpop.f32.mrf.mxu0
    %v4990 = vadd.f32 %v4976, %v4989
    %v4991 = vpop.f32.mrf.mxu0
    %v4992 = vadd.f32 %v4978, %v4991
    %4993 = vdwg.mxu0
    %4994 = vmatpush.bf16.msra.mxu0 %v4069
    %4995 = vmatpush.bf16.msra.mxu0 %v4062
    %4996 = vmatpush.bf16.msra.mxu0 %v4055
    %4997 = vmatpush.bf16.msra.mxu0 %v4048
    %4998 = vmatpush.bf16.msra.mxu0 %v4041
    %4999 = vmatpush.bf16.msra.mxu0 %v4034
    %5000 = vmatpush.bf16.msra.mxu0 %v4027
    %5001 = vmatpush.bf16.msra.mxu0 %v4020
    %5002 = vmatmul.bf16.gmra.mxu0 %v2793
    %v5003 = vpop.f32.mrf.mxu0
    %v5004 = vadd.f32 %v3126, %v5003
    %v5005 = vpop.f32.mrf.mxu0
    %v5006 = vadd.f32 %v3126, %v5005
    %5007 = vdwg.mxu0
    %5008 = vmatpush.bf16.msra.mxu0 %v4125
    %5009 = vmatpush.bf16.msra.mxu0 %v4118
    %5010 = vmatpush.bf16.msra.mxu0 %v4111
    %5011 = vmatpush.bf16.msra.mxu0 %v4104
    %5012 = vmatpush.bf16.msra.mxu0 %v4097
    %5013 = vmatpush.bf16.msra.mxu0 %v4090
    %5014 = vmatpush.bf16.msra.mxu0 %v4083
    %5015 = vmatpush.bf16.msra.mxu0 %v4076
    %5016 = vmatmul.bf16.gmra.mxu0 %v2794
    %v5017 = vpop.f32.mrf.mxu0
    %v5018 = vadd.f32 %v5004, %v5017
    %v5019 = vpop.f32.mrf.mxu0
    %v5020 = vadd.f32 %v5006, %v5019
    %5021 = vdwg.mxu0
    %5022 = vmatpush.bf16.msra.mxu0 %v4181
    %5023 = vmatpush.bf16.msra.mxu0 %v4174
    %5024 = vmatpush.bf16.msra.mxu0 %v4167
    %5025 = vmatpush.bf16.msra.mxu0 %v4160
    %5026 = vmatpush.bf16.msra.mxu0 %v4153
    %5027 = vmatpush.bf16.msra.mxu0 %v4146
    %5028 = vmatpush.bf16.msra.mxu0 %v4139
    %5029 = vmatpush.bf16.msra.mxu0 %v4132
    %5030 = vmatmul.bf16.gmra.mxu0 %v2795
    %v5031 = vpop.f32.mrf.mxu0
    %v5032 = vadd.f32 %v5018, %v5031
    %v5033 = vpop.f32.mrf.mxu0
    %v5034 = vadd.f32 %v5020, %v5033
    %5035 = vdwg.mxu0
    %5036 = vmatpush.bf16.msra.mxu0 %v4237
    %5037 = vmatpush.bf16.msra.mxu0 %v4230
    %5038 = vmatpush.bf16.msra.mxu0 %v4223
    %5039 = vmatpush.bf16.msra.mxu0 %v4216
    %5040 = vmatpush.bf16.msra.mxu0 %v4209
    %5041 = vmatpush.bf16.msra.mxu0 %v4202
    %5042 = vmatpush.bf16.msra.mxu0 %v4195
    %5043 = vmatpush.bf16.msra.mxu0 %v4188
    %5044 = vmatmul.bf16.gmra.mxu0 %v2796
    %v5045 = vpop.f32.mrf.mxu0
    %v5046 = vadd.f32 %v5032, %v5045
    %v5047 = vpop.f32.mrf.mxu0
    %v5048 = vadd.f32 %v5034, %v5047
    %5049 = vdwg.mxu0
    %5050 = vmatpush.bf16.msra.mxu0 %v4293
    %5051 = vmatpush.bf16.msra.mxu0 %v4286
    %5052 = vmatpush.bf16.msra.mxu0 %v4279
    %5053 = vmatpush.bf16.msra.mxu0 %v4272
    %5054 = vmatpush.bf16.msra.mxu0 %v4265
    %5055 = vmatpush.bf16.msra.mxu0 %v4258
    %5056 = vmatpush.bf16.msra.mxu0 %v4251
    %5057 = vmatpush.bf16.msra.mxu0 %v4244
    %5058 = vmatmul.bf16.gmra.mxu0 %v2797
    %v5059 = vpop.f32.mrf.mxu0
    %v5060 = vadd.f32 %v5046, %v5059
    %v5061 = vpop.f32.mrf.mxu0
    %v5062 = vadd.f32 %v5048, %v5061
    %5063 = vdwg.mxu0
    %v5064 = vmax.f32 %v4640, 0.0
    %v5065 = vmax.f32 %v4710, 0.0
    %v5066 = vmax.f32 %v4780, 0.0
    %v5067 = vmax.f32 %v4850, 0.0
    %v5068 = vmax.f32 %v4920, 0.0
    %v5069 = vmax.f32 %v4990, 0.0
    %v5070 = vmax.f32 %v5060, 0.0
    %v5071 = vmax.f32 %v4642, 0.0
    %v5072 = vmax.f32 %v4712, 0.0
    %v5073 = vmax.f32 %v4782, 0.0
    %v5074 = vmax.f32 %v4852, 0.0
    %v5075 = vmax.f32 %v4922, 0.0
    %v5076 = vmax.f32 %v4992, 0.0
    %v5077 = vmax.f32 %v5062, 0.0
    %s5078 = smul.u32 4, 112
    %s5079 = smul.u32 %s5078, 1
    %s5080 = sshll.u32 %s5079, 4
    %5081 = dma.done %s151, %s5080
    %v5082 = vpack.c.bf16 %v5071, %v5064
    %v5083 = vpack.c.bf16 %v5072, %v5065
    %v5084 = vpack.c.bf16 %v5073, %v5066
    %v5085 = vpack.c.bf16 %v5074, %v5067
    %v5086 = vpack.c.bf16 %v5075, %v5068
    %v5087 = vpack.c.bf16 %v5076, %v5069
    %v5088 = vpack.c.bf16 %v5077, %v5070
    %v5089 = vld [vmem:[#allocation6] sm:$0xf]
    %v5090 = vld [vmem:[#allocation6 + $0x4] sm:$0xf]
    %v5091 = vld [vmem:[#allocation6 + $0x8] sm:$0xf]
    %v5092 = vld [vmem:[#allocation6 + $0xc] sm:$0xf]
    %v5093 = vld [vmem:[#allocation6 + $0x10] sm:$0xf]
    %v5094 = vld [vmem:[#allocation6 + $0x14] sm:$0xf]
    %v5095 = vld [vmem:[#allocation6 + $0x18] sm:$0xf]
    %v5096 = vld [vmem:[#allocation6 + $0x1c] sm:$0xf]
    %v5097 = vld [vmem:[#allocation6 + $0x20] sm:$0xf]
    %v5098 = vld [vmem:[#allocation6 + $0x24] sm:$0xf]
    %v5099 = vld [vmem:[#allocation6 + $0x28] sm:$0xf]
    %v5100 = vld [vmem:[#allocation6 + $0x2c] sm:$0xf]
    %v5101 = vld [vmem:[#allocation6 + $0x30] sm:$0xf]
    %v5102 = vld [vmem:[#allocation6 + $0x34] sm:$0xf]
    %v5103 = vld [vmem:[#allocation6 + $0x38] sm:$0xf]
    %v5104 = vld [vmem:[#allocation6 + $0x3c] sm:$0xf]
    %v5105 = vld [vmem:[#allocation6 + $0x40] sm:$0xf]
    %v5106 = vld [vmem:[#allocation6 + $0x44] sm:$0xf]
    %v5107 = vld [vmem:[#allocation6 + $0x48] sm:$0xf]
    %v5108 = vld [vmem:[#allocation6 + $0x4c] sm:$0xf]
    %v5109 = vld [vmem:[#allocation6 + $0x50] sm:$0xf]
    %v5110 = vld [vmem:[#allocation6 + $0x54] sm:$0xf]
    %v5111 = vld [vmem:[#allocation6 + $0x58] sm:$0xf]
    %v5112 = vld [vmem:[#allocation6 + $0x5c] sm:$0xf]
    %v5113 = vld [vmem:[#allocation6 + $0x60] sm:$0xf]
    %v5114 = vld [vmem:[#allocation6 + $0x64] sm:$0xf]
    %v5115 = vld [vmem:[#allocation6 + $0x68] sm:$0xf]
    %v5116 = vld [vmem:[#allocation6 + $0x6c] sm:$0xf]
    %v5117 = vld [vmem:[#allocation6 + $0x70] sm:$0xf]
    %v5118 = vld [vmem:[#allocation6 + $0x74] sm:$0xf]
    %v5119 = vld [vmem:[#allocation6 + $0x78] sm:$0xf]
    %v5120 = vld [vmem:[#allocation6 + $0x7c] sm:$0xf]
    %v5121 = vld [vmem:[#allocation6 + $0x80] sm:$0xf]
    %v5122 = vld [vmem:[#allocation6 + $0x84] sm:$0xf]
    %v5123 = vld [vmem:[#allocation6 + $0x88] sm:$0xf]
    %v5124 = vld [vmem:[#allocation6 + $0x8c] sm:$0xf]
    %v5125 = vld [vmem:[#allocation6 + $0x90] sm:$0xf]
    %v5126 = vld [vmem:[#allocation6 + $0x94] sm:$0xf]
    %v5127 = vld [vmem:[#allocation6 + $0x98] sm:$0xf]
    %v5128 = vld [vmem:[#allocation6 + $0x9c] sm:$0xf]
    %v5129 = vld [vmem:[#allocation6 + $0xa0] sm:$0xf]
    %v5130 = vld [vmem:[#allocation6 + $0xa4] sm:$0xf]
    %v5131 = vld [vmem:[#allocation6 + $0xa8] sm:$0xf]
    %v5132 = vld [vmem:[#allocation6 + $0xac] sm:$0xf]
    %v5133 = vld [vmem:[#allocation6 + $0xb0] sm:$0xf]
    %v5134 = vld [vmem:[#allocation6 + $0xb4] sm:$0xf]
    %v5135 = vld [vmem:[#allocation6 + $0xb8] sm:$0xf]
    %v5136 = vld [vmem:[#allocation6 + $0xbc] sm:$0xf]
    %v5137 = vld [vmem:[#allocation6 + $0xc0] sm:$0xf]
    %v5138 = vld [vmem:[#allocation6 + $0xc4] sm:$0xf]
    %v5139 = vld [vmem:[#allocation6 + $0xc8] sm:$0xf]
    %v5140 = vld [vmem:[#allocation6 + $0xcc] sm:$0xf]
    %v5141 = vld [vmem:[#allocation6 + $0xd0] sm:$0xf]
    %v5142 = vld [vmem:[#allocation6 + $0xd4] sm:$0xf]
    %v5143 = vld [vmem:[#allocation6 + $0xd8] sm:$0xf]
    %v5144 = vld [vmem:[#allocation6 + $0xdc] sm:$0xf]
    %v5145 = vld [vmem:[#allocation6 + $0xe0] sm:$0xf]
    %v5146 = vld [vmem:[#allocation6 + $0xe4] sm:$0xf]
    %v5147 = vld [vmem:[#allocation6 + $0xe8] sm:$0xf]
    %v5148 = vld [vmem:[#allocation6 + $0xec] sm:$0xf]
    %v5149 = vld [vmem:[#allocation6 + $0xf0] sm:$0xf]
    %v5150 = vld [vmem:[#allocation6 + $0xf4] sm:$0xf]
    %v5151 = vld [vmem:[#allocation6 + $0xf8] sm:$0xf]
    %v5152 = vld [vmem:[#allocation6 + $0xfc] sm:$0xf]
    %v5153 = vld [vmem:[#allocation6 + $0x100] sm:$0xf]
    %v5154 = vld [vmem:[#allocation6 + $0x104] sm:$0xf]
    %v5155 = vld [vmem:[#allocation6 + $0x108] sm:$0xf]
    %v5156 = vld [vmem:[#allocation6 + $0x10c] sm:$0xf]
    %v5157 = vld [vmem:[#allocation6 + $0x110] sm:$0xf]
    %v5158 = vld [vmem:[#allocation6 + $0x114] sm:$0xf]
    %v5159 = vld [vmem:[#allocation6 + $0x118] sm:$0xf]
    %v5160 = vld [vmem:[#allocation6 + $0x11c] sm:$0xf]
    %v5161 = vld [vmem:[#allocation6 + $0x120] sm:$0xf]
    %v5162 = vld [vmem:[#allocation6 + $0x124] sm:$0xf]
    %v5163 = vld [vmem:[#allocation6 + $0x128] sm:$0xf]
    %v5164 = vld [vmem:[#allocation6 + $0x12c] sm:$0xf]
    %v5165 = vld [vmem:[#allocation6 + $0x130] sm:$0xf]
    %v5166 = vld [vmem:[#allocation6 + $0x134] sm:$0xf]
    %v5167 = vld [vmem:[#allocation6 + $0x138] sm:$0xf]
    %v5168 = vld [vmem:[#allocation6 + $0x13c] sm:$0xf]
    %v5169 = vld [vmem:[#allocation6 + $0x140] sm:$0xf]
    %v5170 = vld [vmem:[#allocation6 + $0x144] sm:$0xf]
    %v5171 = vld [vmem:[#allocation6 + $0x148] sm:$0xf]
    %v5172 = vld [vmem:[#allocation6 + $0x14c] sm:$0xf]
    %v5173 = vld [vmem:[#allocation6 + $0x150] sm:$0xf]
    %v5174 = vld [vmem:[#allocation6 + $0x154] sm:$0xf]
    %v5175 = vld [vmem:[#allocation6 + $0x158] sm:$0xf]
    %v5176 = vld [vmem:[#allocation6 + $0x15c] sm:$0xf]
    %v5177 = vld [vmem:[#allocation6 + $0x160] sm:$0xf]
    %v5178 = vld [vmem:[#allocation6 + $0x164] sm:$0xf]
    %v5179 = vld [vmem:[#allocation6 + $0x168] sm:$0xf]
    %v5180 = vld [vmem:[#allocation6 + $0x16c] sm:$0xf]
    %v5181 = vld [vmem:[#allocation6 + $0x170] sm:$0xf]
    %v5182 = vld [vmem:[#allocation6 + $0x174] sm:$0xf]
    %v5183 = vld [vmem:[#allocation6 + $0x178] sm:$0xf]
    %v5184 = vld [vmem:[#allocation6 + $0x17c] sm:$0xf]
    %v5185 = vld [vmem:[#allocation6 + $0x180] sm:$0xf]
    %v5186 = vld [vmem:[#allocation6 + $0x184] sm:$0xf]
    %v5187 = vld [vmem:[#allocation6 + $0x188] sm:$0xf]
    %v5188 = vld [vmem:[#allocation6 + $0x18c] sm:$0xf]
    %v5189 = vld [vmem:[#allocation6 + $0x190] sm:$0xf]
    %v5190 = vld [vmem:[#allocation6 + $0x194] sm:$0xf]
    %v5191 = vld [vmem:[#allocation6 + $0x198] sm:$0xf]
    %v5192 = vld [vmem:[#allocation6 + $0x19c] sm:$0xf]
    %v5193 = vld [vmem:[#allocation6 + $0x1a0] sm:$0xf]
    %v5194 = vld [vmem:[#allocation6 + $0x1a4] sm:$0xf]
    %v5195 = vld [vmem:[#allocation6 + $0x1a8] sm:$0xf]
    %v5196 = vld [vmem:[#allocation6 + $0x1ac] sm:$0xf]
    %v5197 = vld [vmem:[#allocation6 + $0x1b0] sm:$0xf]
    %v5198 = vld [vmem:[#allocation6 + $0x1b4] sm:$0xf]
    %v5199 = vld [vmem:[#allocation6 + $0x1b8] sm:$0xf]
    %v5200 = vld [vmem:[#allocation6 + $0x1bc] sm:$0xf]
    %v5201 = vld [vmem:[#allocation15] sm:$0x1]
    %v5203 = vperm.slane %v5201, 0
    %v5317 = vunpack.c.l.b16 %v5089
    %v5318 = vunpack.c.l.b16 %v5090
    %v5319 = vunpack.c.l.b16 %v5091
    %v5320 = vunpack.c.l.b16 %v5092
    %v5321 = vunpack.c.l.b16 %v5093
    %v5322 = vunpack.c.l.b16 %v5094
    %v5323 = vunpack.c.l.b16 %v5095
    %v5324 = vunpack.c.l.b16 %v5096
    %v5325 = vunpack.c.l.b16 %v5097
    %v5326 = vunpack.c.l.b16 %v5098
    %v5327 = vunpack.c.l.b16 %v5099
    %v5328 = vunpack.c.l.b16 %v5100
    %v5329 = vunpack.c.l.b16 %v5101
    %v5330 = vunpack.c.l.b16 %v5102
    %v5331 = vunpack.c.l.b16 %v5103
    %v5332 = vunpack.c.l.b16 %v5104
    %v5333 = vunpack.c.l.b16 %v5105
    %v5334 = vunpack.c.l.b16 %v5106
    %v5335 = vunpack.c.l.b16 %v5107
    %v5336 = vunpack.c.l.b16 %v5108
    %v5337 = vunpack.c.l.b16 %v5109
    %v5338 = vunpack.c.l.b16 %v5110
    %v5339 = vunpack.c.l.b16 %v5111
    %v5340 = vunpack.c.l.b16 %v5112
    %v5341 = vunpack.c.l.b16 %v5113
    %v5342 = vunpack.c.l.b16 %v5114
    %v5343 = vunpack.c.l.b16 %v5115
    %v5344 = vunpack.c.l.b16 %v5116
    %v5345 = vunpack.c.l.b16 %v5117
    %v5346 = vunpack.c.l.b16 %v5118
    %v5347 = vunpack.c.l.b16 %v5119
    %v5348 = vunpack.c.l.b16 %v5120
    %v5349 = vunpack.c.l.b16 %v5121
    %v5350 = vunpack.c.l.b16 %v5122
    %v5351 = vunpack.c.l.b16 %v5123
    %v5352 = vunpack.c.l.b16 %v5124
    %v5353 = vunpack.c.l.b16 %v5125
    %v5354 = vunpack.c.l.b16 %v5126
    %v5355 = vunpack.c.l.b16 %v5127
    %v5356 = vunpack.c.l.b16 %v5128
    %v5357 = vunpack.c.l.b16 %v5129
    %v5358 = vunpack.c.l.b16 %v5130
    %v5359 = vunpack.c.l.b16 %v5131
    %v5360 = vunpack.c.l.b16 %v5132
    %v5361 = vunpack.c.l.b16 %v5133
    %v5362 = vunpack.c.l.b16 %v5134
    %v5363 = vunpack.c.l.b16 %v5135
    %v5364 = vunpack.c.l.b16 %v5136
    %v5365 = vunpack.c.l.b16 %v5137
    %v5366 = vunpack.c.l.b16 %v5138
    %v5367 = vunpack.c.l.b16 %v5139
    %v5368 = vunpack.c.l.b16 %v5140
    %v5369 = vunpack.c.l.b16 %v5141
    %v5370 = vunpack.c.l.b16 %v5142
    %v5371 = vunpack.c.l.b16 %v5143
    %v5372 = vunpack.c.l.b16 %v5144
    %v5373 = vunpack.c.l.b16 %v5145
    %v5374 = vunpack.c.l.b16 %v5146
    %v5375 = vunpack.c.l.b16 %v5147
    %v5376 = vunpack.c.l.b16 %v5148
    %v5377 = vunpack.c.l.b16 %v5149
    %v5378 = vunpack.c.l.b16 %v5150
    %v5379 = vunpack.c.l.b16 %v5151
    %v5380 = vunpack.c.l.b16 %v5152
    %v5381 = vunpack.c.l.b16 %v5153
    %v5382 = vunpack.c.l.b16 %v5154
    %v5383 = vunpack.c.l.b16 %v5155
    %v5384 = vunpack.c.l.b16 %v5156
    %v5385 = vunpack.c.l.b16 %v5157
    %v5386 = vunpack.c.l.b16 %v5158
    %v5387 = vunpack.c.l.b16 %v5159
    %v5388 = vunpack.c.l.b16 %v5160
    %v5389 = vunpack.c.l.b16 %v5161
    %v5390 = vunpack.c.l.b16 %v5162
    %v5391 = vunpack.c.l.b16 %v5163
    %v5392 = vunpack.c.l.b16 %v5164
    %v5393 = vunpack.c.l.b16 %v5165
    %v5394 = vunpack.c.l.b16 %v5166
    %v5395 = vunpack.c.l.b16 %v5167
    %v5396 = vunpack.c.l.b16 %v5168
    %v5397 = vunpack.c.l.b16 %v5169
    %v5398 = vunpack.c.l.b16 %v5170
    %v5399 = vunpack.c.l.b16 %v5171
    %v5400 = vunpack.c.l.b16 %v5172
    %v5401 = vunpack.c.l.b16 %v5173
    %v5402 = vunpack.c.l.b16 %v5174
    %v5403 = vunpack.c.l.b16 %v5175
    %v5404 = vunpack.c.l.b16 %v5176
    %v5405 = vunpack.c.l.b16 %v5177
    %v5406 = vunpack.c.l.b16 %v5178
    %v5407 = vunpack.c.l.b16 %v5179
    %v5408 = vunpack.c.l.b16 %v5180
    %v5409 = vunpack.c.l.b16 %v5181
    %v5410 = vunpack.c.l.b16 %v5182
    %v5411 = vunpack.c.l.b16 %v5183
    %v5412 = vunpack.c.l.b16 %v5184
    %v5413 = vunpack.c.l.b16 %v5185
    %v5414 = vunpack.c.l.b16 %v5186
    %v5415 = vunpack.c.l.b16 %v5187
    %v5416 = vunpack.c.l.b16 %v5188
    %v5417 = vunpack.c.l.b16 %v5189
    %v5418 = vunpack.c.l.b16 %v5190
    %v5419 = vunpack.c.l.b16 %v5191
    %v5420 = vunpack.c.l.b16 %v5192
    %v5421 = vunpack.c.l.b16 %v5193
    %v5422 = vunpack.c.l.b16 %v5194
    %v5423 = vunpack.c.l.b16 %v5195
    %v5424 = vunpack.c.l.b16 %v5196
    %v5425 = vunpack.c.l.b16 %v5197
    %v5426 = vunpack.c.l.b16 %v5198
    %v5427 = vunpack.c.l.b16 %v5199
    %v5428 = vunpack.c.l.b16 %v5200
    %v5429 = vpack.c.b16 %v5318, %v5317
    %v5430 = vpack.c.b16 %v5320, %v5319
    %v5431 = vpack.c.b16 %v5322, %v5321
    %v5432 = vpack.c.b16 %v5324, %v5323
    %v5433 = vpack.c.b16 %v5326, %v5325
    %v5434 = vpack.c.b16 %v5328, %v5327
    %v5435 = vpack.c.b16 %v5330, %v5329
    %v5436 = vpack.c.b16 %v5332, %v5331
    %v5437 = vpack.c.b16 %v5334, %v5333
    %v5438 = vpack.c.b16 %v5336, %v5335
    %v5439 = vpack.c.b16 %v5338, %v5337
    %v5440 = vpack.c.b16 %v5340, %v5339
    %v5441 = vpack.c.b16 %v5342, %v5341
    %v5442 = vpack.c.b16 %v5344, %v5343
    %v5443 = vpack.c.b16 %v5346, %v5345
    %v5444 = vpack.c.b16 %v5348, %v5347
    %v5445 = vpack.c.b16 %v5350, %v5349
    %v5446 = vpack.c.b16 %v5352, %v5351
    %v5447 = vpack.c.b16 %v5354, %v5353
    %v5448 = vpack.c.b16 %v5356, %v5355
    %v5449 = vpack.c.b16 %v5358, %v5357
    %v5450 = vpack.c.b16 %v5360, %v5359
    %v5451 = vpack.c.b16 %v5362, %v5361
    %v5452 = vpack.c.b16 %v5364, %v5363
    %v5453 = vpack.c.b16 %v5366, %v5365
    %v5454 = vpack.c.b16 %v5368, %v5367
    %v5455 = vpack.c.b16 %v5370, %v5369
    %v5456 = vpack.c.b16 %v5372, %v5371
    %v5457 = vpack.c.b16 %v5374, %v5373
    %v5458 = vpack.c.b16 %v5376, %v5375
    %v5459 = vpack.c.b16 %v5378, %v5377
    %v5460 = vpack.c.b16 %v5380, %v5379
    %v5461 = vpack.c.b16 %v5382, %v5381
    %v5462 = vpack.c.b16 %v5384, %v5383
    %v5463 = vpack.c.b16 %v5386, %v5385
    %v5464 = vpack.c.b16 %v5388, %v5387
    %v5465 = vpack.c.b16 %v5390, %v5389
    %v5466 = vpack.c.b16 %v5392, %v5391
    %v5467 = vpack.c.b16 %v5394, %v5393
    %v5468 = vpack.c.b16 %v5396, %v5395
    %v5469 = vpack.c.b16 %v5398, %v5397
    %v5470 = vpack.c.b16 %v5400, %v5399
    %v5471 = vpack.c.b16 %v5402, %v5401
    %v5472 = vpack.c.b16 %v5404, %v5403
    %v5473 = vpack.c.b16 %v5406, %v5405
    %v5474 = vpack.c.b16 %v5408, %v5407
    %v5475 = vpack.c.b16 %v5410, %v5409
    %v5476 = vpack.c.b16 %v5412, %v5411
    %v5477 = vpack.c.b16 %v5414, %v5413
    %v5478 = vpack.c.b16 %v5416, %v5415
    %v5479 = vpack.c.b16 %v5418, %v5417
    %v5480 = vpack.c.b16 %v5420, %v5419
    %v5481 = vpack.c.b16 %v5422, %v5421
    %v5482 = vpack.c.b16 %v5424, %v5423
    %v5483 = vpack.c.b16 %v5426, %v5425
    %v5484 = vpack.c.b16 %v5428, %v5427
    %5541 = vmatpush.bf16.msra.mxu0 %v5436
    %5542 = vmatpush.bf16.msra.mxu0 %v5435
    %5543 = vmatpush.bf16.msra.mxu0 %v5434
    %5544 = vmatpush.bf16.msra.mxu0 %v5433
    %5545 = vmatpush.bf16.msra.mxu0 %v5432
    %5546 = vmatpush.bf16.msra.mxu0 %v5431
    %5547 = vmatpush.bf16.msra.mxu0 %v5430
    %5548 = vmatpush.bf16.msra.mxu0 %v5429
    %5549 = vmatmul.bf16.gmra.mxu0 %v5082
    %v5550 = vpop.f32.mrf.mxu0
    %v5551 = vadd.f32 %v5203, %v5550
    %v5552 = vpop.f32.mrf.mxu0
    %v5553 = vadd.f32 %v5203, %v5552
    %5554 = vdwg.mxu0
    %5555 = vmatpush.bf16.msra.mxu0 %v5444
    %5556 = vmatpush.bf16.msra.mxu0 %v5443
    %5557 = vmatpush.bf16.msra.mxu0 %v5442
    %5558 = vmatpush.bf16.msra.mxu0 %v5441
    %5559 = vmatpush.bf16.msra.mxu0 %v5440
    %5560 = vmatpush.bf16.msra.mxu0 %v5439
    %5561 = vmatpush.bf16.msra.mxu0 %v5438
    %5562 = vmatpush.bf16.msra.mxu0 %v5437
    %5563 = vmatmul.bf16.gmra.mxu0 %v5083
    %v5564 = vpop.f32.mrf.mxu0
    %v5565 = vadd.f32 %v5551, %v5564
    %v5566 = vpop.f32.mrf.mxu0
    %v5567 = vadd.f32 %v5553, %v5566
    %5568 = vdwg.mxu0
    %5569 = vmatpush.bf16.msra.mxu0 %v5452
    %5570 = vmatpush.bf16.msra.mxu0 %v5451
    %5571 = vmatpush.bf16.msra.mxu0 %v5450
    %5572 = vmatpush.bf16.msra.mxu0 %v5449
    %5573 = vmatpush.bf16.msra.mxu0 %v5448
    %5574 = vmatpush.bf16.msra.mxu0 %v5447
    %5575 = vmatpush.bf16.msra.mxu0 %v5446
    %5576 = vmatpush.bf16.msra.mxu0 %v5445
    %5577 = vmatmul.bf16.gmra.mxu0 %v5084
    %v5578 = vpop.f32.mrf.mxu0
    %v5579 = vadd.f32 %v5565, %v5578
    %v5580 = vpop.f32.mrf.mxu0
    %v5581 = vadd.f32 %v5567, %v5580
    %5582 = vdwg.mxu0
    %5583 = vmatpush.bf16.msra.mxu0 %v5460
    %5584 = vmatpush.bf16.msra.mxu0 %v5459
    %5585 = vmatpush.bf16.msra.mxu0 %v5458
    %5586 = vmatpush.bf16.msra.mxu0 %v5457
    %5587 = vmatpush.bf16.msra.mxu0 %v5456
    %5588 = vmatpush.bf16.msra.mxu0 %v5455
    %5589 = vmatpush.bf16.msra.mxu0 %v5454
    %5590 = vmatpush.bf16.msra.mxu0 %v5453
    %5591 = vmatmul.bf16.gmra.mxu0 %v5085
    %v5592 = vpop.f32.mrf.mxu0
    %v5593 = vadd.f32 %v5579, %v5592
    %v5594 = vpop.f32.mrf.mxu0
    %v5595 = vadd.f32 %v5581, %v5594
    %5596 = vdwg.mxu0
    %5597 = vmatpush.bf16.msra.mxu0 %v5468
    %5598 = vmatpush.bf16.msra.mxu0 %v5467
    %5599 = vmatpush.bf16.msra.mxu0 %v5466
    %5600 = vmatpush.bf16.msra.mxu0 %v5465
    %5601 = vmatpush.bf16.msra.mxu0 %v5464
    %5602 = vmatpush.bf16.msra.mxu0 %v5463
    %5603 = vmatpush.bf16.msra.mxu0 %v5462
    %5604 = vmatpush.bf16.msra.mxu0 %v5461
    %5605 = vmatmul.bf16.gmra.mxu0 %v5086
    %v5606 = vpop.f32.mrf.mxu0
    %v5607 = vadd.f32 %v5593, %v5606
    %v5608 = vpop.f32.mrf.mxu0
    %v5609 = vadd.f32 %v5595, %v5608
    %5610 = vdwg.mxu0
    %5611 = vmatpush.bf16.msra.mxu0 %v5476
    %5612 = vmatpush.bf16.msra.mxu0 %v5475
    %5613 = vmatpush.bf16.msra.mxu0 %v5474
    %5614 = vmatpush.bf16.msra.mxu0 %v5473
    %5615 = vmatpush.bf16.msra.mxu0 %v5472
    %5616 = vmatpush.bf16.msra.mxu0 %v5471
    %5617 = vmatpush.bf16.msra.mxu0 %v5470
    %5618 = vmatpush.bf16.msra.mxu0 %v5469
    %5619 = vmatmul.bf16.gmra.mxu0 %v5087
    %v5620 = vpop.f32.mrf.mxu0
    %v5621 = vadd.f32 %v5607, %v5620
    %v5622 = vpop.f32.mrf.mxu0
    %v5623 = vadd.f32 %v5609, %v5622
    %5624 = vdwg.mxu0
    %5625 = vmatpush.bf16.msra.mxu0 %v5484
    %5626 = vmatpush.bf16.msra.mxu0 %v5483
    %5627 = vmatpush.bf16.msra.mxu0 %v5482
    %5628 = vmatpush.bf16.msra.mxu0 %v5481
    %5629 = vmatpush.bf16.msra.mxu0 %v5480
    %5630 = vmatpush.bf16.msra.mxu0 %v5479
    %5631 = vmatpush.bf16.msra.mxu0 %v5478
    %5632 = vmatpush.bf16.msra.mxu0 %v5477
    %5633 = vmatmul.bf16.gmra.mxu0 %v5088
    %v5634 = vpop.f32.mrf.mxu0
    %v5635 = vadd.f32 %v5621, %v5634
    %v5636 = vpop.f32.mrf.mxu0
    %v5637 = vadd.f32 %v5623, %v5636
    %5638 = vdwg.mxu0
    %5639 = vst [vmem:[%s11] sm:$0xff] %v5635
    %5640 = vst [vmem:[%s11 + $0x8] sm:$0xff] %v5637
    // Predicated region
    $region66: #{mlp_forward.1} parent=1 // pred_check
      _
    $region67: #{mlp_forward.1} parent=1 // pred_check_branch
      %5642 = sbr.rel (0) target = $region69
    $region68: #{mlp_forward.1} parent=1 // pred_region
      _
    $region69: #{mlp_forward.1} parent=1 // pred_fallthru
      _
    // Predicated region
    $region70: #{mlp_forward.1} parent=1 // pred_check
      _
    $region71: #{mlp_forward.1} parent=1 // pred_check_branch
      %5644 = sbr.rel (0) target = $region73
    $region72: #{mlp_forward.1} parent=1 // pred_region
      _
    $region73: #{mlp_forward.1} parent=1 // pred_fallthru
      _
    %5645 = vsyncpa [#allocation9], 1
    %5646 = vsyncpa [#allocation11], 1
    %5647 = vsyncpa [#allocation14], 1
  %5648 = vsyncmov [#allocation7]
  %s5649 = vpop.sfrf %5648
  %p5650 = scmp.eq.s32.totalorder %s5649, 0
  %p5651 = pneg %p5650
  %5653 = shalt.err (%p5651)
  %s5654 = scalar_lea.sflag [#allocation7], 1
  %5655 = vsyncmov %s5654
  %s5656 = vpop.sfrf %5655
  %p5657 = scmp.eq.s32.totalorder %s5656, 0
  %p5658 = pneg %p5657
  %5660 = shalt.err (%p5658)
  %s5661 = scalar_lea.sflag [#allocation7], 2
  %5662 = vsyncmov %s5661
  %s5663 = vpop.sfrf %5662
  %p5664 = scmp.eq.s32.totalorder %s5663, 0
  %p5665 = pneg %p5664
  %5667 = shalt.err (%p5665)
  %s5668 = scalar_lea.sflag [#allocation7], 3
  %5669 = vsyncmov %s5668
  %s5670 = vpop.sfrf %5669
  %p5671 = scmp.eq.s32.totalorder %s5670, 0
  %p5672 = pneg %p5671
  %5674 = shalt.err (%p5672)
  %s5675 = scalar_lea.sflag [#allocation7], 4
  %5676 = vsyncmov %s5675
  %s5677 = vpop.sfrf %5676
  %p5678 = scmp.eq.s32.totalorder %s5677, 0
  %p5679 = pneg %p5678
  %5681 = shalt.err (%p5679)

</llo_original>
